<compile_context>
chip_gen: v6e
topology: v6e:2x2x1
jax: 0.10.0
libtpu: 0.0.40
codegen_flags: <defaults>
</compile_context>

<pallas_src>
import jax
import jax.numpy as jnp
from jax import lax
from jax.experimental import pallas as pl
from jax.experimental.pallas import tpu as pltpu


_CIN_PAD = 8          # pad the single input channel to a matmul-friendly contraction dim
_POS_ROWS = 512       # getPositionEncoding(512, 250) is hard-coded in the module
_POS_COLS = 250


def _shift_matrix(h, delta):
    """M such that (M @ x)[t] == x[t + delta], zero outside [0, h)."""
    r = lax.broadcasted_iota(jnp.int32, (h, h), 0)
    c = lax.broadcasted_iota(jnp.int32, (h, h), 1)
    return (c == r + delta).astype(jnp.float32)


def _pool_select_matrix(h, offset):
    """M such that (M @ x)[i] == x[2*i + offset]."""
    r = lax.broadcasted_iota(jnp.int32, (h // 2, h), 0)
    c = lax.broadcasted_iota(jnp.int32, (h // 2, h), 1)
    return (c == 2 * r + offset).astype(jnp.float32)


def _conv_tanh_pool(x, w3, bias):
    """One block: Conv2d((3,1),'same') + bias -> tanh -> MaxPool2d((2,1), stride=2).

    x    : (H, Cin) time-major / channels-last (W already reduced to its surviving column)
    w3   : (3*Cin, Cout) conv taps for time offsets -1 / 0 / +1 stacked along the K axis
    bias : (1, Cout)
    returns (H // 2, Cout)
    """
    h = x.shape[0]
    xm = jnp.dot(_shift_matrix(h, -1), x, preferred_element_type=jnp.float32)   # x[t-1], 0-pad
    xp = jnp.dot(_shift_matrix(h, +1), x, preferred_element_type=jnp.float32)   # x[t+1], 0-pad
    x3 = jnp.concatenate([xm, x, xp], axis=1)                                   # (H, 3*Cin)
    y = jnp.tanh(jnp.dot(x3, w3, preferred_element_type=jnp.float32) + bias)
    even = jnp.dot(_pool_select_matrix(h, 0), y, preferred_element_type=jnp.float32)
    odd = jnp.dot(_pool_select_matrix(h, 1), y, preferred_element_type=jnp.float32)
    return jnp.maximum(even, odd)


def _audio_embedding_kernel(x_ref, *rest):
    *wb_refs, pos_ref, o_ref = rest
    x = x_ref[0].astype(jnp.float32)                       # (H, _CIN_PAD)
    for li in range(5):                                    # static unroll, shapes shrink
        w3 = wb_refs[2 * li][...]                          # (3*Cin, Cout)
        b = wb_refs[2 * li + 1][...]                       # (1, Cout)
        x = _conv_tanh_pool(x, w3, b)
    # TODO(synk): nn.Dropout(0.1) is treated as identity (inference mode); a train-mode mask
    # would use pltpu.prng_seed / pltpu.prng_random_bits.
    # x is (Hf, 512) with Hf in {1, 250}; broadcast-add the (250, 512) position table in the
    # lane-dense (time, channel) layout.  Host transposes back to torch's (512, 250).
    o_ref[0] = (x + pos_ref[...]).astype(o_ref.dtype)


def position_encoding(rows, cols, n=10000.0):
    """JAX replica of AudioEmbedding.getPositionEncoding."""
    k = jnp.arange(rows, dtype=jnp.float32)[:, None]
    i = jnp.arange(cols // 2, dtype=jnp.float32)[None, :]
    denom = jnp.power(jnp.float32(n), 2.0 * i / float(cols))
    ang = k / denom
    table = jnp.zeros((rows, cols), jnp.float32)
    table = table.at[:, 0::2].set(jnp.sin(ang))
    table = table.at[:, 1::2].set(jnp.cos(ang))
    return table


def audio_embedding_pallas(data, conv_params):
    """data: (B, 1, H, W) f32.  conv_params: 5x (weight (Cout, Cin, 3, 1), bias (Cout,))."""
    B, cin, H, W = data.shape
    assert cin == 1
    assert H % 32 == 0, "each of the 5 blocks halves the time axis"
    hf = H // 32
    assert hf in (1, _POS_COLS), "torch.add broadcast needs pooled time dim of 1 or 250"
    # The W-axis max pools (kernel 1, stride 2) keep only column 2*w' -> after 5 blocks the
    # surviving column is original column 0, and squeeze(dim=-1) requires W to collapse to 1.
    w = W
    for _ in range(5):
        w = (w - 1) // 2 + 1
    assert w == 1, "squeeze(dim=-1) in the module requires the W axis to collapse to 1"

    x_col = data[:, 0, :, 0]                                              # (B, H)
    x_in = jnp.zeros((B, H, _CIN_PAD), data.dtype).at[:, :, 0].set(x_col)

    inputs = [x_in]
    in_specs = [pl.BlockSpec((1, H, _CIN_PAD), lambda b: (b, 0, 0))]
    flops = 0
    transc = 0
    h_cur, cin_cur = H, _CIN_PAD
    for li, (wt, bt) in enumerate(conv_params):
        cout = wt.shape[0]
        taps = jnp.transpose(wt[:, :, :, 0], (2, 1, 0)).astype(jnp.float32)  # (3, Cin, Cout)
        if li == 0:      # pad the single real input channel up to _CIN_PAD with zeros
            taps = jnp.zeros((3, _CIN_PAD, cout), jnp.float32).at[:, :1, :].set(taps)
        w3 = taps.reshape(3 * taps.shape[1], cout)                           # (3*Cin, Cout)
        bias = bt.reshape(1, cout).astype(jnp.float32)
        inputs += [w3, bias]
        in_specs += [pl.BlockSpec(w3.shape, lambda b: (0, 0)),
                     pl.BlockSpec(bias.shape, lambda b: (0, 0))]
        # advisory cost model (per batch item)
        flops += 2 * (2 * h_cur * h_cur * cin_cur)            # two shift matmuls
        flops += 2 * h_cur * (3 * cin_cur) * cout             # fused tap matmul
        flops += 2 * (2 * (h_cur // 2) * h_cur * cout)        # two pool-select matmuls
        transc += h_cur * cout                                 # tanh
        h_cur //= 2
        cin_cur = cout

    pos_t = position_encoding(_POS_ROWS, _POS_COLS).T                     # (250, 512)
    inputs.append(pos_t)
    in_specs.append(pl.BlockSpec((_POS_COLS, _POS_ROWS), lambda b: (0, 0)))

    out_bytes = B * _POS_COLS * _POS_ROWS * 4
    bytes_accessed = int(sum(int(a.size) * 4 for a in inputs) + out_bytes)
    cost = pl.CostEstimate(flops=int(B * flops),
                           transcendentals=int(B * transc),
                           bytes_accessed=bytes_accessed)

    out = pl.pallas_call(
        _audio_embedding_kernel,
        out_shape=jax.ShapeDtypeStruct((B, _POS_COLS, _POS_ROWS), jnp.float32),
        grid=(B,),
        in_specs=in_specs,
        out_specs=pl.BlockSpec((1, _POS_COLS, _POS_ROWS), lambda b: (b, 0, 0)),
        compiler_params=pltpu.CompilerParams(dimension_semantics=("parallel",)),
        cost_estimate=cost,
    )(*inputs)
    return jnp.transpose(out, (0, 2, 1))                                  # (B, 512, 250)


def audio_embedding_reference(data, conv_params, pos_table):
    """Pure-JAX (lax.conv) replica of the PyTorch forward, for validation."""
    y = data                                                              # (B, 1, H, W)
    for wt, bt in conv_params:
        y = lax.conv_general_dilated(
            y, wt, window_strides=(1, 1), padding=((1, 1), (0, 0)),
            dimension_numbers=("NCHW", "OIHW", "NCHW"),
            precision=lax.Precision.HIGHEST)
        y = jnp.tanh(y + bt[None, :, None, None])
        # MaxPool2d(kernel=(2,1), stride=2): pairwise max over H, stride-2 subsample over W
        y = jnp.maximum(y[:, :, 0::2, :], y[:, :, 1::2, :])
        y = y[:, :, :, 0::2]
    feat = jnp.squeeze(y, axis=-1)                                        # (B, 512, Hf)
    return feat + pos_table                                               # -> (B, 512, 250)


if __name__ == "__main__":
    B, H, W = 2, 32, 32       # W=32 collapses to a single column; H=32 -> pooled time dim 1
    key = jax.random.PRNGKey(0)
    keys = jax.random.split(key, 11)
    data = jax.random.normal(keys[0], (B, 1, H, W), dtype=jnp.float32)

    channels = [1, 32, 64, 128, 256, 512]
    conv_params = []
    for li in range(5):
        c_in, c_out = channels[li], channels[li + 1]
        bound = 1.0 / float(3 * c_in) ** 0.5             # nn.Conv2d default init scale
        wt = jax.random.uniform(keys[1 + 2 * li], (c_out, c_in, 3, 1),
                                jnp.float32, -bound, bound)
        bt = jax.random.uniform(keys[2 + 2 * li], (c_out,), jnp.float32, -bound, bound)
        conv_params.append((wt, bt))

    out = audio_embedding_pallas(data, conv_params)
    out = jax.block_until_ready(out)

    ref = audio_embedding_reference(data, conv_params,
                                    position_encoding(_POS_ROWS, _POS_COLS))
    assert out.shape == (B, 512, 250), out.shape
    assert jnp.allclose(out, ref, rtol=1e-4, atol=1e-4), \
        float(jnp.max(jnp.abs(out - ref)))

    print("KERNEL_OK")
</pallas_src>

<mosaic_0001>
module attributes {stable_mosaic.version = 11 : i64} {
  func.func @_audio_embedding_kernel(%arg0: i32, %arg1: memref<1x32x8xf32, #tpu.memory_space<vmem>>, %arg2: memref<24x32xf32, #tpu.memory_space<vmem>>, %arg3: memref<1x32xf32, #tpu.memory_space<vmem>>, %arg4: memref<96x64xf32, #tpu.memory_space<vmem>>, %arg5: memref<1x64xf32, #tpu.memory_space<vmem>>, %arg6: memref<192x128xf32, #tpu.memory_space<vmem>>, %arg7: memref<1x128xf32, #tpu.memory_space<vmem>>, %arg8: memref<384x256xf32, #tpu.memory_space<vmem>>, %arg9: memref<1x256xf32, #tpu.memory_space<vmem>>, %arg10: memref<768x512xf32, #tpu.memory_space<vmem>>, %arg11: memref<1x512xf32, #tpu.memory_space<vmem>>, %arg12: memref<250x512xf32, #tpu.memory_space<vmem>>, %arg13: memref<1x250x512xf32, #tpu.memory_space<vmem>>) attributes {dimension_semantics = [#tpu.dimension_semantics<parallel>], iteration_bounds = array<i64: 2>, scalar_prefetch = 0 : i64, scratch_operands = 0 : i64, tpu.core_type = #tpu.core_type<tc>, window_params = [{transform_indices = @transform_0, window_bounds = array<i64: 1, 32, 8>}, {pipeline_mode = #tpu.pipeline_mode<synchronous>, transform_indices = @transform_1, window_bounds = array<i64: 24, 32>}, {pipeline_mode = #tpu.pipeline_mode<synchronous>, transform_indices = @transform_2, window_bounds = array<i64: 1, 32>}, {pipeline_mode = #tpu.pipeline_mode<synchronous>, transform_indices = @transform_3, window_bounds = array<i64: 96, 64>}, {pipeline_mode = #tpu.pipeline_mode<synchronous>, transform_indices = @transform_4, window_bounds = array<i64: 1, 64>}, {pipeline_mode = #tpu.pipeline_mode<synchronous>, transform_indices = @transform_5, window_bounds = array<i64: 192, 128>}, {pipeline_mode = #tpu.pipeline_mode<synchronous>, transform_indices = @transform_6, window_bounds = array<i64: 1, 128>}, {pipeline_mode = #tpu.pipeline_mode<synchronous>, transform_indices = @transform_7, window_bounds = array<i64: 384, 256>}, {pipeline_mode = #tpu.pipeline_mode<synchronous>, transform_indices = @transform_8, window_bounds = array<i64: 1, 256>}, {pipeline_mode = #tpu.pipeline_mode<synchronous>, transform_indices = @transform_9, window_bounds = array<i64: 768, 512>}, {pipeline_mode = #tpu.pipeline_mode<synchronous>, transform_indices = @transform_10, window_bounds = array<i64: 1, 512>}, {pipeline_mode = #tpu.pipeline_mode<synchronous>, transform_indices = @transform_11, window_bounds = array<i64: 250, 512>}, {transform_indices = @transform_12, window_bounds = array<i64: 1, 250, 512>}]} {
    %c0 = arith.constant 0 : index
    %c0_0 = arith.constant 0 : index
    %c0_1 = arith.constant 0 : index
    %0 = vector.load %arg1[%c0, %c0_0, %c0_1] : memref<1x32x8xf32, #tpu.memory_space<vmem>>, vector<1x32x8xf32>
    %1 = vector.shape_cast %0 : vector<1x32x8xf32> to vector<32x8xf32>
    %c0_2 = arith.constant 0 : index
    %c0_3 = arith.constant 0 : index
    %2 = vector.load %arg2[%c0_2, %c0_3] : memref<24x32xf32, #tpu.memory_space<vmem>>, vector<24x32xf32>
    %c0_4 = arith.constant 0 : index
    %c0_5 = arith.constant 0 : index
    %3 = vector.load %arg3[%c0_4, %c0_5] : memref<1x32xf32, #tpu.memory_space<vmem>>, vector<1x32xf32>
    %4 = tpu.iota {dimensions = array<i32: 0>} : vector<32x32xi32>
    %5 = tpu.iota {dimensions = array<i32: 1>} : vector<32x32xi32>
    %c-1_i32 = arith.constant -1 : i32
    %6 = vector.broadcast %c-1_i32 : i32 to vector<32x32xi32>
    %7 = arith.addi %4, %6 : vector<32x32xi32>
    %8 = arith.cmpi eq, %5, %7 : vector<32x32xi32>
    %9 = arith.extui %8 : vector<32x32xi1> to vector<32x32xi32>
    %10 = arith.sitofp %9 : vector<32x32xi32> to vector<32x32xf32>
    %cst = arith.constant dense<0.000000e+00> : vector<32x8xf32>
    %11 = tpu.matmul %10, %1, %cst {dimension_numbers = #tpu.dot_dimension_numbers<[1], [0], [0], [1], [0, 0, 1, 1], [], []>} : vector<32x32xf32>, vector<32x8xf32>, vector<32x8xf32> -> vector<32x8xf32>
    %12 = tpu.iota {dimensions = array<i32: 0>} : vector<32x32xi32>
    %13 = tpu.iota {dimensions = array<i32: 1>} : vector<32x32xi32>
    %c1_i32 = arith.constant 1 : i32
    %14 = vector.broadcast %c1_i32 : i32 to vector<32x32xi32>
    %15 = arith.addi %12, %14 : vector<32x32xi32>
    %16 = arith.cmpi eq, %13, %15 : vector<32x32xi32>
    %17 = arith.extui %16 : vector<32x32xi1> to vector<32x32xi32>
    %18 = arith.sitofp %17 : vector<32x32xi32> to vector<32x32xf32>
    %cst_6 = arith.constant dense<0.000000e+00> : vector<32x8xf32>
    %19 = tpu.matmul %18, %1, %cst_6 {dimension_numbers = #tpu.dot_dimension_numbers<[1], [0], [0], [1], [0, 0, 1, 1], [], []>} : vector<32x32xf32>, vector<32x8xf32>, vector<32x8xf32> -> vector<32x8xf32>
    %20 = tpu.concatenate %11, %1, %19 in 1 : vector<32x8xf32>, vector<32x8xf32>, vector<32x8xf32> -> vector<32x24xf32>
    %cst_7 = arith.constant dense<0.000000e+00> : vector<32x32xf32>
    %21 = tpu.matmul %20, %2, %cst_7 {dimension_numbers = #tpu.dot_dimension_numbers<[1], [0], [0], [1], [0, 0, 1, 1], [], []>} : vector<32x24xf32>, vector<24x32xf32>, vector<32x32xf32> -> vector<32x32xf32>
    %22 = vector.broadcast %3 : vector<1x32xf32> to vector<32x32xf32>
    %23 = arith.addf %21, %22 : vector<32x32xf32>
    %24 = math.tanh %23 : vector<32x32xf32>
    %25 = tpu.iota {dimensions = array<i32: 0>} : vector<16x32xi32>
    %26 = tpu.iota {dimensions = array<i32: 1>} : vector<16x32xi32>
    %c2_i32 = arith.constant 2 : i32
    %27 = vector.broadcast %c2_i32 : i32 to vector<16x32xi32>
    %28 = arith.muli %27, %25 : vector<16x32xi32>
    %c0_i32 = arith.constant 0 : i32
    %29 = vector.broadcast %c0_i32 : i32 to vector<16x32xi32>
    %30 = arith.addi %28, %29 : vector<16x32xi32>
    %31 = arith.cmpi eq, %26, %30 : vector<16x32xi32>
    %32 = arith.extui %31 : vector<16x32xi1> to vector<16x32xi32>
    %33 = arith.sitofp %32 : vector<16x32xi32> to vector<16x32xf32>
    %cst_8 = arith.constant dense<0.000000e+00> : vector<16x32xf32>
    %34 = tpu.matmul %33, %24, %cst_8 {dimension_numbers = #tpu.dot_dimension_numbers<[1], [0], [0], [1], [0, 0, 1, 1], [], []>} : vector<16x32xf32>, vector<32x32xf32>, vector<16x32xf32> -> vector<16x32xf32>
    %35 = tpu.iota {dimensions = array<i32: 0>} : vector<16x32xi32>
    %36 = tpu.iota {dimensions = array<i32: 1>} : vector<16x32xi32>
    %c2_i32_9 = arith.constant 2 : i32
    %37 = vector.broadcast %c2_i32_9 : i32 to vector<16x32xi32>
    %38 = arith.muli %37, %35 : vector<16x32xi32>
    %c1_i32_10 = arith.constant 1 : i32
    %39 = vector.broadcast %c1_i32_10 : i32 to vector<16x32xi32>
    %40 = arith.addi %38, %39 : vector<16x32xi32>
    %41 = arith.cmpi eq, %36, %40 : vector<16x32xi32>
    %42 = arith.extui %41 : vector<16x32xi1> to vector<16x32xi32>
    %43 = arith.sitofp %42 : vector<16x32xi32> to vector<16x32xf32>
    %cst_11 = arith.constant dense<0.000000e+00> : vector<16x32xf32>
    %44 = tpu.matmul %43, %24, %cst_11 {dimension_numbers = #tpu.dot_dimension_numbers<[1], [0], [0], [1], [0, 0, 1, 1], [], []>} : vector<16x32xf32>, vector<32x32xf32>, vector<16x32xf32> -> vector<16x32xf32>
    %45 = arith.maximumf %34, %44 : vector<16x32xf32>
    %c0_12 = arith.constant 0 : index
    %c0_13 = arith.constant 0 : index
    %46 = vector.load %arg4[%c0_12, %c0_13] : memref<96x64xf32, #tpu.memory_space<vmem>>, vector<96x64xf32>
    %c0_14 = arith.constant 0 : index
    %c0_15 = arith.constant 0 : index
    %47 = vector.load %arg5[%c0_14, %c0_15] : memref<1x64xf32, #tpu.memory_space<vmem>>, vector<1x64xf32>
    %48 = tpu.iota {dimensions = array<i32: 0>} : vector<16x16xi32>
    %49 = tpu.iota {dimensions = array<i32: 1>} : vector<16x16xi32>
    %c-1_i32_16 = arith.constant -1 : i32
    %50 = vector.broadcast %c-1_i32_16 : i32 to vector<16x16xi32>
    %51 = arith.addi %48, %50 : vector<16x16xi32>
    %52 = arith.cmpi eq, %49, %51 : vector<16x16xi32>
    %53 = arith.extui %52 : vector<16x16xi1> to vector<16x16xi32>
    %54 = arith.sitofp %53 : vector<16x16xi32> to vector<16x16xf32>
    %cst_17 = arith.constant dense<0.000000e+00> : vector<16x32xf32>
    %55 = tpu.matmul %54, %45, %cst_17 {dimension_numbers = #tpu.dot_dimension_numbers<[1], [0], [0], [1], [0, 0, 1, 1], [], []>} : vector<16x16xf32>, vector<16x32xf32>, vector<16x32xf32> -> vector<16x32xf32>
    %56 = tpu.iota {dimensions = array<i32: 0>} : vector<16x16xi32>
    %57 = tpu.iota {dimensions = array<i32: 1>} : vector<16x16xi32>
    %c1_i32_18 = arith.constant 1 : i32
    %58 = vector.broadcast %c1_i32_18 : i32 to vector<16x16xi32>
    %59 = arith.addi %56, %58 : vector<16x16xi32>
    %60 = arith.cmpi eq, %57, %59 : vector<16x16xi32>
    %61 = arith.extui %60 : vector<16x16xi1> to vector<16x16xi32>
    %62 = arith.sitofp %61 : vector<16x16xi32> to vector<16x16xf32>
    %cst_19 = arith.constant dense<0.000000e+00> : vector<16x32xf32>
    %63 = tpu.matmul %62, %45, %cst_19 {dimension_numbers = #tpu.dot_dimension_numbers<[1], [0], [0], [1], [0, 0, 1, 1], [], []>} : vector<16x16xf32>, vector<16x32xf32>, vector<16x32xf32> -> vector<16x32xf32>
    %64 = tpu.concatenate %55, %45, %63 in 1 : vector<16x32xf32>, vector<16x32xf32>, vector<16x32xf32> -> vector<16x96xf32>
    %cst_20 = arith.constant dense<0.000000e+00> : vector<16x64xf32>
    %65 = tpu.matmul %64, %46, %cst_20 {dimension_numbers = #tpu.dot_dimension_numbers<[1], [0], [0], [1], [0, 0, 1, 1], [], []>} : vector<16x96xf32>, vector<96x64xf32>, vector<16x64xf32> -> vector<16x64xf32>
    %66 = vector.broadcast %47 : vector<1x64xf32> to vector<16x64xf32>
    %67 = arith.addf %65, %66 : vector<16x64xf32>
    %68 = math.tanh %67 : vector<16x64xf32>
    %69 = tpu.iota {dimensions = array<i32: 0>} : vector<8x16xi32>
    %70 = tpu.iota {dimensions = array<i32: 1>} : vector<8x16xi32>
    %c2_i32_21 = arith.constant 2 : i32
    %71 = vector.broadcast %c2_i32_21 : i32 to vector<8x16xi32>
    %72 = arith.muli %71, %69 : vector<8x16xi32>
    %c0_i32_22 = arith.constant 0 : i32
    %73 = vector.broadcast %c0_i32_22 : i32 to vector<8x16xi32>
    %74 = arith.addi %72, %73 : vector<8x16xi32>
    %75 = arith.cmpi eq, %70, %74 : vector<8x16xi32>
    %76 = arith.extui %75 : vector<8x16xi1> to vector<8x16xi32>
    %77 = arith.sitofp %76 : vector<8x16xi32> to vector<8x16xf32>
    %cst_23 = arith.constant dense<0.000000e+00> : vector<8x64xf32>
    %78 = tpu.matmul %77, %68, %cst_23 {dimension_numbers = #tpu.dot_dimension_numbers<[1], [0], [0], [1], [0, 0, 1, 1], [], []>} : vector<8x16xf32>, vector<16x64xf32>, vector<8x64xf32> -> vector<8x64xf32>
    %79 = tpu.iota {dimensions = array<i32: 0>} : vector<8x16xi32>
    %80 = tpu.iota {dimensions = array<i32: 1>} : vector<8x16xi32>
    %c2_i32_24 = arith.constant 2 : i32
    %81 = vector.broadcast %c2_i32_24 : i32 to vector<8x16xi32>
    %82 = arith.muli %81, %79 : vector<8x16xi32>
    %c1_i32_25 = arith.constant 1 : i32
    %83 = vector.broadcast %c1_i32_25 : i32 to vector<8x16xi32>
    %84 = arith.addi %82, %83 : vector<8x16xi32>
    %85 = arith.cmpi eq, %80, %84 : vector<8x16xi32>
    %86 = arith.extui %85 : vector<8x16xi1> to vector<8x16xi32>
    %87 = arith.sitofp %86 : vector<8x16xi32> to vector<8x16xf32>
    %cst_26 = arith.constant dense<0.000000e+00> : vector<8x64xf32>
    %88 = tpu.matmul %87, %68, %cst_26 {dimension_numbers = #tpu.dot_dimension_numbers<[1], [0], [0], [1], [0, 0, 1, 1], [], []>} : vector<8x16xf32>, vector<16x64xf32>, vector<8x64xf32> -> vector<8x64xf32>
    %89 = arith.maximumf %78, %88 : vector<8x64xf32>
    %c0_27 = arith.constant 0 : index
    %c0_28 = arith.constant 0 : index
    %90 = vector.load %arg6[%c0_27, %c0_28] : memref<192x128xf32, #tpu.memory_space<vmem>>, vector<192x128xf32>
    %c0_29 = arith.constant 0 : index
    %c0_30 = arith.constant 0 : index
    %91 = vector.load %arg7[%c0_29, %c0_30] : memref<1x128xf32, #tpu.memory_space<vmem>>, vector<1x128xf32>
    %92 = tpu.iota {dimensions = array<i32: 0>} : vector<8x8xi32>
    %93 = tpu.iota {dimensions = array<i32: 1>} : vector<8x8xi32>
    %c-1_i32_31 = arith.constant -1 : i32
    %94 = vector.broadcast %c-1_i32_31 : i32 to vector<8x8xi32>
    %95 = arith.addi %92, %94 : vector<8x8xi32>
    %96 = arith.cmpi eq, %93, %95 : vector<8x8xi32>
    %97 = arith.extui %96 : vector<8x8xi1> to vector<8x8xi32>
    %98 = arith.sitofp %97 : vector<8x8xi32> to vector<8x8xf32>
    %cst_32 = arith.constant dense<0.000000e+00> : vector<8x64xf32>
    %99 = tpu.matmul %98, %89, %cst_32 {dimension_numbers = #tpu.dot_dimension_numbers<[1], [0], [0], [1], [0, 0, 1, 1], [], []>} : vector<8x8xf32>, vector<8x64xf32>, vector<8x64xf32> -> vector<8x64xf32>
    %100 = tpu.iota {dimensions = array<i32: 0>} : vector<8x8xi32>
    %101 = tpu.iota {dimensions = array<i32: 1>} : vector<8x8xi32>
    %c1_i32_33 = arith.constant 1 : i32
    %102 = vector.broadcast %c1_i32_33 : i32 to vector<8x8xi32>
    %103 = arith.addi %100, %102 : vector<8x8xi32>
    %104 = arith.cmpi eq, %101, %103 : vector<8x8xi32>
    %105 = arith.extui %104 : vector<8x8xi1> to vector<8x8xi32>
    %106 = arith.sitofp %105 : vector<8x8xi32> to vector<8x8xf32>
    %cst_34 = arith.constant dense<0.000000e+00> : vector<8x64xf32>
    %107 = tpu.matmul %106, %89, %cst_34 {dimension_numbers = #tpu.dot_dimension_numbers<[1], [0], [0], [1], [0, 0, 1, 1], [], []>} : vector<8x8xf32>, vector<8x64xf32>, vector<8x64xf32> -> vector<8x64xf32>
    %108 = tpu.concatenate %99, %89, %107 in 1 : vector<8x64xf32>, vector<8x64xf32>, vector<8x64xf32> -> vector<8x192xf32>
    %cst_35 = arith.constant dense<0.000000e+00> : vector<8x128xf32>
    %109 = tpu.matmul %108, %90, %cst_35 {dimension_numbers = #tpu.dot_dimension_numbers<[1], [0], [0], [1], [0, 0, 1, 1], [], []>} : vector<8x192xf32>, vector<192x128xf32>, vector<8x128xf32> -> vector<8x128xf32>
    %110 = vector.broadcast %91 : vector<1x128xf32> to vector<8x128xf32>
    %111 = arith.addf %109, %110 : vector<8x128xf32>
    %112 = math.tanh %111 : vector<8x128xf32>
    %113 = tpu.iota {dimensions = array<i32: 0>} : vector<4x8xi32>
    %114 = tpu.iota {dimensions = array<i32: 1>} : vector<4x8xi32>
    %c2_i32_36 = arith.constant 2 : i32
    %115 = vector.broadcast %c2_i32_36 : i32 to vector<4x8xi32>
    %116 = arith.muli %115, %113 : vector<4x8xi32>
    %c0_i32_37 = arith.constant 0 : i32
    %117 = vector.broadcast %c0_i32_37 : i32 to vector<4x8xi32>
    %118 = arith.addi %116, %117 : vector<4x8xi32>
    %119 = arith.cmpi eq, %114, %118 : vector<4x8xi32>
    %120 = arith.extui %119 : vector<4x8xi1> to vector<4x8xi32>
    %121 = arith.sitofp %120 : vector<4x8xi32> to vector<4x8xf32>
    %cst_38 = arith.constant dense<0.000000e+00> : vector<4x128xf32>
    %122 = tpu.matmul %121, %112, %cst_38 {dimension_numbers = #tpu.dot_dimension_numbers<[1], [0], [0], [1], [0, 0, 1, 1], [], []>} : vector<4x8xf32>, vector<8x128xf32>, vector<4x128xf32> -> vector<4x128xf32>
    %123 = tpu.iota {dimensions = array<i32: 0>} : vector<4x8xi32>
    %124 = tpu.iota {dimensions = array<i32: 1>} : vector<4x8xi32>
    %c2_i32_39 = arith.constant 2 : i32
    %125 = vector.broadcast %c2_i32_39 : i32 to vector<4x8xi32>
    %126 = arith.muli %125, %123 : vector<4x8xi32>
    %c1_i32_40 = arith.constant 1 : i32
    %127 = vector.broadcast %c1_i32_40 : i32 to vector<4x8xi32>
    %128 = arith.addi %126, %127 : vector<4x8xi32>
    %129 = arith.cmpi eq, %124, %128 : vector<4x8xi32>
    %130 = arith.extui %129 : vector<4x8xi1> to vector<4x8xi32>
    %131 = arith.sitofp %130 : vector<4x8xi32> to vector<4x8xf32>
    %cst_41 = arith.constant dense<0.000000e+00> : vector<4x128xf32>
    %132 = tpu.matmul %131, %112, %cst_41 {dimension_numbers = #tpu.dot_dimension_numbers<[1], [0], [0], [1], [0, 0, 1, 1], [], []>} : vector<4x8xf32>, vector<8x128xf32>, vector<4x128xf32> -> vector<4x128xf32>
    %133 = arith.maximumf %122, %132 : vector<4x128xf32>
    %c0_42 = arith.constant 0 : index
    %c0_43 = arith.constant 0 : index
    %134 = vector.load %arg8[%c0_42, %c0_43] : memref<384x256xf32, #tpu.memory_space<vmem>>, vector<384x256xf32>
    %c0_44 = arith.constant 0 : index
    %c0_45 = arith.constant 0 : index
    %135 = vector.load %arg9[%c0_44, %c0_45] : memref<1x256xf32, #tpu.memory_space<vmem>>, vector<1x256xf32>
    %136 = tpu.iota {dimensions = array<i32: 0>} : vector<4x4xi32>
    %137 = tpu.iota {dimensions = array<i32: 1>} : vector<4x4xi32>
    %c-1_i32_46 = arith.constant -1 : i32
    %138 = vector.broadcast %c-1_i32_46 : i32 to vector<4x4xi32>
    %139 = arith.addi %136, %138 : vector<4x4xi32>
    %140 = arith.cmpi eq, %137, %139 : vector<4x4xi32>
    %141 = arith.extui %140 : vector<4x4xi1> to vector<4x4xi32>
    %142 = arith.sitofp %141 : vector<4x4xi32> to vector<4x4xf32>
    %cst_47 = arith.constant dense<0.000000e+00> : vector<4x128xf32>
    %143 = tpu.matmul %142, %133, %cst_47 {dimension_numbers = #tpu.dot_dimension_numbers<[1], [0], [0], [1], [0, 0, 1, 1], [], []>} : vector<4x4xf32>, vector<4x128xf32>, vector<4x128xf32> -> vector<4x128xf32>
    %144 = tpu.iota {dimensions = array<i32: 0>} : vector<4x4xi32>
    %145 = tpu.iota {dimensions = array<i32: 1>} : vector<4x4xi32>
    %c1_i32_48 = arith.constant 1 : i32
    %146 = vector.broadcast %c1_i32_48 : i32 to vector<4x4xi32>
    %147 = arith.addi %144, %146 : vector<4x4xi32>
    %148 = arith.cmpi eq, %145, %147 : vector<4x4xi32>
    %149 = arith.extui %148 : vector<4x4xi1> to vector<4x4xi32>
    %150 = arith.sitofp %149 : vector<4x4xi32> to vector<4x4xf32>
    %cst_49 = arith.constant dense<0.000000e+00> : vector<4x128xf32>
    %151 = tpu.matmul %150, %133, %cst_49 {dimension_numbers = #tpu.dot_dimension_numbers<[1], [0], [0], [1], [0, 0, 1, 1], [], []>} : vector<4x4xf32>, vector<4x128xf32>, vector<4x128xf32> -> vector<4x128xf32>
    %152 = tpu.concatenate %143, %133, %151 in 1 : vector<4x128xf32>, vector<4x128xf32>, vector<4x128xf32> -> vector<4x384xf32>
    %cst_50 = arith.constant dense<0.000000e+00> : vector<4x256xf32>
    %153 = tpu.matmul %152, %134, %cst_50 {dimension_numbers = #tpu.dot_dimension_numbers<[1], [0], [0], [1], [0, 0, 1, 1], [], []>} : vector<4x384xf32>, vector<384x256xf32>, vector<4x256xf32> -> vector<4x256xf32>
    %154 = vector.broadcast %135 : vector<1x256xf32> to vector<4x256xf32>
    %155 = arith.addf %153, %154 : vector<4x256xf32>
    %156 = math.tanh %155 : vector<4x256xf32>
    %157 = tpu.iota {dimensions = array<i32: 0>} : vector<2x4xi32>
    %158 = tpu.iota {dimensions = array<i32: 1>} : vector<2x4xi32>
    %c2_i32_51 = arith.constant 2 : i32
    %159 = vector.broadcast %c2_i32_51 : i32 to vector<2x4xi32>
    %160 = arith.muli %159, %157 : vector<2x4xi32>
    %c0_i32_52 = arith.constant 0 : i32
    %161 = vector.broadcast %c0_i32_52 : i32 to vector<2x4xi32>
    %162 = arith.addi %160, %161 : vector<2x4xi32>
    %163 = arith.cmpi eq, %158, %162 : vector<2x4xi32>
    %164 = arith.extui %163 : vector<2x4xi1> to vector<2x4xi32>
    %165 = arith.sitofp %164 : vector<2x4xi32> to vector<2x4xf32>
    %cst_53 = arith.constant dense<0.000000e+00> : vector<2x256xf32>
    %166 = tpu.matmul %165, %156, %cst_53 {dimension_numbers = #tpu.dot_dimension_numbers<[1], [0], [0], [1], [0, 0, 1, 1], [], []>} : vector<2x4xf32>, vector<4x256xf32>, vector<2x256xf32> -> vector<2x256xf32>
    %167 = tpu.iota {dimensions = array<i32: 0>} : vector<2x4xi32>
    %168 = tpu.iota {dimensions = array<i32: 1>} : vector<2x4xi32>
    %c2_i32_54 = arith.constant 2 : i32
    %169 = vector.broadcast %c2_i32_54 : i32 to vector<2x4xi32>
    %170 = arith.muli %169, %167 : vector<2x4xi32>
    %c1_i32_55 = arith.constant 1 : i32
    %171 = vector.broadcast %c1_i32_55 : i32 to vector<2x4xi32>
    %172 = arith.addi %170, %171 : vector<2x4xi32>
    %173 = arith.cmpi eq, %168, %172 : vector<2x4xi32>
    %174 = arith.extui %173 : vector<2x4xi1> to vector<2x4xi32>
    %175 = arith.sitofp %174 : vector<2x4xi32> to vector<2x4xf32>
    %cst_56 = arith.constant dense<0.000000e+00> : vector<2x256xf32>
    %176 = tpu.matmul %175, %156, %cst_56 {dimension_numbers = #tpu.dot_dimension_numbers<[1], [0], [0], [1], [0, 0, 1, 1], [], []>} : vector<2x4xf32>, vector<4x256xf32>, vector<2x256xf32> -> vector<2x256xf32>
    %177 = arith.maximumf %166, %176 : vector<2x256xf32>
    %c0_57 = arith.constant 0 : index
    %c0_58 = arith.constant 0 : index
    %178 = vector.load %arg10[%c0_57, %c0_58] : memref<768x512xf32, #tpu.memory_space<vmem>>, vector<768x512xf32>
    %c0_59 = arith.constant 0 : index
    %c0_60 = arith.constant 0 : index
    %179 = vector.load %arg11[%c0_59, %c0_60] : memref<1x512xf32, #tpu.memory_space<vmem>>, vector<1x512xf32>
    %180 = tpu.iota {dimensions = array<i32: 0>} : vector<2x2xi32>
    %181 = tpu.iota {dimensions = array<i32: 1>} : vector<2x2xi32>
    %c-1_i32_61 = arith.constant -1 : i32
    %182 = vector.broadcast %c-1_i32_61 : i32 to vector<2x2xi32>
    %183 = arith.addi %180, %182 : vector<2x2xi32>
    %184 = arith.cmpi eq, %181, %183 : vector<2x2xi32>
    %185 = arith.extui %184 : vector<2x2xi1> to vector<2x2xi32>
    %186 = arith.sitofp %185 : vector<2x2xi32> to vector<2x2xf32>
    %cst_62 = arith.constant dense<0.000000e+00> : vector<2x256xf32>
    %187 = tpu.matmul %186, %177, %cst_62 {dimension_numbers = #tpu.dot_dimension_numbers<[1], [0], [0], [1], [0, 0, 1, 1], [], []>} : vector<2x2xf32>, vector<2x256xf32>, vector<2x256xf32> -> vector<2x256xf32>
    %188 = tpu.iota {dimensions = array<i32: 0>} : vector<2x2xi32>
    %189 = tpu.iota {dimensions = array<i32: 1>} : vector<2x2xi32>
    %c1_i32_63 = arith.constant 1 : i32
    %190 = vector.broadcast %c1_i32_63 : i32 to vector<2x2xi32>
    %191 = arith.addi %188, %190 : vector<2x2xi32>
    %192 = arith.cmpi eq, %189, %191 : vector<2x2xi32>
    %193 = arith.extui %192 : vector<2x2xi1> to vector<2x2xi32>
    %194 = arith.sitofp %193 : vector<2x2xi32> to vector<2x2xf32>
    %cst_64 = arith.constant dense<0.000000e+00> : vector<2x256xf32>
    %195 = tpu.matmul %194, %177, %cst_64 {dimension_numbers = #tpu.dot_dimension_numbers<[1], [0], [0], [1], [0, 0, 1, 1], [], []>} : vector<2x2xf32>, vector<2x256xf32>, vector<2x256xf32> -> vector<2x256xf32>
    %196 = tpu.concatenate %187, %177, %195 in 1 : vector<2x256xf32>, vector<2x256xf32>, vector<2x256xf32> -> vector<2x768xf32>
    %cst_65 = arith.constant dense<0.000000e+00> : vector<2x512xf32>
    %197 = tpu.matmul %196, %178, %cst_65 {dimension_numbers = #tpu.dot_dimension_numbers<[1], [0], [0], [1], [0, 0, 1, 1], [], []>} : vector<2x768xf32>, vector<768x512xf32>, vector<2x512xf32> -> vector<2x512xf32>
    %198 = vector.broadcast %179 : vector<1x512xf32> to vector<2x512xf32>
    %199 = arith.addf %197, %198 : vector<2x512xf32>
    %200 = math.tanh %199 : vector<2x512xf32>
    %201 = tpu.iota {dimensions = array<i32: 0>} : vector<1x2xi32>
    %202 = tpu.iota {dimensions = array<i32: 1>} : vector<1x2xi32>
    %c2_i32_66 = arith.constant 2 : i32
    %203 = vector.broadcast %c2_i32_66 : i32 to vector<1x2xi32>
    %204 = arith.muli %203, %201 : vector<1x2xi32>
    %c0_i32_67 = arith.constant 0 : i32
    %205 = vector.broadcast %c0_i32_67 : i32 to vector<1x2xi32>
    %206 = arith.addi %204, %205 : vector<1x2xi32>
    %207 = arith.cmpi eq, %202, %206 : vector<1x2xi32>
    %208 = arith.extui %207 : vector<1x2xi1> to vector<1x2xi32>
    %209 = arith.sitofp %208 : vector<1x2xi32> to vector<1x2xf32>
    %cst_68 = arith.constant dense<0.000000e+00> : vector<1x512xf32>
    %210 = tpu.matmul %209, %200, %cst_68 {dimension_numbers = #tpu.dot_dimension_numbers<[1], [0], [0], [1], [0, 0, 1, 1], [], []>} : vector<1x2xf32>, vector<2x512xf32>, vector<1x512xf32> -> vector<1x512xf32>
    %211 = tpu.iota {dimensions = array<i32: 0>} : vector<1x2xi32>
    %212 = tpu.iota {dimensions = array<i32: 1>} : vector<1x2xi32>
    %c2_i32_69 = arith.constant 2 : i32
    %213 = vector.broadcast %c2_i32_69 : i32 to vector<1x2xi32>
    %214 = arith.muli %213, %211 : vector<1x2xi32>
    %c1_i32_70 = arith.constant 1 : i32
    %215 = vector.broadcast %c1_i32_70 : i32 to vector<1x2xi32>
    %216 = arith.addi %214, %215 : vector<1x2xi32>
    %217 = arith.cmpi eq, %212, %216 : vector<1x2xi32>
    %218 = arith.extui %217 : vector<1x2xi1> to vector<1x2xi32>
    %219 = arith.sitofp %218 : vector<1x2xi32> to vector<1x2xf32>
    %cst_71 = arith.constant dense<0.000000e+00> : vector<1x512xf32>
    %220 = tpu.matmul %219, %200, %cst_71 {dimension_numbers = #tpu.dot_dimension_numbers<[1], [0], [0], [1], [0, 0, 1, 1], [], []>} : vector<1x2xf32>, vector<2x512xf32>, vector<1x512xf32> -> vector<1x512xf32>
    %221 = arith.maximumf %210, %220 : vector<1x512xf32>
    %c0_72 = arith.constant 0 : index
    %c0_73 = arith.constant 0 : index
    %222 = vector.load %arg12[%c0_72, %c0_73] : memref<250x512xf32, #tpu.memory_space<vmem>>, vector<250x512xf32>
    %223 = vector.broadcast %221 : vector<1x512xf32> to vector<250x512xf32>
    %224 = arith.addf %223, %222 : vector<250x512xf32>
    %c0_74 = arith.constant 0 : index
    %c0_75 = arith.constant 0 : index
    %c0_76 = arith.constant 0 : index
    %225 = vector.load %arg13[%c0_74, %c0_75, %c0_76] : memref<1x250x512xf32, #tpu.memory_space<vmem>>, vector<1x250x512xf32>
    %226 = vector.shape_cast %225 : vector<1x250x512xf32> to vector<250x512xf32>
    %227 = vector.shape_cast %224 : vector<250x512xf32> to vector<1x250x512xf32>
    tpu.vector_store %arg13[%c0_74, %c0_75, %c0_76], %227 {strides = array<i32>} : memref<1x250x512xf32, #tpu.memory_space<vmem>>, vector<1x250x512xf32>,
    return
  }
  func.func @transform_0(%arg0: i32) -> (i32, i32, i32) {
    %c0_i32 = arith.constant 0 : i32
    %c0_i32_0 = arith.constant 0 : i32
    %c0_i32_1 = arith.constant 0 : i32
    return %arg0, %c0_i32, %c0_i32_0 : i32, i32, i32
  }
  func.func @transform_1(%arg0: i32) -> (i32, i32) {
    %c0_i32 = arith.constant 0 : i32
    %c0_i32_0 = arith.constant 0 : i32
    %c0_i32_1 = arith.constant 0 : i32
    return %c0_i32, %c0_i32_0 : i32, i32
  }
  func.func @transform_2(%arg0: i32) -> (i32, i32) {
    %c0_i32 = arith.constant 0 : i32
    %c0_i32_0 = arith.constant 0 : i32
    %c0_i32_1 = arith.constant 0 : i32
    return %c0_i32, %c0_i32_0 : i32, i32
  }
  func.func @transform_3(%arg0: i32) -> (i32, i32) {
    %c0_i32 = arith.constant 0 : i32
    %c0_i32_0 = arith.constant 0 : i32
    %c0_i32_1 = arith.constant 0 : i32
    return %c0_i32, %c0_i32_0 : i32, i32
  }
  func.func @transform_4(%arg0: i32) -> (i32, i32) {
    %c0_i32 = arith.constant 0 : i32
    %c0_i32_0 = arith.constant 0 : i32
    %c0_i32_1 = arith.constant 0 : i32
    return %c0_i32, %c0_i32_0 : i32, i32
  }
  func.func @transform_5(%arg0: i32) -> (i32, i32) {
    %c0_i32 = arith.constant 0 : i32
    %c0_i32_0 = arith.constant 0 : i32
    %c0_i32_1 = arith.constant 0 : i32
    return %c0_i32, %c0_i32_0 : i32, i32
  }
  func.func @transform_6(%arg0: i32) -> (i32, i32) {
    %c0_i32 = arith.constant 0 : i32
    %c0_i32_0 = arith.constant 0 : i32
    %c0_i32_1 = arith.constant 0 : i32
    return %c0_i32, %c0_i32_0 : i32, i32
  }
  func.func @transform_7(%arg0: i32) -> (i32, i32) {
    %c0_i32 = arith.constant 0 : i32
    %c0_i32_0 = arith.constant 0 : i32
    %c0_i32_1 = arith.constant 0 : i32
    return %c0_i32, %c0_i32_0 : i32, i32
  }
  func.func @transform_8(%arg0: i32) -> (i32, i32) {
    %c0_i32 = arith.constant 0 : i32
    %c0_i32_0 = arith.constant 0 : i32
    %c0_i32_1 = arith.constant 0 : i32
    return %c0_i32, %c0_i32_0 : i32, i32
  }
  func.func @transform_9(%arg0: i32) -> (i32, i32) {
    %c0_i32 = arith.constant 0 : i32
    %c0_i32_0 = arith.constant 0 : i32
    %c0_i32_1 = arith.constant 0 : i32
    return %c0_i32, %c0_i32_0 : i32, i32
  }
  func.func @transform_10(%arg0: i32) -> (i32, i32) {
    %c0_i32 = arith.constant 0 : i32
    %c0_i32_0 = arith.constant 0 : i32
    %c0_i32_1 = arith.constant 0 : i32
    return %c0_i32, %c0_i32_0 : i32, i32
  }
  func.func @transform_11(%arg0: i32) -> (i32, i32) {
    %c0_i32 = arith.constant 0 : i32
    %c0_i32_0 = arith.constant 0 : i32
    %c0_i32_1 = arith.constant 0 : i32
    return %c0_i32, %c0_i32_0 : i32, i32
  }
  func.func @transform_12(%arg0: i32) -> (i32, i32, i32) {
    %c0_i32 = arith.constant 0 : i32
    %c0_i32_0 = arith.constant 0 : i32
    %c0_i32_1 = arith.constant 0 : i32
    return %arg0, %c0_i32, %c0_i32_0 : i32, i32, i32
  }
}

</mosaic_0001>

<llo_original>
// kernel: tpu_custom_call.1
$region0: #{tpu_custom_call.1}
  #allocation0 [shape = 'u32[]', space=smem, size = 0x4, offset = 0x4, fixed_abs, tag = 'smem constant byte address 0x4 - core index']
  #allocation1 [shape = 'u32[144,128]{1,0:T(1,128)}', space=vmem, size = 0x12000, scoped, tag = 'internal scratch']
  %s0 = inlined_call_operand.vmem [shape: f32[2,32,8], index: 0, kind: input, shape index: {}]
  %s1 = inlined_call_operand.hbm [shape: f32[24,32], index: 1, kind: input, shape index: {}]
  %s2 = inlined_call_operand.hbm [shape: f32[1,32], index: 2, kind: input, shape index: {}]
  %s3 = inlined_call_operand.vmem [shape: f32[96,64], index: 3, kind: input, shape index: {}]
  %s4 = inlined_call_operand.hbm [shape: f32[1,64], index: 4, kind: input, shape index: {}]
  %s5 = inlined_call_operand.hbm [shape: f32[192,128], index: 5, kind: input, shape index: {}]
  %s6 = inlined_call_operand.hbm [shape: f32[1,128], index: 6, kind: input, shape index: {}]
  %s7 = inlined_call_operand.hbm [shape: f32[384,256], index: 7, kind: input, shape index: {}]
  %s8 = inlined_call_operand.hbm [shape: f32[1,256], index: 8, kind: input, shape index: {}]
  %s9 = inlined_call_operand.hbm [shape: f32[768,512], index: 9, kind: input, shape index: {}]
  %s10 = inlined_call_operand.hbm [shape: f32[1,512], index: 10, kind: input, shape index: {}]
  %s11 = inlined_call_operand.hbm [shape: f32[250,512], index: 11, kind: input, shape index: {}]
  %s12 = inlined_call_operand.vmem [shape: f32[2,250,512], index: 12, kind: output, shape index: {}]
  %s13 = sld [smem:[#allocation0]]
  $region121: #{tpu_custom_call.1} parent=0
    _
  %s15 = ssub.s32 1, %s13
  %s16 = scalar_select 0, %s15, %s13
  $region1: #{tpu_custom_call.1} parent=0
    #allocation2 [shape = 'u8[12288]{0}', space=vmem, size = 0x3000, scoped, tag = 'input window, operand 1, single buffered']
    #allocation3 [shape = 's32[2]{0}', space=sflag, size = 0x8, scoped, tag = 'scoped memory for tpu_custom_call.1']
    #allocation4 [shape = 'u8[512]{0}', space=vmem, size = 0x400, scoped, tag = 'input window, operand 2, single buffered']
    #allocation5 [shape = 's32[1]{0}', space=sflag, size = 0x4, scoped, tag = 'scoped memory for tpu_custom_call.1']
    #allocation6 [shape = 'u8[512]{0}', space=vmem, size = 0x400, scoped, tag = 'input window, operand 4, single buffered']
    #allocation7 [shape = 'u8[98304]{0}', space=vmem, size = 0x18000, scoped, tag = 'input window, operand 5, single buffered']
    #allocation8 [shape = 's32[1]{0}', space=sflag, size = 0x4, scoped, tag = 'scoped memory for tpu_custom_call.1']
    #allocation9 [shape = 'u8[512]{0}', space=vmem, size = 0x400, scoped, tag = 'input window, operand 6, single buffered']
    #allocation10 [shape = 'u8[393216]{0}', space=vmem, size = 0x60000, scoped, tag = 'input window, operand 7, single buffered']
    #allocation11 [shape = 's32[1]{0}', space=sflag, size = 0x4, scoped, tag = 'scoped memory for tpu_custom_call.1']
    #allocation12 [shape = 'u8[1024]{0}', space=vmem, size = 0x400, scoped, tag = 'input window, operand 8, single buffered']
    #allocation13 [shape = 'u8[1572864]{0}', space=vmem, size = 0x180000, scoped, tag = 'input window, operand 9, single buffered']
    #allocation14 [shape = 's32[1]{0}', space=sflag, size = 0x4, scoped, tag = 'scoped memory for tpu_custom_call.1']
    #allocation15 [shape = 'u8[2048]{0}', space=vmem, size = 0x800, scoped, tag = 'input window, operand 10, single buffered']
    #allocation16 [shape = 'u8[524288]{0}', space=vmem, size = 0x80000, scoped, tag = 'input window, operand 11, single buffered']
    #allocation17 [shape = 's32[1]{0}', space=sflag, size = 0x4, scoped, tag = 'scoped memory for tpu_custom_call.1']
    %17 = vsyncpa [#allocation3], 0
    %18 = vsyncpa [#allocation5], 0
    %19 = vsyncpa [#allocation8], 0
    %20 = vsyncpa [#allocation11], 0
    %21 = vsyncpa [#allocation14], 0
    %22 = vsyncpa [#allocation17], 0
    loop: start=0, step=1, limit=4
    $region2: #{tpu_custom_call.1} parent=1 // loop_pre_header
      _
    $region3: #{tpu_custom_call.1} parent=1 // loop_header
      %s24 = sphi 0, %s28
      %p25 = scmp.ge.s32.totalorder %s24, 4
      %s34 = sphi 0, %s36
      %s37 = sphi 0, %s34
      %s38 = sphi 0, %s37
      %s54 = sphi 0, %s38
      %s58 = sphi 0, %s58
      %s60 = sphi 0, %s58
      %s61 = sphi 0, %s60
      %s75 = sphi 0, %s61
      %s79 = sphi 0, %s79
      %s81 = sphi 0, %s79
      %s82 = sphi 0, %s81
      %s96 = sphi 0, %s82
      %s100 = sphi 0, %s100
      %s102 = sphi 0, %s100
      %s103 = sphi 0, %s102
      %s117 = sphi 0, %s103
      %s121 = sphi 0, %s121
      %s123 = sphi 0, %s121
      %s124 = sphi 0, %s123
      %s138 = sphi 0, %s124
      %s142 = sphi 0, %s142
      %s144 = sphi 0, %s142
      %s145 = sphi 0, %s144
      %s159 = sphi 0, %s145
      %s163 = sphi 0, %s163
      %s165 = sphi 0, %s163
      %s166 = sphi 0, %s165
      %s180 = sphi 0, %s166
      %s184 = sphi 0, %s184
      %s186 = sphi 0, %s184
      %s187 = sphi 0, %s186
      %s201 = sphi 0, %s187
      %s205 = sphi 0, %s205
      %s207 = sphi 0, %s205
      %s208 = sphi 0, %s207
      %s222 = sphi 0, %s208
      %s226 = sphi 0, %s226
      %s228 = sphi 0, %s226
      %s229 = sphi 0, %s228
      %s243 = sphi 0, %s229
      %s247 = sphi 0, %s247
      %s249 = sphi 0, %s247
      %s250 = sphi 0, %s249
      %s264 = sphi 0, %s250
      %s268 = sphi 0, %s268
      %s270 = sphi 0, %s268
      %s271 = sphi 0, %s270
      %s285 = sphi 0, %s271
      %s291 = sphi 0, %s293
      %s294 = sphi 0, %s291
      %s295 = sphi 0, %s294
      %s311 = sphi 0, %s295
    $region4: #{tpu_custom_call.1} parent=1 // loop_header_branch
      %27 = sbr.rel (%p25) target = $region8
    $region5: #{tpu_custom_call.1} parent=1 // loop_body
      %s29 = ssub.s32 %s24, 1
      %s30 = ssub.s32 %s24, 2
      %s31 = sadd.s32 %s24, 1
      %s32 = ssub.s32 %s24, %s31
      %p33 = scmp.eq.s32.totalorder %s32, 0
      %s35 = sadd.s32 %s34, 1
      %s36 = scalar_select %p33, %s34, %s35
      %p39 = pneg %p33
      %p40 = scmp.eq.s32.totalorder %s24, 1
      %p41 = por %p39, %p40
      %p42 = scmp.ne.s32.totalorder %s34, %s37
      %p43 = scmp.eq.s32.totalorder %s24, 0
      %p44 = por %p42, %p43
      %p45 = scmp.ne.s32.totalorder %s34, %s37
      %p46 = scmp.eq.s32.totalorder %s29, 1
      %p47 = por %p45, %p46
      %p48 = scmp.ne.s32.totalorder %s37, %s38
      %p49 = scmp.eq.s32.totalorder %s29, 0
      %p50 = por %p48, %p49
      %p51 = scmp.ne.s32.totalorder %s37, %s38
      %p52 = scmp.eq.s32.totalorder %s30, 1
      %p53 = por %p51, %p52
      %p55 = scmp.ne.s32.totalorder %s38, %s54
      %p56 = scmp.eq.s32.totalorder %s30, 0
      %p57 = por %p55, %p56
      %s59 = sadd.s32 %s58, 1
      %p62 = scmp.eq.s32.totalorder %s24, 1
      %p63 = scmp.ne.s32.totalorder %s58, %s60
      %p64 = scmp.eq.s32.totalorder %s24, 0
      %p65 = por %p63, %p64
      %p66 = scmp.ne.s32.totalorder %s58, %s60
      %p67 = scmp.eq.s32.totalorder %s29, 1
      %p68 = por %p66, %p67
      %p69 = scmp.ne.s32.totalorder %s60, %s61
      %p70 = scmp.eq.s32.totalorder %s29, 0
      %p71 = por %p69, %p70
      %p72 = scmp.ne.s32.totalorder %s60, %s61
      %p73 = scmp.eq.s32.totalorder %s30, 1
      %p74 = por %p72, %p73
      %p76 = scmp.ne.s32.totalorder %s61, %s75
      %p77 = scmp.eq.s32.totalorder %s30, 0
      %p78 = por %p76, %p77
      %s80 = sadd.s32 %s79, 1
      %p83 = scmp.eq.s32.totalorder %s24, 1
      %p84 = scmp.ne.s32.totalorder %s79, %s81
      %p85 = scmp.eq.s32.totalorder %s24, 0
      %p86 = por %p84, %p85
      %p87 = scmp.ne.s32.totalorder %s79, %s81
      %p88 = scmp.eq.s32.totalorder %s29, 1
      %p89 = por %p87, %p88
      %p90 = scmp.ne.s32.totalorder %s81, %s82
      %p91 = scmp.eq.s32.totalorder %s29, 0
      %p92 = por %p90, %p91
      %p93 = scmp.ne.s32.totalorder %s81, %s82
      %p94 = scmp.eq.s32.totalorder %s30, 1
      %p95 = por %p93, %p94
      %p97 = scmp.ne.s32.totalorder %s82, %s96
      %p98 = scmp.eq.s32.totalorder %s30, 0
      %p99 = por %p97, %p98
      %s101 = sadd.s32 %s100, 1
      %p104 = scmp.eq.s32.totalorder %s24, 1
      %p105 = scmp.ne.s32.totalorder %s100, %s102
      %p106 = scmp.eq.s32.totalorder %s24, 0
      %p107 = por %p105, %p106
      %p108 = scmp.ne.s32.totalorder %s100, %s102
      %p109 = scmp.eq.s32.totalorder %s29, 1
      %p110 = por %p108, %p109
      %p111 = scmp.ne.s32.totalorder %s102, %s103
      %p112 = scmp.eq.s32.totalorder %s29, 0
      %p113 = por %p111, %p112
      %p114 = scmp.ne.s32.totalorder %s102, %s103
      %p115 = scmp.eq.s32.totalorder %s30, 1
      %p116 = por %p114, %p115
      %p118 = scmp.ne.s32.totalorder %s103, %s117
      %p119 = scmp.eq.s32.totalorder %s30, 0
      %p120 = por %p118, %p119
      %s122 = sadd.s32 %s121, 1
      %p125 = scmp.eq.s32.totalorder %s24, 1
      %p126 = scmp.ne.s32.totalorder %s121, %s123
      %p127 = scmp.eq.s32.totalorder %s24, 0
      %p128 = por %p126, %p127
      %p129 = scmp.ne.s32.totalorder %s121, %s123
      %p130 = scmp.eq.s32.totalorder %s29, 1
      %p131 = por %p129, %p130
      %p132 = scmp.ne.s32.totalorder %s123, %s124
      %p133 = scmp.eq.s32.totalorder %s29, 0
      %p134 = por %p132, %p133
      %p135 = scmp.ne.s32.totalorder %s123, %s124
      %p136 = scmp.eq.s32.totalorder %s30, 1
      %p137 = por %p135, %p136
      %p139 = scmp.ne.s32.totalorder %s124, %s138
      %p140 = scmp.eq.s32.totalorder %s30, 0
      %p141 = por %p139, %p140
      %s143 = sadd.s32 %s142, 1
      %p146 = scmp.eq.s32.totalorder %s24, 1
      %p147 = scmp.ne.s32.totalorder %s142, %s144
      %p148 = scmp.eq.s32.totalorder %s24, 0
      %p149 = por %p147, %p148
      %p150 = scmp.ne.s32.totalorder %s142, %s144
      %p151 = scmp.eq.s32.totalorder %s29, 1
      %p152 = por %p150, %p151
      %p153 = scmp.ne.s32.totalorder %s144, %s145
      %p154 = scmp.eq.s32.totalorder %s29, 0
      %p155 = por %p153, %p154
      %p156 = scmp.ne.s32.totalorder %s144, %s145
      %p157 = scmp.eq.s32.totalorder %s30, 1
      %p158 = por %p156, %p157
      %p160 = scmp.ne.s32.totalorder %s145, %s159
      %p161 = scmp.eq.s32.totalorder %s30, 0
      %p162 = por %p160, %p161
      %s164 = sadd.s32 %s163, 1
      %p167 = scmp.eq.s32.totalorder %s24, 1
      %p168 = scmp.ne.s32.totalorder %s163, %s165
      %p169 = scmp.eq.s32.totalorder %s24, 0
      %p170 = por %p168, %p169
      %p171 = scmp.ne.s32.totalorder %s163, %s165
      %p172 = scmp.eq.s32.totalorder %s29, 1
      %p173 = por %p171, %p172
      %p174 = scmp.ne.s32.totalorder %s165, %s166
      %p175 = scmp.eq.s32.totalorder %s29, 0
      %p176 = por %p174, %p175
      %p177 = scmp.ne.s32.totalorder %s165, %s166
      %p178 = scmp.eq.s32.totalorder %s30, 1
      %p179 = por %p177, %p178
      %p181 = scmp.ne.s32.totalorder %s166, %s180
      %p182 = scmp.eq.s32.totalorder %s30, 0
      %p183 = por %p181, %p182
      %s185 = sadd.s32 %s184, 1
      %p188 = scmp.eq.s32.totalorder %s24, 1
      %p189 = scmp.ne.s32.totalorder %s184, %s186
      %p190 = scmp.eq.s32.totalorder %s24, 0
      %p191 = por %p189, %p190
      %p192 = scmp.ne.s32.totalorder %s184, %s186
      %p193 = scmp.eq.s32.totalorder %s29, 1
      %p194 = por %p192, %p193
      %p195 = scmp.ne.s32.totalorder %s186, %s187
      %p196 = scmp.eq.s32.totalorder %s29, 0
      %p197 = por %p195, %p196
      %p198 = scmp.ne.s32.totalorder %s186, %s187
      %p199 = scmp.eq.s32.totalorder %s30, 1
      %p200 = por %p198, %p199
      %p202 = scmp.ne.s32.totalorder %s187, %s201
      %p203 = scmp.eq.s32.totalorder %s30, 0
      %p204 = por %p202, %p203
      %s206 = sadd.s32 %s205, 1
      %p209 = scmp.eq.s32.totalorder %s24, 1
      %p210 = scmp.ne.s32.totalorder %s205, %s207
      %p211 = scmp.eq.s32.totalorder %s24, 0
      %p212 = por %p210, %p211
      %p213 = scmp.ne.s32.totalorder %s205, %s207
      %p214 = scmp.eq.s32.totalorder %s29, 1
      %p215 = por %p213, %p214
      %p216 = scmp.ne.s32.totalorder %s207, %s208
      %p217 = scmp.eq.s32.totalorder %s29, 0
      %p218 = por %p216, %p217
      %p219 = scmp.ne.s32.totalorder %s207, %s208
      %p220 = scmp.eq.s32.totalorder %s30, 1
      %p221 = por %p219, %p220
      %p223 = scmp.ne.s32.totalorder %s208, %s222
      %p224 = scmp.eq.s32.totalorder %s30, 0
      %p225 = por %p223, %p224
      %s227 = sadd.s32 %s226, 1
      %p230 = scmp.eq.s32.totalorder %s24, 1
      %p231 = scmp.ne.s32.totalorder %s226, %s228
      %p232 = scmp.eq.s32.totalorder %s24, 0
      %p233 = por %p231, %p232
      %p234 = scmp.ne.s32.totalorder %s226, %s228
      %p235 = scmp.eq.s32.totalorder %s29, 1
      %p236 = por %p234, %p235
      %p237 = scmp.ne.s32.totalorder %s228, %s229
      %p238 = scmp.eq.s32.totalorder %s29, 0
      %p239 = por %p237, %p238
      %p240 = scmp.ne.s32.totalorder %s228, %s229
      %p241 = scmp.eq.s32.totalorder %s30, 1
      %p242 = por %p240, %p241
      %p244 = scmp.ne.s32.totalorder %s229, %s243
      %p245 = scmp.eq.s32.totalorder %s30, 0
      %p246 = por %p244, %p245
      %s248 = sadd.s32 %s247, 1
      %p251 = scmp.eq.s32.totalorder %s24, 1
      %p252 = scmp.ne.s32.totalorder %s247, %s249
      %p253 = scmp.eq.s32.totalorder %s24, 0
      %p254 = por %p252, %p253
      %p255 = scmp.ne.s32.totalorder %s247, %s249
      %p256 = scmp.eq.s32.totalorder %s29, 1
      %p257 = por %p255, %p256
      %p258 = scmp.ne.s32.totalorder %s249, %s250
      %p259 = scmp.eq.s32.totalorder %s29, 0
      %p260 = por %p258, %p259
      %p261 = scmp.ne.s32.totalorder %s249, %s250
      %p262 = scmp.eq.s32.totalorder %s30, 1
      %p263 = por %p261, %p262
      %p265 = scmp.ne.s32.totalorder %s250, %s264
      %p266 = scmp.eq.s32.totalorder %s30, 0
      %p267 = por %p265, %p266
      %s269 = sadd.s32 %s268, 1
      %p272 = scmp.eq.s32.totalorder %s24, 1
      %p273 = scmp.ne.s32.totalorder %s268, %s270
      %p274 = scmp.eq.s32.totalorder %s24, 0
      %p275 = por %p273, %p274
      %p276 = scmp.ne.s32.totalorder %s268, %s270
      %p277 = scmp.eq.s32.totalorder %s29, 1
      %p278 = por %p276, %p277
      %p279 = scmp.ne.s32.totalorder %s270, %s271
      %p280 = scmp.eq.s32.totalorder %s29, 0
      %p281 = por %p279, %p280
      %p282 = scmp.ne.s32.totalorder %s270, %s271
      %p283 = scmp.eq.s32.totalorder %s30, 1
      %p284 = por %p282, %p283
      %p286 = scmp.ne.s32.totalorder %s271, %s285
      %p287 = scmp.eq.s32.totalorder %s30, 0
      %p288 = por %p286, %p287
      %s289 = ssub.s32 %s24, %s31
      %p290 = scmp.eq.s32.totalorder %s289, 0
      %s292 = sadd.s32 %s291, 1
      %s293 = scalar_select %p290, %s291, %s292
      %p296 = pneg %p290
      %p297 = scmp.eq.s32.totalorder %s24, 1
      %p298 = por %p296, %p297
      %p299 = scmp.ne.s32.totalorder %s291, %s294
      %p300 = scmp.eq.s32.totalorder %s24, 0
      %p301 = por %p299, %p300
      %p302 = scmp.ne.s32.totalorder %s291, %s294
      %p303 = scmp.eq.s32.totalorder %s29, 1
      %p304 = por %p302, %p303
      %p305 = scmp.ne.s32.totalorder %s294, %s295
      %p306 = scmp.eq.s32.totalorder %s29, 0
      %p307 = por %p305, %p306
      %p308 = scmp.ne.s32.totalorder %s294, %s295
      %p309 = scmp.eq.s32.totalorder %s30, 1
      %p310 = por %p308, %p309
      %p312 = scmp.ne.s32.totalorder %s295, %s311
      %p313 = scmp.eq.s32.totalorder %s30, 0
      %p314 = por %p312, %p313
      %p315 = scmp.le.s32.totalorder 1, %s24
      %p316 = scmp.lt.s32.totalorder %s24, 3
      %p317 = pnand %p315, %p316
      %p318 = pneg %p317
      // Predicated region
      $region9: #{tpu_custom_call.1} parent=5 // pred_check
        _
      $region10: #{tpu_custom_call.1} parent=5 // pred_check_branch
        %320 = sbr.rel (%p317) target = $region12
      $region11: #{tpu_custom_call.1} parent=5 // pred_region
        %s321 = ssub.s32 %s24, 1
        // Predicated region
        $region13: #{tpu_custom_call.1} parent=11 // pred_check
          %p322 = pneg %p71
        $region14: #{tpu_custom_call.1} parent=11 // pred_check_branch
          %324 = sbr.rel (%p322) target = $region16
        $region15: #{tpu_custom_call.1} parent=11 // pred_region
          %s326 = ssub.s32 384, 384
          %327 = vsyncadd [#allocation3], %s326
          %s328 = sshll.u32 [#allocation2], 4
          %s329 = int_to_ptr.vmem [resolvable:$true] %s328
          %334 = dma.hbm_to_vmem [thread:$0]  %s1, 384, %s329, [#allocation3], 128, 128, 8
        $region16: #{tpu_custom_call.1} parent=11 // pred_fallthru
          _
        // Predicated region
        $region17: #{tpu_custom_call.1} parent=11 // pred_check
          %p335 = pneg %p92
        $region18: #{tpu_custom_call.1} parent=11 // pred_check_branch
          %337 = sbr.rel (%p335) target = $region20
        $region19: #{tpu_custom_call.1} parent=11 // pred_region
          %s339 = ssub.s32 16, 16
          %340 = vsyncadd [#allocation5], %s339
          %s342 = sshll.u32 [#allocation4], 4
          %s343 = int_to_ptr.vmem [resolvable:$true] %s342
          %345 = dma.hbm_to_vmem [thread:$0]  %s2, 16, %s343, [#allocation5]
        $region20: #{tpu_custom_call.1} parent=11 // pred_fallthru
          _
        // Predicated region
        $region21: #{tpu_custom_call.1} parent=11 // pred_check
          %p346 = pneg %p113
        $region22: #{tpu_custom_call.1} parent=11 // pred_check_branch
          %348 = sbr.rel (%p346) target = $region24
        $region23: #{tpu_custom_call.1} parent=11 // pred_region
          _
        $region24: #{tpu_custom_call.1} parent=11 // pred_fallthru
          _
        // Predicated region
        $region25: #{tpu_custom_call.1} parent=11 // pred_check
          %p349 = pneg %p134
        $region26: #{tpu_custom_call.1} parent=11 // pred_check_branch
          %351 = sbr.rel (%p349) target = $region28
        $region27: #{tpu_custom_call.1} parent=11 // pred_region
          %s353 = ssub.s32 16, 16
          %354 = vsyncadd [#allocation5], %s353
          %s356 = sshll.u32 [#allocation6], 4
          %s357 = int_to_ptr.vmem [resolvable:$true] %s356
          %359 = dma.hbm_to_vmem [thread:$0]  %s4, 16, %s357, [#allocation5]
        $region28: #{tpu_custom_call.1} parent=11 // pred_fallthru
          _
        // Predicated region
        $region29: #{tpu_custom_call.1} parent=11 // pred_check
          %p360 = pneg %p155
        $region30: #{tpu_custom_call.1} parent=11 // pred_check_branch
          %362 = sbr.rel (%p360) target = $region32
        $region31: #{tpu_custom_call.1} parent=11 // pred_region
          %s364 = ssub.s32 3072, 3072
          %365 = vsyncadd [#allocation8], %s364
          %s366 = sshll.u32 [#allocation7], 4
          %s367 = int_to_ptr.vmem [resolvable:$true] %s366
          %372 = dma.hbm_to_vmem [thread:$0]  %s5, 3072, %s367, [#allocation8], 128, 128, 8
        $region32: #{tpu_custom_call.1} parent=11 // pred_fallthru
          _
        // Predicated region
        $region33: #{tpu_custom_call.1} parent=11 // pred_check
          %p373 = pneg %p176
        $region34: #{tpu_custom_call.1} parent=11 // pred_check_branch
          %375 = sbr.rel (%p373) target = $region36
        $region35: #{tpu_custom_call.1} parent=11 // pred_region
          %s377 = ssub.s32 16, 16
          %378 = vsyncadd [#allocation8], %s377
          %s380 = sshll.u32 [#allocation9], 4
          %s381 = int_to_ptr.vmem [resolvable:$true] %s380
          %383 = dma.hbm_to_vmem [thread:$0]  %s6, 16, %s381, [#allocation8]
        $region36: #{tpu_custom_call.1} parent=11 // pred_fallthru
          _
        // Predicated region
        $region37: #{tpu_custom_call.1} parent=11 // pred_check
          %p384 = pneg %p197
        $region38: #{tpu_custom_call.1} parent=11 // pred_check_branch
          %386 = sbr.rel (%p384) target = $region40
        $region39: #{tpu_custom_call.1} parent=11 // pred_region
          %s388 = ssub.s32 12288, 12288
          %389 = vsyncadd [#allocation11], %s388
          %s390 = sshll.u32 [#allocation10], 4
          %s391 = int_to_ptr.vmem [resolvable:$true] %s390
          %396 = dma.hbm_to_vmem [thread:$0]  %s7, 12288, %s391, [#allocation11], 256, 256, 16
        $region40: #{tpu_custom_call.1} parent=11 // pred_fallthru
          _
        // Predicated region
        $region41: #{tpu_custom_call.1} parent=11 // pred_check
          %p397 = pneg %p218
        $region42: #{tpu_custom_call.1} parent=11 // pred_check_branch
          %399 = sbr.rel (%p397) target = $region44
        $region43: #{tpu_custom_call.1} parent=11 // pred_region
          %s401 = ssub.s32 32, 32
          %402 = vsyncadd [#allocation11], %s401
          %s404 = sshll.u32 [#allocation12], 4
          %s405 = int_to_ptr.vmem [resolvable:$true] %s404
          %407 = dma.hbm_to_vmem [thread:$0]  %s8, 32, %s405, [#allocation11]
        $region44: #{tpu_custom_call.1} parent=11 // pred_fallthru
          _
        // Predicated region
        $region45: #{tpu_custom_call.1} parent=11 // pred_check
          %p408 = pneg %p239
        $region46: #{tpu_custom_call.1} parent=11 // pred_check_branch
          %410 = sbr.rel (%p408) target = $region48
        $region47: #{tpu_custom_call.1} parent=11 // pred_region
          %s412 = ssub.s32 49152, 49152
          %413 = vsyncadd [#allocation14], %s412
          %s414 = sshll.u32 [#allocation13], 4
          %s415 = int_to_ptr.vmem [resolvable:$true] %s414
          %420 = dma.hbm_to_vmem [thread:$0]  %s9, 49152, %s415, [#allocation14], 512, 512, 32
        $region48: #{tpu_custom_call.1} parent=11 // pred_fallthru
          _
        // Predicated region
        $region49: #{tpu_custom_call.1} parent=11 // pred_check
          %p421 = pneg %p260
        $region50: #{tpu_custom_call.1} parent=11 // pred_check_branch
          %423 = sbr.rel (%p421) target = $region52
        $region51: #{tpu_custom_call.1} parent=11 // pred_region
          %s425 = ssub.s32 64, 64
          %426 = vsyncadd [#allocation14], %s425
          %s428 = sshll.u32 [#allocation15], 4
          %s429 = int_to_ptr.vmem [resolvable:$true] %s428
          %431 = dma.hbm_to_vmem [thread:$0]  %s10, 64, %s429, [#allocation14]
        $region52: #{tpu_custom_call.1} parent=11 // pred_fallthru
          _
        // Predicated region
        $region53: #{tpu_custom_call.1} parent=11 // pred_check
          %p432 = pneg %p281
        $region54: #{tpu_custom_call.1} parent=11 // pred_check_branch
          %434 = sbr.rel (%p432) target = $region56
        $region55: #{tpu_custom_call.1} parent=11 // pred_region
          %s436 = ssub.s32 16384, 16384
          %437 = vsyncadd [#allocation17], %s436
          %s438 = sshll.u32 [#allocation16], 4
          %s439 = int_to_ptr.vmem [resolvable:$true] %s438
          %444 = dma.hbm_to_vmem [thread:$0]  %s11, 16384, %s439, [#allocation17], 512, 512, 32
        $region56: #{tpu_custom_call.1} parent=11 // pred_fallthru
          _
      $region12: #{tpu_custom_call.1} parent=5 // pred_fallthru
        _
      %p445 = scmp.lt.s32.totalorder %s24, 2
      // Predicated region
      $region57: #{tpu_custom_call.1} parent=5 // pred_check
        %p446 = pneg %p445
      $region58: #{tpu_custom_call.1} parent=5 // pred_check_branch
        %448 = sbr.rel (%p446) target = $region60
      $region59: #{tpu_custom_call.1} parent=5 // pred_region
        // Predicated region
        $region61: #{tpu_custom_call.1} parent=59 // pred_check
          %p449 = pneg %p44
        $region62: #{tpu_custom_call.1} parent=59 // pred_check_branch
          %451 = sbr.rel (%p449) target = $region64
        $region63: #{tpu_custom_call.1} parent=59 // pred_region
          %p452 = scmp.lt.s32.totalorder %s24, 1
          %s453 = scalar_select %p452, %s24, 1
          %s454 = smul.addr %s453, 4
          %s455 = smul.addr %s454, 8
          %s456 = scalar_lea.vmem %s0, %s455
        $region64: #{tpu_custom_call.1} parent=59 // pred_fallthru
          _
      $region60: #{tpu_custom_call.1} parent=5 // pred_fallthru
        _
      %p457 = scmp.le.s32.totalorder 1, %s24
      %p458 = scmp.lt.s32.totalorder %s24, 3
      %p459 = pnand %p457, %p458
      %p460 = pneg %p459
      // Predicated region
      $region65: #{tpu_custom_call.1} parent=5 // pred_check
        _
      $region66: #{tpu_custom_call.1} parent=5 // pred_check_branch
        %462 = sbr.rel (%p459) target = $region68
      $region67: #{tpu_custom_call.1} parent=5 // pred_region
        %s463 = ssub.s32 %s24, 1
        // Predicated region
        $region69: #{tpu_custom_call.1} parent=67 // pred_check
          %p464 = pneg %p71
        $region70: #{tpu_custom_call.1} parent=67 // pred_check_branch
          %466 = sbr.rel (%p464) target = $region72
        $region71: #{tpu_custom_call.1} parent=67 // pred_region
          %467 = dma.done [#allocation3], 384
        $region72: #{tpu_custom_call.1} parent=67 // pred_fallthru
          _
        // Predicated region
        $region73: #{tpu_custom_call.1} parent=67 // pred_check
          %p468 = pneg %p92
        $region74: #{tpu_custom_call.1} parent=67 // pred_check_branch
          %470 = sbr.rel (%p468) target = $region76
        $region75: #{tpu_custom_call.1} parent=67 // pred_region
          %471 = dma.done [#allocation5], 16
        $region76: #{tpu_custom_call.1} parent=67 // pred_fallthru
          _
        // Predicated region
        $region77: #{tpu_custom_call.1} parent=67 // pred_check
          %p472 = pneg %p134
        $region78: #{tpu_custom_call.1} parent=67 // pred_check_branch
          %474 = sbr.rel (%p472) target = $region80
        $region79: #{tpu_custom_call.1} parent=67 // pred_region
          %475 = dma.done [#allocation5], 16
        $region80: #{tpu_custom_call.1} parent=67 // pred_fallthru
          _
        // Predicated region
        $region81: #{tpu_custom_call.1} parent=67 // pred_check
          %p476 = pneg %p155
        $region82: #{tpu_custom_call.1} parent=67 // pred_check_branch
          %478 = sbr.rel (%p476) target = $region84
        $region83: #{tpu_custom_call.1} parent=67 // pred_region
          %479 = dma.done [#allocation8], 3072
        $region84: #{tpu_custom_call.1} parent=67 // pred_fallthru
          _
        // Predicated region
        $region85: #{tpu_custom_call.1} parent=67 // pred_check
          %p480 = pneg %p176
        $region86: #{tpu_custom_call.1} parent=67 // pred_check_branch
          %482 = sbr.rel (%p480) target = $region88
        $region87: #{tpu_custom_call.1} parent=67 // pred_region
          %483 = dma.done [#allocation8], 16
        $region88: #{tpu_custom_call.1} parent=67 // pred_fallthru
          _
        // Predicated region
        $region89: #{tpu_custom_call.1} parent=67 // pred_check
          %p484 = pneg %p197
        $region90: #{tpu_custom_call.1} parent=67 // pred_check_branch
          %486 = sbr.rel (%p484) target = $region92
        $region91: #{tpu_custom_call.1} parent=67 // pred_region
          %487 = dma.done [#allocation11], 12288
        $region92: #{tpu_custom_call.1} parent=67 // pred_fallthru
          _
        // Predicated region
        $region93: #{tpu_custom_call.1} parent=67 // pred_check
          %p488 = pneg %p218
        $region94: #{tpu_custom_call.1} parent=67 // pred_check_branch
          %490 = sbr.rel (%p488) target = $region96
        $region95: #{tpu_custom_call.1} parent=67 // pred_region
          %491 = dma.done [#allocation11], 32
        $region96: #{tpu_custom_call.1} parent=67 // pred_fallthru
          _
        // Predicated region
        $region97: #{tpu_custom_call.1} parent=67 // pred_check
          %p492 = pneg %p239
        $region98: #{tpu_custom_call.1} parent=67 // pred_check_branch
          %494 = sbr.rel (%p492) target = $region100
        $region99: #{tpu_custom_call.1} parent=67 // pred_region
          %495 = dma.done [#allocation14], 49152
        $region100: #{tpu_custom_call.1} parent=67 // pred_fallthru
          _
        // Predicated region
        $region101: #{tpu_custom_call.1} parent=67 // pred_check
          %p496 = pneg %p260
        $region102: #{tpu_custom_call.1} parent=67 // pred_check_branch
          %498 = sbr.rel (%p496) target = $region104
        $region103: #{tpu_custom_call.1} parent=67 // pred_region
          %499 = dma.done [#allocation14], 64
        $region104: #{tpu_custom_call.1} parent=67 // pred_fallthru
          _
        // Predicated region
        $region105: #{tpu_custom_call.1} parent=67 // pred_check
          %p500 = pneg %p281
        $region106: #{tpu_custom_call.1} parent=67 // pred_check_branch
          %502 = sbr.rel (%p500) target = $region108
        $region107: #{tpu_custom_call.1} parent=67 // pred_region
          %503 = dma.done [#allocation17], 16384
        $region108: #{tpu_custom_call.1} parent=67 // pred_fallthru
          _
        %p504 = scmp.lt.s32.totalorder %s29, 1
        %s505 = scalar_select %p504, %s29, 1
        %s506 = smul.addr %s505, 4
        %s507 = smul.addr %s506, 8
        %s508 = scalar_lea.vmem %s0, %s507
        %p509 = pneg %p50
        %p510 = pneg %p47
        %p511 = pneg %p71
        %p512 = pneg %p68
        %p513 = pneg %p92
        %p514 = pneg %p89
        %p515 = pneg %p113
        %p516 = pneg %p110
        %p517 = pneg %p134
        %p518 = pneg %p131
        %p519 = pneg %p155
        %p520 = pneg %p152
        %p521 = pneg %p176
        %p522 = pneg %p173
        %p523 = pneg %p197
        %p524 = pneg %p194
        %p525 = pneg %p218
        %p526 = pneg %p215
        %p527 = pneg %p239
        %p528 = pneg %p236
        %p529 = pneg %p260
        %p530 = pneg %p257
        %p531 = pneg %p281
        %p532 = pneg %p278
        %p533 = pneg %p307
        %p534 = pneg %p304
        %p535 = scmp.lt.s32.totalorder %s29, 1
        %s536 = scalar_select %p535, %s29, 1
        %s537 = smul.addr %s536, 128
        %s538 = smul.addr %s537, 8
        %s539 = scalar_lea.vmem %s12, %s538
        %p540 = scmp.lt.s32.totalorder %s29, 1
        %s541 = scalar_select %p540, %s29, 1
        %s542 = smul.addr %s541, 4
        %s543 = smul.addr %s542, 8
        %s544 = scalar_lea.vmem %s0, %s543
        %p545 = scmp.lt.s32.totalorder %s29, 1
        %s546 = scalar_select %p545, %s29, 1
        %s547 = smul.addr %s546, 128
        %s548 = smul.addr %s547, 8
        %s549 = scalar_lea.vmem %s12, %s548
        %v550 = vld [vmem:[%s544] sm:$0xff]
        %v551 = vld [vmem:[%s544 + $0x8] sm:$0xff]
        %v552 = vld [vmem:[%s544 + $0x10] sm:$0xff]
        %v553 = vld [vmem:[%s544 + $0x18] sm:$0xff]
        %v554 = vld [vmem:[#allocation2] sm:$0xff]
        %v555 = vld [vmem:[#allocation2 + $0x8] sm:$0xff]
        %v556 = vld [vmem:[#allocation2 + $0x10] sm:$0xff]
        %v557 = vld [vmem:[#allocation4] sm:$0x1]
        %v558 = vlaneseq
        %v559 = vshrl.u32 %v558, 7
        %v560 = vadd.s32 %v559, 8
        %v561 = vadd.s32 %v559, 16
        %v562 = vadd.s32 %v559, 24
        %v563 = vlaneseq
        %v564 = vand.u32 %v563, 127
        %v565 = vadd.s32 %v559, 4294967295
        %v566 = vadd.s32 %v560, 4294967295
        %v567 = vadd.s32 %v561, 4294967295
        %v568 = vadd.s32 %v562, 4294967295
        %vm569 = vcmp.eq.s32.totalorder %v564, %v565
        %vm570 = vcmp.eq.s32.totalorder %v564, %v566
        %vm571 = vcmp.eq.s32.totalorder %v564, %v567
        %vm572 = vcmp.eq.s32.totalorder %v564, %v568
        %v573 = vsel %vm569, 1, 0
        %v574 = vsel %vm570, 1, 0
        %v575 = vsel %vm571, 1, 0
        %v576 = vsel %vm572, 1, 0
        %v577 = vcvt.s32.f32 %v573
        %v578 = vcvt.s32.f32 %v574
        %v579 = vcvt.s32.f32 %v575
        %v580 = vcvt.s32.f32 %v576
        %vm581 = vcmask 261120
        %v583 = vsel %vm581, %v577, 0
        %v586 = vsel %vm581, %v578, 0
        %v589 = vsel %vm581, %v579, 0
        %v592 = vsel %vm581, %v580, 0
        %594 = vmatprep.subr.mxu0 0.0
        %595 = vmatpush1.msra.mxu0 0.0
        %596 = vmatprep.subr.mxu0 0.0
        %597 = vmatpush1.msra.mxu0 0.0
        %598 = vmatprep.subr.mxu0 0.0
        %599 = vmatpush1.msra.mxu0 0.0
        %600 = vmatprep.subr.mxu0 0.0
        %601 = vmatpush1.msra.mxu0 0.0
        %602 = vmatprep.subr.mxu0 0.0
        %603 = vmatpush1.msra.mxu0 0.0
        %604 = vmatprep.subr.mxu0 0.0
        %605 = vmatpush1.msra.mxu0 0.0
        %606 = vmatprep.subr.mxu0 0.0
        %607 = vmatpush1.msra.mxu0 0.0
        %608 = vmatprep.subr.mxu0 0.0
        %609 = vmatpush1.msra.mxu0 0.0
        %610 = vmatprep.subr.mxu0 0.0
        %611 = vmatpush1.msra.mxu0 0.0
        %612 = vmatprep.subr.mxu0 0.0
        %613 = vmatpush1.msra.mxu0 0.0
        %614 = vmatprep.subr.mxu0 0.0
        %615 = vmatpush1.msra.mxu0 0.0
        %616 = vmatprep.subr.mxu0 0.0
        %617 = vmatpush1.msra.mxu0 0.0
        %618 = vmatprep.subr.mxu0 0.0
        %619 = vmatpush1.msra.mxu0 %v553
        %620 = vmatprep.subr.mxu0 0.0
        %621 = vmatpush1.msra.mxu0 %v552
        %622 = vmatprep.subr.mxu0 0.0
        %623 = vmatpush1.msra.mxu0 %v551
        %624 = vmatprep.subr.mxu0 0.0
        %625 = vmatpush1.msra.mxu0 %v550
        %626 = vmatprep.subr.mxu0 0.0
        %627 = vmatpush2.msra.mxu0 0.0
        %628 = vmatprep.subr.mxu0 0.0
        %629 = vmatpush2.msra.mxu0 0.0
        %630 = vmatprep.subr.mxu0 0.0
        %631 = vmatpush2.msra.mxu0 0.0
        %632 = vmatprep.subr.mxu0 0.0
        %633 = vmatpush2.msra.mxu0 0.0
        %634 = vmatprep.subr.mxu0 0.0
        %635 = vmatpush2.msra.mxu0 0.0
        %636 = vmatprep.subr.mxu0 0.0
        %637 = vmatpush2.msra.mxu0 0.0
        %638 = vmatprep.subr.mxu0 0.0
        %639 = vmatpush2.msra.mxu0 0.0
        %640 = vmatprep.subr.mxu0 0.0
        %641 = vmatpush2.msra.mxu0 0.0
        %642 = vmatprep.subr.mxu0 0.0
        %643 = vmatpush2.msra.mxu0 0.0
        %644 = vmatprep.subr.mxu0 0.0
        %645 = vmatpush2.msra.mxu0 0.0
        %646 = vmatprep.subr.mxu0 0.0
        %647 = vmatpush2.msra.mxu0 0.0
        %648 = vmatprep.subr.mxu0 0.0
        %649 = vmatpush2.msra.mxu0 0.0
        %650 = vmatprep.subr.mxu0 0.0
        %651 = vmatpush2.msra.mxu0 0.0
        %652 = vmatprep.subr.mxu0 0.0
        %653 = vmatpush2.msra.mxu0 0.0
        %654 = vmatprep.subr.mxu0 0.0
        %655 = vmatpush2.msra.mxu0 0.0
        %656 = vmatprep.subr.mxu0 0.0
        %657 = vmatpush2.msra.mxu0 0.0
        %658 = vmatprep.mubr.f32.mxu0 0.0
        %659 = vmatmul.mubr.f32.gmra.mxu0 %v583
        %v660 = vpop.f32.mrf.mxu0
        %v661 = vadd.f32 0.0, %v660
        %v662 = vpop.f32.mrf.mxu0
        %663 = vmatprep.mubr.f32.mxu0 0.0
        %664 = vmatmul.mubr.f32.gmra.mxu0 %v586
        %v665 = vpop.f32.mrf.mxu0
        %v666 = vadd.f32 0.0, %v665
        %v667 = vpop.f32.mrf.mxu0
        %668 = vmatprep.mubr.f32.mxu0 0.0
        %669 = vmatmul.mubr.f32.gmra.mxu0 %v589
        %v670 = vpop.f32.mrf.mxu0
        %v671 = vadd.f32 0.0, %v670
        %v672 = vpop.f32.mrf.mxu0
        %673 = vmatprep.mubr.f32.mxu0 0.0
        %674 = vmatmul.mubr.f32.gmra.mxu0 %v592
        %v675 = vpop.f32.mrf.mxu0
        %v676 = vadd.f32 0.0, %v675
        %v677 = vpop.f32.mrf.mxu0
        %678 = vdwg.mxu0
        %v679 = vadd.s32 %v559, 1
        %v680 = vadd.s32 %v560, 1
        %v681 = vadd.s32 %v561, 1
        %v682 = vadd.s32 %v562, 1
        %vm683 = vcmp.eq.s32.totalorder %v564, %v679
        %vm684 = vcmp.eq.s32.totalorder %v564, %v680
        %vm685 = vcmp.eq.s32.totalorder %v564, %v681
        %vm686 = vcmp.eq.s32.totalorder %v564, %v682
        %v687 = vsel %vm683, 1, 0
        %v688 = vsel %vm684, 1, 0
        %v689 = vsel %vm685, 1, 0
        %v690 = vsel %vm686, 1, 0
        %v691 = vcvt.s32.f32 %v687
        %v692 = vcvt.s32.f32 %v688
        %v693 = vcvt.s32.f32 %v689
        %v694 = vcvt.s32.f32 %v690
        %v696 = vsel %vm581, %v691, 0
        %v699 = vsel %vm581, %v692, 0
        %v702 = vsel %vm581, %v693, 0
        %v705 = vsel %vm581, %v694, 0
        %707 = vmatprep.subr.mxu0 0.0
        %708 = vmatpush1.msra.mxu0 0.0
        %709 = vmatprep.subr.mxu0 0.0
        %710 = vmatpush1.msra.mxu0 0.0
        %711 = vmatprep.subr.mxu0 0.0
        %712 = vmatpush1.msra.mxu0 0.0
        %713 = vmatprep.subr.mxu0 0.0
        %714 = vmatpush1.msra.mxu0 0.0
        %715 = vmatprep.subr.mxu0 0.0
        %716 = vmatpush1.msra.mxu0 0.0
        %717 = vmatprep.subr.mxu0 0.0
        %718 = vmatpush1.msra.mxu0 0.0
        %719 = vmatprep.subr.mxu0 0.0
        %720 = vmatpush1.msra.mxu0 0.0
        %721 = vmatprep.subr.mxu0 0.0
        %722 = vmatpush1.msra.mxu0 0.0
        %723 = vmatprep.subr.mxu0 0.0
        %724 = vmatpush1.msra.mxu0 0.0
        %725 = vmatprep.subr.mxu0 0.0
        %726 = vmatpush1.msra.mxu0 0.0
        %727 = vmatprep.subr.mxu0 0.0
        %728 = vmatpush1.msra.mxu0 0.0
        %729 = vmatprep.subr.mxu0 0.0
        %730 = vmatpush1.msra.mxu0 0.0
        %731 = vmatprep.subr.mxu0 0.0
        %732 = vmatpush1.msra.mxu0 %v553
        %733 = vmatprep.subr.mxu0 0.0
        %734 = vmatpush1.msra.mxu0 %v552
        %735 = vmatprep.subr.mxu0 0.0
        %736 = vmatpush1.msra.mxu0 %v551
        %737 = vmatprep.subr.mxu0 0.0
        %738 = vmatpush1.msra.mxu0 %v550
        %739 = vmatprep.subr.mxu0 0.0
        %740 = vmatpush2.msra.mxu0 0.0
        %741 = vmatprep.subr.mxu0 0.0
        %742 = vmatpush2.msra.mxu0 0.0
        %743 = vmatprep.subr.mxu0 0.0
        %744 = vmatpush2.msra.mxu0 0.0
        %745 = vmatprep.subr.mxu0 0.0
        %746 = vmatpush2.msra.mxu0 0.0
        %747 = vmatprep.subr.mxu0 0.0
        %748 = vmatpush2.msra.mxu0 0.0
        %749 = vmatprep.subr.mxu0 0.0
        %750 = vmatpush2.msra.mxu0 0.0
        %751 = vmatprep.subr.mxu0 0.0
        %752 = vmatpush2.msra.mxu0 0.0
        %753 = vmatprep.subr.mxu0 0.0
        %754 = vmatpush2.msra.mxu0 0.0
        %755 = vmatprep.subr.mxu0 0.0
        %756 = vmatpush2.msra.mxu0 0.0
        %757 = vmatprep.subr.mxu0 0.0
        %758 = vmatpush2.msra.mxu0 0.0
        %759 = vmatprep.subr.mxu0 0.0
        %760 = vmatpush2.msra.mxu0 0.0
        %761 = vmatprep.subr.mxu0 0.0
        %762 = vmatpush2.msra.mxu0 0.0
        %763 = vmatprep.subr.mxu0 0.0
        %764 = vmatpush2.msra.mxu0 0.0
        %765 = vmatprep.subr.mxu0 0.0
        %766 = vmatpush2.msra.mxu0 0.0
        %767 = vmatprep.subr.mxu0 0.0
        %768 = vmatpush2.msra.mxu0 0.0
        %769 = vmatprep.subr.mxu0 0.0
        %770 = vmatpush2.msra.mxu0 0.0
        %771 = vmatprep.mubr.f32.mxu0 0.0
        %772 = vmatmul.mubr.f32.gmra.mxu0 %v696
        %v773 = vpop.f32.mrf.mxu0
        %v774 = vadd.f32 0.0, %v773
        %v775 = vpop.f32.mrf.mxu0
        %776 = vmatprep.mubr.f32.mxu0 0.0
        %777 = vmatmul.mubr.f32.gmra.mxu0 %v699
        %v778 = vpop.f32.mrf.mxu0
        %v779 = vadd.f32 0.0, %v778
        %v780 = vpop.f32.mrf.mxu0
        %781 = vmatprep.mubr.f32.mxu0 0.0
        %782 = vmatmul.mubr.f32.gmra.mxu0 %v702
        %v783 = vpop.f32.mrf.mxu0
        %v784 = vadd.f32 0.0, %v783
        %v785 = vpop.f32.mrf.mxu0
        %786 = vmatprep.mubr.f32.mxu0 0.0
        %787 = vmatmul.mubr.f32.gmra.mxu0 %v705
        %v788 = vpop.f32.mrf.mxu0
        %v789 = vadd.f32 0.0, %v788
        %v790 = vpop.f32.mrf.mxu0
        %791 = vdwg.mxu0
        %796 = vrot.lane.b32.xlu0 %v550, 8
        %v797 = vpop.permute.xlu0 %796
        %798 = vrot.lane.b32.xlu0 %v551, 8
        %v799 = vpop.permute.xlu0 %798
        %800 = vrot.lane.b32.xlu0 %v552, 8
        %v801 = vpop.permute.xlu0 %800
        %802 = vrot.lane.b32.xlu0 %v553, 8
        %v803 = vpop.permute.xlu0 %802
        %812 = vrot.lane.b32.xlu0 %v774, 16
        %v813 = vpop.permute.xlu0 %812
        %814 = vrot.lane.b32.xlu0 %v779, 16
        %v815 = vpop.permute.xlu0 %814
        %816 = vrot.lane.b32.xlu0 %v784, 16
        %v817 = vpop.permute.xlu0 %816
        %818 = vrot.lane.b32.xlu0 %v789, 16
        %v819 = vpop.permute.xlu0 %818
        %vm824 = vcmask 64512
        %v825 = vsel %vm824, %v661, %v797
        %v826 = vsel %vm824, %v666, %v799
        %v827 = vsel %vm824, %v671, %v801
        %v828 = vsel %vm824, %v676, %v803
        %vm829 = vcmask 130048
        %v830 = vsel %vm829, %v825, %v813
        %v831 = vsel %vm829, %v826, %v815
        %v832 = vsel %vm829, %v827, %v817
        %v833 = vsel %vm829, %v828, %v819
        %v835 = vlaneseq
        %v836 = vshrl.u32 %v835, 7
        %v837 = vsub.s32 0, %v836
        %v838 = vrot.slane %v557, %v837
        %vm840 = vcmask 195584
        %v842 = vsel %vm840, %v830, 0
        %v845 = vsel %vm840, %v831, 0
        %v848 = vsel %vm840, %v832, 0
        %v851 = vsel %vm840, %v833, 0
        %853 = vmatprep.subr.mxu0 0.0
        %854 = vmatpush1.msra.mxu0 0.0
        %855 = vmatprep.subr.mxu0 0.0
        %856 = vmatpush1.msra.mxu0 0.0
        %857 = vmatprep.subr.mxu0 0.0
        %858 = vmatpush1.msra.mxu0 0.0
        %859 = vmatprep.subr.mxu0 0.0
        %860 = vmatpush1.msra.mxu0 0.0
        %861 = vmatprep.subr.mxu0 0.0
        %862 = vmatpush1.msra.mxu0 0.0
        %863 = vmatprep.subr.mxu0 0.0
        %864 = vmatpush1.msra.mxu0 0.0
        %865 = vmatprep.subr.mxu0 0.0
        %866 = vmatpush1.msra.mxu0 0.0
        %867 = vmatprep.subr.mxu0 0.0
        %868 = vmatpush1.msra.mxu0 0.0
        %869 = vmatprep.subr.mxu0 0.0
        %870 = vmatpush1.msra.mxu0 0.0
        %871 = vmatprep.subr.mxu0 0.0
        %872 = vmatpush1.msra.mxu0 0.0
        %873 = vmatprep.subr.mxu0 0.0
        %874 = vmatpush1.msra.mxu0 0.0
        %875 = vmatprep.subr.mxu0 0.0
        %876 = vmatpush1.msra.mxu0 0.0
        %877 = vmatprep.subr.mxu0 0.0
        %878 = vmatpush1.msra.mxu0 0.0
        %879 = vmatprep.subr.mxu0 0.0
        %880 = vmatpush1.msra.mxu0 %v556
        %881 = vmatprep.subr.mxu0 0.0
        %882 = vmatpush1.msra.mxu0 %v555
        %883 = vmatprep.subr.mxu0 0.0
        %884 = vmatpush1.msra.mxu0 %v554
        %885 = vmatprep.subr.mxu0 0.0
        %886 = vmatpush2.msra.mxu0 0.0
        %887 = vmatprep.subr.mxu0 0.0
        %888 = vmatpush2.msra.mxu0 0.0
        %889 = vmatprep.subr.mxu0 0.0
        %890 = vmatpush2.msra.mxu0 0.0
        %891 = vmatprep.subr.mxu0 0.0
        %892 = vmatpush2.msra.mxu0 0.0
        %893 = vmatprep.subr.mxu0 0.0
        %894 = vmatpush2.msra.mxu0 0.0
        %895 = vmatprep.subr.mxu0 0.0
        %896 = vmatpush2.msra.mxu0 0.0
        %897 = vmatprep.subr.mxu0 0.0
        %898 = vmatpush2.msra.mxu0 0.0
        %899 = vmatprep.subr.mxu0 0.0
        %900 = vmatpush2.msra.mxu0 0.0
        %901 = vmatprep.subr.mxu0 0.0
        %902 = vmatpush2.msra.mxu0 0.0
        %903 = vmatprep.subr.mxu0 0.0
        %904 = vmatpush2.msra.mxu0 0.0
        %905 = vmatprep.subr.mxu0 0.0
        %906 = vmatpush2.msra.mxu0 0.0
        %907 = vmatprep.subr.mxu0 0.0
        %908 = vmatpush2.msra.mxu0 0.0
        %909 = vmatprep.subr.mxu0 0.0
        %910 = vmatpush2.msra.mxu0 0.0
        %911 = vmatprep.subr.mxu0 0.0
        %912 = vmatpush2.msra.mxu0 0.0
        %913 = vmatprep.subr.mxu0 0.0
        %914 = vmatpush2.msra.mxu0 0.0
        %915 = vmatprep.subr.mxu0 0.0
        %916 = vmatpush2.msra.mxu0 0.0
        %917 = vmatprep.mubr.f32.mxu0 0.0
        %918 = vmatmul.mubr.f32.gmra.mxu0 %v842
        %v919 = vpop.f32.mrf.mxu0
        %v920 = vadd.f32 %v838, %v919
        %v921 = vpop.f32.mrf.mxu0
        %922 = vmatprep.mubr.f32.mxu0 0.0
        %923 = vmatmul.mubr.f32.gmra.mxu0 %v845
        %v924 = vpop.f32.mrf.mxu0
        %v925 = vadd.f32 %v838, %v924
        %v926 = vpop.f32.mrf.mxu0
        %927 = vmatprep.mubr.f32.mxu0 0.0
        %928 = vmatmul.mubr.f32.gmra.mxu0 %v848
        %v929 = vpop.f32.mrf.mxu0
        %v930 = vadd.f32 %v838, %v929
        %v931 = vpop.f32.mrf.mxu0
        %932 = vmatprep.mubr.f32.mxu0 0.0
        %933 = vmatmul.mubr.f32.gmra.mxu0 %v851
        %v934 = vpop.f32.mrf.mxu0
        %v935 = vadd.f32 %v838, %v934
        %v936 = vpop.f32.mrf.mxu0
        %937 = vdwg.mxu0
        %v938 = vtanh.pop %v920
        %v939 = vtanh.pop %v925
        %v940 = vtanh.pop %v930
        %v941 = vtanh.pop %v935
        %v942 = vmul.u32 %v559, 2
        %v943 = vmul.u32 %v560, 2
        %vm944 = vcmp.eq.s32.totalorder %v564, %v942
        %vm945 = vcmp.eq.s32.totalorder %v564, %v943
        %v946 = vsel %vm944, 1, 0
        %v947 = vsel %vm945, 1, 0
        %v948 = vcvt.s32.f32 %v946
        %v949 = vcvt.s32.f32 %v947
        %v951 = vsel %vm581, %v948, 0
        %v954 = vsel %vm581, %v949, 0
        %956 = vmatprep.subr.mxu0 0.0
        %957 = vmatpush1.msra.mxu0 0.0
        %958 = vmatprep.subr.mxu0 0.0
        %959 = vmatpush1.msra.mxu0 0.0
        %960 = vmatprep.subr.mxu0 0.0
        %961 = vmatpush1.msra.mxu0 0.0
        %962 = vmatprep.subr.mxu0 0.0
        %963 = vmatpush1.msra.mxu0 0.0
        %964 = vmatprep.subr.mxu0 0.0
        %965 = vmatpush1.msra.mxu0 0.0
        %966 = vmatprep.subr.mxu0 0.0
        %967 = vmatpush1.msra.mxu0 0.0
        %968 = vmatprep.subr.mxu0 0.0
        %969 = vmatpush1.msra.mxu0 0.0
        %970 = vmatprep.subr.mxu0 0.0
        %971 = vmatpush1.msra.mxu0 0.0
        %972 = vmatprep.subr.mxu0 0.0
        %973 = vmatpush1.msra.mxu0 0.0
        %974 = vmatprep.subr.mxu0 0.0
        %975 = vmatpush1.msra.mxu0 0.0
        %976 = vmatprep.subr.mxu0 0.0
        %977 = vmatpush1.msra.mxu0 0.0
        %978 = vmatprep.subr.mxu0 0.0
        %979 = vmatpush1.msra.mxu0 0.0
        %980 = vmatprep.subr.mxu0 0.0
        %981 = vmatpush1.msra.mxu0 %v941
        %982 = vmatprep.subr.mxu0 0.0
        %983 = vmatpush1.msra.mxu0 %v940
        %984 = vmatprep.subr.mxu0 0.0
        %985 = vmatpush1.msra.mxu0 %v939
        %986 = vmatprep.subr.mxu0 0.0
        %987 = vmatpush1.msra.mxu0 %v938
        %988 = vmatprep.subr.mxu0 0.0
        %989 = vmatpush2.msra.mxu0 0.0
        %990 = vmatprep.subr.mxu0 0.0
        %991 = vmatpush2.msra.mxu0 0.0
        %992 = vmatprep.subr.mxu0 0.0
        %993 = vmatpush2.msra.mxu0 0.0
        %994 = vmatprep.subr.mxu0 0.0
        %995 = vmatpush2.msra.mxu0 0.0
        %996 = vmatprep.subr.mxu0 0.0
        %997 = vmatpush2.msra.mxu0 0.0
        %998 = vmatprep.subr.mxu0 0.0
        %999 = vmatpush2.msra.mxu0 0.0
        %1000 = vmatprep.subr.mxu0 0.0
        %1001 = vmatpush2.msra.mxu0 0.0
        %1002 = vmatprep.subr.mxu0 0.0
        %1003 = vmatpush2.msra.mxu0 0.0
        %1004 = vmatprep.subr.mxu0 0.0
        %1005 = vmatpush2.msra.mxu0 0.0
        %1006 = vmatprep.subr.mxu0 0.0
        %1007 = vmatpush2.msra.mxu0 0.0
        %1008 = vmatprep.subr.mxu0 0.0
        %1009 = vmatpush2.msra.mxu0 0.0
        %1010 = vmatprep.subr.mxu0 0.0
        %1011 = vmatpush2.msra.mxu0 0.0
        %1012 = vmatprep.subr.mxu0 0.0
        %1013 = vmatpush2.msra.mxu0 0.0
        %1014 = vmatprep.subr.mxu0 0.0
        %1015 = vmatpush2.msra.mxu0 0.0
        %1016 = vmatprep.subr.mxu0 0.0
        %1017 = vmatpush2.msra.mxu0 0.0
        %1018 = vmatprep.subr.mxu0 0.0
        %1019 = vmatpush2.msra.mxu0 0.0
        %1020 = vmatprep.mubr.f32.mxu0 0.0
        %1021 = vmatmul.mubr.f32.gmra.mxu0 %v951
        %v1022 = vpop.f32.mrf.mxu0
        %v1023 = vadd.f32 0.0, %v1022
        %v1024 = vpop.f32.mrf.mxu0
        %1025 = vmatprep.mubr.f32.mxu0 0.0
        %1026 = vmatmul.mubr.f32.gmra.mxu0 %v954
        %v1027 = vpop.f32.mrf.mxu0
        %v1028 = vadd.f32 0.0, %v1027
        %v1029 = vpop.f32.mrf.mxu0
        %1030 = vdwg.mxu0
        %v1031 = vadd.s32 %v942, 1
        %v1032 = vadd.s32 %v943, 1
        %vm1033 = vcmp.eq.s32.totalorder %v564, %v1031
        %vm1034 = vcmp.eq.s32.totalorder %v564, %v1032
        %v1035 = vsel %vm1033, 1, 0
        %v1036 = vsel %vm1034, 1, 0
        %v1037 = vcvt.s32.f32 %v1035
        %v1038 = vcvt.s32.f32 %v1036
        %v1040 = vsel %vm581, %v1037, 0
        %v1043 = vsel %vm581, %v1038, 0
        %1045 = vmatprep.subr.mxu0 0.0
        %1046 = vmatpush1.msra.mxu0 0.0
        %1047 = vmatprep.subr.mxu0 0.0
        %1048 = vmatpush1.msra.mxu0 0.0
        %1049 = vmatprep.subr.mxu0 0.0
        %1050 = vmatpush1.msra.mxu0 0.0
        %1051 = vmatprep.subr.mxu0 0.0
        %1052 = vmatpush1.msra.mxu0 0.0
        %1053 = vmatprep.subr.mxu0 0.0
        %1054 = vmatpush1.msra.mxu0 0.0
        %1055 = vmatprep.subr.mxu0 0.0
        %1056 = vmatpush1.msra.mxu0 0.0
        %1057 = vmatprep.subr.mxu0 0.0
        %1058 = vmatpush1.msra.mxu0 0.0
        %1059 = vmatprep.subr.mxu0 0.0
        %1060 = vmatpush1.msra.mxu0 0.0
        %1061 = vmatprep.subr.mxu0 0.0
        %1062 = vmatpush1.msra.mxu0 0.0
        %1063 = vmatprep.subr.mxu0 0.0
        %1064 = vmatpush1.msra.mxu0 0.0
        %1065 = vmatprep.subr.mxu0 0.0
        %1066 = vmatpush1.msra.mxu0 0.0
        %1067 = vmatprep.subr.mxu0 0.0
        %1068 = vmatpush1.msra.mxu0 0.0
        %1069 = vmatprep.subr.mxu0 0.0
        %1070 = vmatpush1.msra.mxu0 %v941
        %1071 = vmatprep.subr.mxu0 0.0
        %1072 = vmatpush1.msra.mxu0 %v940
        %1073 = vmatprep.subr.mxu0 0.0
        %1074 = vmatpush1.msra.mxu0 %v939
        %1075 = vmatprep.subr.mxu0 0.0
        %1076 = vmatpush1.msra.mxu0 %v938
        %1077 = vmatprep.subr.mxu0 0.0
        %1078 = vmatpush2.msra.mxu0 0.0
        %1079 = vmatprep.subr.mxu0 0.0
        %1080 = vmatpush2.msra.mxu0 0.0
        %1081 = vmatprep.subr.mxu0 0.0
        %1082 = vmatpush2.msra.mxu0 0.0
        %1083 = vmatprep.subr.mxu0 0.0
        %1084 = vmatpush2.msra.mxu0 0.0
        %1085 = vmatprep.subr.mxu0 0.0
        %1086 = vmatpush2.msra.mxu0 0.0
        %1087 = vmatprep.subr.mxu0 0.0
        %1088 = vmatpush2.msra.mxu0 0.0
        %1089 = vmatprep.subr.mxu0 0.0
        %1090 = vmatpush2.msra.mxu0 0.0
        %1091 = vmatprep.subr.mxu0 0.0
        %1092 = vmatpush2.msra.mxu0 0.0
        %1093 = vmatprep.subr.mxu0 0.0
        %1094 = vmatpush2.msra.mxu0 0.0
        %1095 = vmatprep.subr.mxu0 0.0
        %1096 = vmatpush2.msra.mxu0 0.0
        %1097 = vmatprep.subr.mxu0 0.0
        %1098 = vmatpush2.msra.mxu0 0.0
        %1099 = vmatprep.subr.mxu0 0.0
        %1100 = vmatpush2.msra.mxu0 0.0
        %1101 = vmatprep.subr.mxu0 0.0
        %1102 = vmatpush2.msra.mxu0 0.0
        %1103 = vmatprep.subr.mxu0 0.0
        %1104 = vmatpush2.msra.mxu0 0.0
        %1105 = vmatprep.subr.mxu0 0.0
        %1106 = vmatpush2.msra.mxu0 0.0
        %1107 = vmatprep.subr.mxu0 0.0
        %1108 = vmatpush2.msra.mxu0 0.0
        %1109 = vmatprep.mubr.f32.mxu0 0.0
        %1110 = vmatmul.mubr.f32.gmra.mxu0 %v1040
        %v1111 = vpop.f32.mrf.mxu0
        %v1112 = vadd.f32 0.0, %v1111
        %v1113 = vpop.f32.mrf.mxu0
        %1114 = vmatprep.mubr.f32.mxu0 0.0
        %1115 = vmatmul.mubr.f32.gmra.mxu0 %v1043
        %v1116 = vpop.f32.mrf.mxu0
        %v1117 = vadd.f32 0.0, %v1116
        %v1118 = vpop.f32.mrf.mxu0
        %1119 = vdwg.mxu0
        %v1120 = vmax.f32 %v1023, %v1112
        %v1121 = vmax.f32 %v1028, %v1117
        %v1122 = vld [vmem:[%s3] sm:$0xff]
        %v1123 = vld [vmem:[%s3 + $0x8] sm:$0xff]
        %v1124 = vld [vmem:[%s3 + $0x10] sm:$0xff]
        %v1125 = vld [vmem:[%s3 + $0x18] sm:$0xff]
        %v1126 = vld [vmem:[%s3 + $0x20] sm:$0xff]
        %v1127 = vld [vmem:[%s3 + $0x28] sm:$0xff]
        %v1128 = vld [vmem:[%s3 + $0x30] sm:$0xff]
        %v1129 = vld [vmem:[%s3 + $0x38] sm:$0xff]
        %v1130 = vld [vmem:[%s3 + $0x40] sm:$0xff]
        %v1131 = vld [vmem:[%s3 + $0x48] sm:$0xff]
        %v1132 = vld [vmem:[%s3 + $0x50] sm:$0xff]
        %v1133 = vld [vmem:[%s3 + $0x58] sm:$0xff]
        %v1134 = vld [vmem:[#allocation6] sm:$0x1]
        %v1135 = vsel %vm829, %v577, 0
        %v1137 = vsel %vm829, %v578, 0
        %1139 = vmatprep.subr.mxu0 0.0
        %1140 = vmatpush1.msra.mxu0 0.0
        %1141 = vmatprep.subr.mxu0 0.0
        %1142 = vmatpush1.msra.mxu0 0.0
        %1143 = vmatprep.subr.mxu0 0.0
        %1144 = vmatpush1.msra.mxu0 0.0
        %1145 = vmatprep.subr.mxu0 0.0
        %1146 = vmatpush1.msra.mxu0 0.0
        %1147 = vmatprep.subr.mxu0 0.0
        %1148 = vmatpush1.msra.mxu0 0.0
        %1149 = vmatprep.subr.mxu0 0.0
        %1150 = vmatpush1.msra.mxu0 0.0
        %1151 = vmatprep.subr.mxu0 0.0
        %1152 = vmatpush1.msra.mxu0 0.0
        %1153 = vmatprep.subr.mxu0 0.0
        %1154 = vmatpush1.msra.mxu0 0.0
        %1155 = vmatprep.subr.mxu0 0.0
        %1156 = vmatpush1.msra.mxu0 0.0
        %1157 = vmatprep.subr.mxu0 0.0
        %1158 = vmatpush1.msra.mxu0 0.0
        %1159 = vmatprep.subr.mxu0 0.0
        %1160 = vmatpush1.msra.mxu0 0.0
        %1161 = vmatprep.subr.mxu0 0.0
        %1162 = vmatpush1.msra.mxu0 0.0
        %1163 = vmatprep.subr.mxu0 0.0
        %1164 = vmatpush1.msra.mxu0 0.0
        %1165 = vmatprep.subr.mxu0 0.0
        %1166 = vmatpush1.msra.mxu0 0.0
        %1167 = vmatprep.subr.mxu0 0.0
        %1168 = vmatpush1.msra.mxu0 %v1121
        %1169 = vmatprep.subr.mxu0 0.0
        %1170 = vmatpush1.msra.mxu0 %v1120
        %1171 = vmatprep.subr.mxu0 0.0
        %1172 = vmatpush2.msra.mxu0 0.0
        %1173 = vmatprep.subr.mxu0 0.0
        %1174 = vmatpush2.msra.mxu0 0.0
        %1175 = vmatprep.subr.mxu0 0.0
        %1176 = vmatpush2.msra.mxu0 0.0
        %1177 = vmatprep.subr.mxu0 0.0
        %1178 = vmatpush2.msra.mxu0 0.0
        %1179 = vmatprep.subr.mxu0 0.0
        %1180 = vmatpush2.msra.mxu0 0.0
        %1181 = vmatprep.subr.mxu0 0.0
        %1182 = vmatpush2.msra.mxu0 0.0
        %1183 = vmatprep.subr.mxu0 0.0
        %1184 = vmatpush2.msra.mxu0 0.0
        %1185 = vmatprep.subr.mxu0 0.0
        %1186 = vmatpush2.msra.mxu0 0.0
        %1187 = vmatprep.subr.mxu0 0.0
        %1188 = vmatpush2.msra.mxu0 0.0
        %1189 = vmatprep.subr.mxu0 0.0
        %1190 = vmatpush2.msra.mxu0 0.0
        %1191 = vmatprep.subr.mxu0 0.0
        %1192 = vmatpush2.msra.mxu0 0.0
        %1193 = vmatprep.subr.mxu0 0.0
        %1194 = vmatpush2.msra.mxu0 0.0
        %1195 = vmatprep.subr.mxu0 0.0
        %1196 = vmatpush2.msra.mxu0 0.0
        %1197 = vmatprep.subr.mxu0 0.0
        %1198 = vmatpush2.msra.mxu0 0.0
        %1199 = vmatprep.subr.mxu0 0.0
        %1200 = vmatpush2.msra.mxu0 0.0
        %1201 = vmatprep.subr.mxu0 0.0
        %1202 = vmatpush2.msra.mxu0 0.0
        %1203 = vmatprep.mubr.f32.mxu0 0.0
        %1204 = vmatmul.mubr.f32.gmra.mxu0 %v1135
        %v1205 = vpop.f32.mrf.mxu0
        %v1206 = vadd.f32 0.0, %v1205
        %v1207 = vpop.f32.mrf.mxu0
        %1208 = vmatprep.mubr.f32.mxu0 0.0
        %1209 = vmatmul.mubr.f32.gmra.mxu0 %v1137
        %v1210 = vpop.f32.mrf.mxu0
        %v1211 = vadd.f32 0.0, %v1210
        %v1212 = vpop.f32.mrf.mxu0
        %1213 = vdwg.mxu0
        %v1214 = vsel %vm829, %v691, 0
        %v1216 = vsel %vm829, %v692, 0
        %1218 = vmatprep.subr.mxu0 0.0
        %1219 = vmatpush1.msra.mxu0 0.0
        %1220 = vmatprep.subr.mxu0 0.0
        %1221 = vmatpush1.msra.mxu0 0.0
        %1222 = vmatprep.subr.mxu0 0.0
        %1223 = vmatpush1.msra.mxu0 0.0
        %1224 = vmatprep.subr.mxu0 0.0
        %1225 = vmatpush1.msra.mxu0 0.0
        %1226 = vmatprep.subr.mxu0 0.0
        %1227 = vmatpush1.msra.mxu0 0.0
        %1228 = vmatprep.subr.mxu0 0.0
        %1229 = vmatpush1.msra.mxu0 0.0
        %1230 = vmatprep.subr.mxu0 0.0
        %1231 = vmatpush1.msra.mxu0 0.0
        %1232 = vmatprep.subr.mxu0 0.0
        %1233 = vmatpush1.msra.mxu0 0.0
        %1234 = vmatprep.subr.mxu0 0.0
        %1235 = vmatpush1.msra.mxu0 0.0
        %1236 = vmatprep.subr.mxu0 0.0
        %1237 = vmatpush1.msra.mxu0 0.0
        %1238 = vmatprep.subr.mxu0 0.0
        %1239 = vmatpush1.msra.mxu0 0.0
        %1240 = vmatprep.subr.mxu0 0.0
        %1241 = vmatpush1.msra.mxu0 0.0
        %1242 = vmatprep.subr.mxu0 0.0
        %1243 = vmatpush1.msra.mxu0 0.0
        %1244 = vmatprep.subr.mxu0 0.0
        %1245 = vmatpush1.msra.mxu0 0.0
        %1246 = vmatprep.subr.mxu0 0.0
        %1247 = vmatpush1.msra.mxu0 %v1121
        %1248 = vmatprep.subr.mxu0 0.0
        %1249 = vmatpush1.msra.mxu0 %v1120
        %1250 = vmatprep.subr.mxu0 0.0
        %1251 = vmatpush2.msra.mxu0 0.0
        %1252 = vmatprep.subr.mxu0 0.0
        %1253 = vmatpush2.msra.mxu0 0.0
        %1254 = vmatprep.subr.mxu0 0.0
        %1255 = vmatpush2.msra.mxu0 0.0
        %1256 = vmatprep.subr.mxu0 0.0
        %1257 = vmatpush2.msra.mxu0 0.0
        %1258 = vmatprep.subr.mxu0 0.0
        %1259 = vmatpush2.msra.mxu0 0.0
        %1260 = vmatprep.subr.mxu0 0.0
        %1261 = vmatpush2.msra.mxu0 0.0
        %1262 = vmatprep.subr.mxu0 0.0
        %1263 = vmatpush2.msra.mxu0 0.0
        %1264 = vmatprep.subr.mxu0 0.0
        %1265 = vmatpush2.msra.mxu0 0.0
        %1266 = vmatprep.subr.mxu0 0.0
        %1267 = vmatpush2.msra.mxu0 0.0
        %1268 = vmatprep.subr.mxu0 0.0
        %1269 = vmatpush2.msra.mxu0 0.0
        %1270 = vmatprep.subr.mxu0 0.0
        %1271 = vmatpush2.msra.mxu0 0.0
        %1272 = vmatprep.subr.mxu0 0.0
        %1273 = vmatpush2.msra.mxu0 0.0
        %1274 = vmatprep.subr.mxu0 0.0
        %1275 = vmatpush2.msra.mxu0 0.0
        %1276 = vmatprep.subr.mxu0 0.0
        %1277 = vmatpush2.msra.mxu0 0.0
        %1278 = vmatprep.subr.mxu0 0.0
        %1279 = vmatpush2.msra.mxu0 0.0
        %1280 = vmatprep.subr.mxu0 0.0
        %1281 = vmatpush2.msra.mxu0 0.0
        %1282 = vmatprep.mubr.f32.mxu0 0.0
        %1283 = vmatmul.mubr.f32.gmra.mxu0 %v1214
        %v1284 = vpop.f32.mrf.mxu0
        %v1285 = vadd.f32 0.0, %v1284
        %v1286 = vpop.f32.mrf.mxu0
        %1287 = vmatprep.mubr.f32.mxu0 0.0
        %1288 = vmatmul.mubr.f32.gmra.mxu0 %v1216
        %v1289 = vpop.f32.mrf.mxu0
        %v1290 = vadd.f32 0.0, %v1289
        %v1291 = vpop.f32.mrf.mxu0
        %1292 = vdwg.mxu0
        %1295 = vrot.lane.b32.xlu0 %v1120, 32
        %v1296 = vpop.permute.xlu0 %1295
        %1297 = vrot.lane.b32.xlu0 %v1121, 32
        %v1298 = vpop.permute.xlu0 %1297
        %1303 = vrot.lane.b32.xlu0 %v1285, 64
        %v1304 = vpop.permute.xlu0 %1303
        %1305 = vrot.lane.b32.xlu0 %v1290, 64
        %v1306 = vpop.permute.xlu0 %1305
        %v1309 = vsel %vm581, %v1206, %v1296
        %v1310 = vsel %vm581, %v1211, %v1298
        %vm1311 = vcmask 523264
        %v1312 = vsel %vm1311, %v1309, %v1304
        %v1313 = vsel %vm1311, %v1310, %v1306
        %v1315 = vlaneseq
        %v1316 = vshrl.u32 %v1315, 7
        %v1317 = vsub.s32 0, %v1316
        %v1318 = vrot.slane %v1134, %v1317
        %vm1320 = vcmask 785408
        %v1322 = vsel %vm1320, %v1312, 0
        %v1325 = vsel %vm1320, %v1313, 0
        %1327 = vmatprep.subr.mxu0 0.0
        %1328 = vmatpush1.msra.mxu0 0.0
        %1329 = vmatprep.subr.mxu0 0.0
        %1330 = vmatpush1.msra.mxu0 0.0
        %1331 = vmatprep.subr.mxu0 0.0
        %1332 = vmatpush1.msra.mxu0 0.0
        %1333 = vmatprep.subr.mxu0 0.0
        %1334 = vmatpush1.msra.mxu0 0.0
        %1335 = vmatprep.subr.mxu0 0.0
        %1336 = vmatpush1.msra.mxu0 %v1133
        %1337 = vmatprep.subr.mxu0 0.0
        %1338 = vmatpush1.msra.mxu0 %v1132
        %1339 = vmatprep.subr.mxu0 0.0
        %1340 = vmatpush1.msra.mxu0 %v1131
        %1341 = vmatprep.subr.mxu0 0.0
        %1342 = vmatpush1.msra.mxu0 %v1130
        %1343 = vmatprep.subr.mxu0 0.0
        %1344 = vmatpush1.msra.mxu0 %v1129
        %1345 = vmatprep.subr.mxu0 0.0
        %1346 = vmatpush1.msra.mxu0 %v1128
        %1347 = vmatprep.subr.mxu0 0.0
        %1348 = vmatpush1.msra.mxu0 %v1127
        %1349 = vmatprep.subr.mxu0 0.0
        %1350 = vmatpush1.msra.mxu0 %v1126
        %1351 = vmatprep.subr.mxu0 0.0
        %1352 = vmatpush1.msra.mxu0 %v1125
        %1353 = vmatprep.subr.mxu0 0.0
        %1354 = vmatpush1.msra.mxu0 %v1124
        %1355 = vmatprep.subr.mxu0 0.0
        %1356 = vmatpush1.msra.mxu0 %v1123
        %1357 = vmatprep.subr.mxu0 0.0
        %1358 = vmatpush1.msra.mxu0 %v1122
        %1359 = vmatprep.subr.mxu0 0.0
        %1360 = vmatpush2.msra.mxu0 0.0
        %1361 = vmatprep.subr.mxu0 0.0
        %1362 = vmatpush2.msra.mxu0 0.0
        %1363 = vmatprep.subr.mxu0 0.0
        %1364 = vmatpush2.msra.mxu0 0.0
        %1365 = vmatprep.subr.mxu0 0.0
        %1366 = vmatpush2.msra.mxu0 0.0
        %1367 = vmatprep.subr.mxu0 0.0
        %1368 = vmatpush2.msra.mxu0 0.0
        %1369 = vmatprep.subr.mxu0 0.0
        %1370 = vmatpush2.msra.mxu0 0.0
        %1371 = vmatprep.subr.mxu0 0.0
        %1372 = vmatpush2.msra.mxu0 0.0
        %1373 = vmatprep.subr.mxu0 0.0
        %1374 = vmatpush2.msra.mxu0 0.0
        %1375 = vmatprep.subr.mxu0 0.0
        %1376 = vmatpush2.msra.mxu0 0.0
        %1377 = vmatprep.subr.mxu0 0.0
        %1378 = vmatpush2.msra.mxu0 0.0
        %1379 = vmatprep.subr.mxu0 0.0
        %1380 = vmatpush2.msra.mxu0 0.0
        %1381 = vmatprep.subr.mxu0 0.0
        %1382 = vmatpush2.msra.mxu0 0.0
        %1383 = vmatprep.subr.mxu0 0.0
        %1384 = vmatpush2.msra.mxu0 0.0
        %1385 = vmatprep.subr.mxu0 0.0
        %1386 = vmatpush2.msra.mxu0 0.0
        %1387 = vmatprep.subr.mxu0 0.0
        %1388 = vmatpush2.msra.mxu0 0.0
        %1389 = vmatprep.subr.mxu0 0.0
        %1390 = vmatpush2.msra.mxu0 0.0
        %1391 = vmatprep.mubr.f32.mxu0 0.0
        %1392 = vmatmul.mubr.f32.gmra.mxu0 %v1322
        %v1393 = vpop.f32.mrf.mxu0
        %v1394 = vadd.f32 %v1318, %v1393
        %v1395 = vpop.f32.mrf.mxu0
        %1396 = vmatprep.mubr.f32.mxu0 0.0
        %1397 = vmatmul.mubr.f32.gmra.mxu0 %v1325
        %v1398 = vpop.f32.mrf.mxu0
        %v1399 = vadd.f32 %v1318, %v1398
        %v1400 = vpop.f32.mrf.mxu0
        %1401 = vdwg.mxu0
        %v1402 = vtanh.pop %v1394
        %v1403 = vtanh.pop %v1399
        %v1404 = vsel %vm829, %v948, 0
        %1406 = vmatprep.subr.mxu0 0.0
        %1407 = vmatpush1.msra.mxu0 0.0
        %1408 = vmatprep.subr.mxu0 0.0
        %1409 = vmatpush1.msra.mxu0 0.0
        %1410 = vmatprep.subr.mxu0 0.0
        %1411 = vmatpush1.msra.mxu0 0.0
        %1412 = vmatprep.subr.mxu0 0.0
        %1413 = vmatpush1.msra.mxu0 0.0
        %1414 = vmatprep.subr.mxu0 0.0
        %1415 = vmatpush1.msra.mxu0 0.0
        %1416 = vmatprep.subr.mxu0 0.0
        %1417 = vmatpush1.msra.mxu0 0.0
        %1418 = vmatprep.subr.mxu0 0.0
        %1419 = vmatpush1.msra.mxu0 0.0
        %1420 = vmatprep.subr.mxu0 0.0
        %1421 = vmatpush1.msra.mxu0 0.0
        %1422 = vmatprep.subr.mxu0 0.0
        %1423 = vmatpush1.msra.mxu0 0.0
        %1424 = vmatprep.subr.mxu0 0.0
        %1425 = vmatpush1.msra.mxu0 0.0
        %1426 = vmatprep.subr.mxu0 0.0
        %1427 = vmatpush1.msra.mxu0 0.0
        %1428 = vmatprep.subr.mxu0 0.0
        %1429 = vmatpush1.msra.mxu0 0.0
        %1430 = vmatprep.subr.mxu0 0.0
        %1431 = vmatpush1.msra.mxu0 0.0
        %1432 = vmatprep.subr.mxu0 0.0
        %1433 = vmatpush1.msra.mxu0 0.0
        %1434 = vmatprep.subr.mxu0 0.0
        %1435 = vmatpush1.msra.mxu0 %v1403
        %1436 = vmatprep.subr.mxu0 0.0
        %1437 = vmatpush1.msra.mxu0 %v1402
        %1438 = vmatprep.subr.mxu0 0.0
        %1439 = vmatpush2.msra.mxu0 0.0
        %1440 = vmatprep.subr.mxu0 0.0
        %1441 = vmatpush2.msra.mxu0 0.0
        %1442 = vmatprep.subr.mxu0 0.0
        %1443 = vmatpush2.msra.mxu0 0.0
        %1444 = vmatprep.subr.mxu0 0.0
        %1445 = vmatpush2.msra.mxu0 0.0
        %1446 = vmatprep.subr.mxu0 0.0
        %1447 = vmatpush2.msra.mxu0 0.0
        %1448 = vmatprep.subr.mxu0 0.0
        %1449 = vmatpush2.msra.mxu0 0.0
        %1450 = vmatprep.subr.mxu0 0.0
        %1451 = vmatpush2.msra.mxu0 0.0
        %1452 = vmatprep.subr.mxu0 0.0
        %1453 = vmatpush2.msra.mxu0 0.0
        %1454 = vmatprep.subr.mxu0 0.0
        %1455 = vmatpush2.msra.mxu0 0.0
        %1456 = vmatprep.subr.mxu0 0.0
        %1457 = vmatpush2.msra.mxu0 0.0
        %1458 = vmatprep.subr.mxu0 0.0
        %1459 = vmatpush2.msra.mxu0 0.0
        %1460 = vmatprep.subr.mxu0 0.0
        %1461 = vmatpush2.msra.mxu0 0.0
        %1462 = vmatprep.subr.mxu0 0.0
        %1463 = vmatpush2.msra.mxu0 0.0
        %1464 = vmatprep.subr.mxu0 0.0
        %1465 = vmatpush2.msra.mxu0 0.0
        %1466 = vmatprep.subr.mxu0 0.0
        %1467 = vmatpush2.msra.mxu0 0.0
        %1468 = vmatprep.subr.mxu0 0.0
        %1469 = vmatpush2.msra.mxu0 0.0
        %1470 = vmatprep.mubr.f32.mxu0 0.0
        %1471 = vmatmul.mubr.f32.gmra.mxu0 %v1404
        %v1472 = vpop.f32.mrf.mxu0
        %v1473 = vadd.f32 0.0, %v1472
        %v1474 = vpop.f32.mrf.mxu0
        %1475 = vdwg.mxu0
        %v1476 = vsel %vm829, %v1037, 0
        %1478 = vmatprep.subr.mxu0 0.0
        %1479 = vmatpush1.msra.mxu0 0.0
        %1480 = vmatprep.subr.mxu0 0.0
        %1481 = vmatpush1.msra.mxu0 0.0
        %1482 = vmatprep.subr.mxu0 0.0
        %1483 = vmatpush1.msra.mxu0 0.0
        %1484 = vmatprep.subr.mxu0 0.0
        %1485 = vmatpush1.msra.mxu0 0.0
        %1486 = vmatprep.subr.mxu0 0.0
        %1487 = vmatpush1.msra.mxu0 0.0
        %1488 = vmatprep.subr.mxu0 0.0
        %1489 = vmatpush1.msra.mxu0 0.0
        %1490 = vmatprep.subr.mxu0 0.0
        %1491 = vmatpush1.msra.mxu0 0.0
        %1492 = vmatprep.subr.mxu0 0.0
        %1493 = vmatpush1.msra.mxu0 0.0
        %1494 = vmatprep.subr.mxu0 0.0
        %1495 = vmatpush1.msra.mxu0 0.0
        %1496 = vmatprep.subr.mxu0 0.0
        %1497 = vmatpush1.msra.mxu0 0.0
        %1498 = vmatprep.subr.mxu0 0.0
        %1499 = vmatpush1.msra.mxu0 0.0
        %1500 = vmatprep.subr.mxu0 0.0
        %1501 = vmatpush1.msra.mxu0 0.0
        %1502 = vmatprep.subr.mxu0 0.0
        %1503 = vmatpush1.msra.mxu0 0.0
        %1504 = vmatprep.subr.mxu0 0.0
        %1505 = vmatpush1.msra.mxu0 0.0
        %1506 = vmatprep.subr.mxu0 0.0
        %1507 = vmatpush1.msra.mxu0 %v1403
        %1508 = vmatprep.subr.mxu0 0.0
        %1509 = vmatpush1.msra.mxu0 %v1402
        %1510 = vmatprep.subr.mxu0 0.0
        %1511 = vmatpush2.msra.mxu0 0.0
        %1512 = vmatprep.subr.mxu0 0.0
        %1513 = vmatpush2.msra.mxu0 0.0
        %1514 = vmatprep.subr.mxu0 0.0
        %1515 = vmatpush2.msra.mxu0 0.0
        %1516 = vmatprep.subr.mxu0 0.0
        %1517 = vmatpush2.msra.mxu0 0.0
        %1518 = vmatprep.subr.mxu0 0.0
        %1519 = vmatpush2.msra.mxu0 0.0
        %1520 = vmatprep.subr.mxu0 0.0
        %1521 = vmatpush2.msra.mxu0 0.0
        %1522 = vmatprep.subr.mxu0 0.0
        %1523 = vmatpush2.msra.mxu0 0.0
        %1524 = vmatprep.subr.mxu0 0.0
        %1525 = vmatpush2.msra.mxu0 0.0
        %1526 = vmatprep.subr.mxu0 0.0
        %1527 = vmatpush2.msra.mxu0 0.0
        %1528 = vmatprep.subr.mxu0 0.0
        %1529 = vmatpush2.msra.mxu0 0.0
        %1530 = vmatprep.subr.mxu0 0.0
        %1531 = vmatpush2.msra.mxu0 0.0
        %1532 = vmatprep.subr.mxu0 0.0
        %1533 = vmatpush2.msra.mxu0 0.0
        %1534 = vmatprep.subr.mxu0 0.0
        %1535 = vmatpush2.msra.mxu0 0.0
        %1536 = vmatprep.subr.mxu0 0.0
        %1537 = vmatpush2.msra.mxu0 0.0
        %1538 = vmatprep.subr.mxu0 0.0
        %1539 = vmatpush2.msra.mxu0 0.0
        %1540 = vmatprep.subr.mxu0 0.0
        %1541 = vmatpush2.msra.mxu0 0.0
        %1542 = vmatprep.mubr.f32.mxu0 0.0
        %1543 = vmatmul.mubr.f32.gmra.mxu0 %v1476
        %v1544 = vpop.f32.mrf.mxu0
        %v1545 = vadd.f32 0.0, %v1544
        %v1546 = vpop.f32.mrf.mxu0
        %1547 = vdwg.mxu0
        %v1548 = vmax.f32 %v1473, %v1545
        %v1549 = vld [vmem:[#allocation7] sm:$0xff]
        %v1550 = vld [vmem:[#allocation7 + $0x8] sm:$0xff]
        %v1551 = vld [vmem:[#allocation7 + $0x10] sm:$0xff]
        %v1552 = vld [vmem:[#allocation7 + $0x18] sm:$0xff]
        %v1553 = vld [vmem:[#allocation7 + $0x20] sm:$0xff]
        %v1554 = vld [vmem:[#allocation7 + $0x28] sm:$0xff]
        %v1555 = vld [vmem:[#allocation7 + $0x30] sm:$0xff]
        %v1556 = vld [vmem:[#allocation7 + $0x38] sm:$0xff]
        %v1557 = vld [vmem:[#allocation7 + $0x40] sm:$0xff]
        %v1558 = vld [vmem:[#allocation7 + $0x48] sm:$0xff]
        %v1559 = vld [vmem:[#allocation7 + $0x50] sm:$0xff]
        %v1560 = vld [vmem:[#allocation7 + $0x58] sm:$0xff]
        %v1561 = vld [vmem:[#allocation7 + $0x60] sm:$0xff]
        %v1562 = vld [vmem:[#allocation7 + $0x68] sm:$0xff]
        %v1563 = vld [vmem:[#allocation7 + $0x70] sm:$0xff]
        %v1564 = vld [vmem:[#allocation7 + $0x78] sm:$0xff]
        %v1565 = vld [vmem:[#allocation7 + $0x80] sm:$0xff]
        %v1566 = vld [vmem:[#allocation7 + $0x88] sm:$0xff]
        %v1567 = vld [vmem:[#allocation7 + $0x90] sm:$0xff]
        %v1568 = vld [vmem:[#allocation7 + $0x98] sm:$0xff]
        %v1569 = vld [vmem:[#allocation7 + $0xa0] sm:$0xff]
        %v1570 = vld [vmem:[#allocation7 + $0xa8] sm:$0xff]
        %v1571 = vld [vmem:[#allocation7 + $0xb0] sm:$0xff]
        %v1572 = vld [vmem:[#allocation7 + $0xb8] sm:$0xff]
        %v1573 = vld [vmem:[#allocation9] sm:$0x1]
        %v1574 = vsel %vm824, %v577, 0
        %1576 = vmatprep.subr.mxu0 0.0
        %1577 = vmatpush1.msra.mxu0 0.0
        %1578 = vmatprep.subr.mxu0 0.0
        %1579 = vmatpush1.msra.mxu0 0.0
        %1580 = vmatprep.subr.mxu0 0.0
        %1581 = vmatpush1.msra.mxu0 0.0
        %1582 = vmatprep.subr.mxu0 0.0
        %1583 = vmatpush1.msra.mxu0 0.0
        %1584 = vmatprep.subr.mxu0 0.0
        %1585 = vmatpush1.msra.mxu0 0.0
        %1586 = vmatprep.subr.mxu0 0.0
        %1587 = vmatpush1.msra.mxu0 0.0
        %1588 = vmatprep.subr.mxu0 0.0
        %1589 = vmatpush1.msra.mxu0 0.0
        %1590 = vmatprep.subr.mxu0 0.0
        %1591 = vmatpush1.msra.mxu0 0.0
        %1592 = vmatprep.subr.mxu0 0.0
        %1593 = vmatpush1.msra.mxu0 0.0
        %1594 = vmatprep.subr.mxu0 0.0
        %1595 = vmatpush1.msra.mxu0 0.0
        %1596 = vmatprep.subr.mxu0 0.0
        %1597 = vmatpush1.msra.mxu0 0.0
        %1598 = vmatprep.subr.mxu0 0.0
        %1599 = vmatpush1.msra.mxu0 0.0
        %1600 = vmatprep.subr.mxu0 0.0
        %1601 = vmatpush1.msra.mxu0 0.0
        %1602 = vmatprep.subr.mxu0 0.0
        %1603 = vmatpush1.msra.mxu0 0.0
        %1604 = vmatprep.subr.mxu0 0.0
        %1605 = vmatpush1.msra.mxu0 0.0
        %1606 = vmatprep.subr.mxu0 0.0
        %1607 = vmatpush1.msra.mxu0 %v1548
        %1608 = vmatprep.subr.mxu0 0.0
        %1609 = vmatpush2.msra.mxu0 0.0
        %1610 = vmatprep.subr.mxu0 0.0
        %1611 = vmatpush2.msra.mxu0 0.0
        %1612 = vmatprep.subr.mxu0 0.0
        %1613 = vmatpush2.msra.mxu0 0.0
        %1614 = vmatprep.subr.mxu0 0.0
        %1615 = vmatpush2.msra.mxu0 0.0
        %1616 = vmatprep.subr.mxu0 0.0
        %1617 = vmatpush2.msra.mxu0 0.0
        %1618 = vmatprep.subr.mxu0 0.0
        %1619 = vmatpush2.msra.mxu0 0.0
        %1620 = vmatprep.subr.mxu0 0.0
        %1621 = vmatpush2.msra.mxu0 0.0
        %1622 = vmatprep.subr.mxu0 0.0
        %1623 = vmatpush2.msra.mxu0 0.0
        %1624 = vmatprep.subr.mxu0 0.0
        %1625 = vmatpush2.msra.mxu0 0.0
        %1626 = vmatprep.subr.mxu0 0.0
        %1627 = vmatpush2.msra.mxu0 0.0
        %1628 = vmatprep.subr.mxu0 0.0
        %1629 = vmatpush2.msra.mxu0 0.0
        %1630 = vmatprep.subr.mxu0 0.0
        %1631 = vmatpush2.msra.mxu0 0.0
        %1632 = vmatprep.subr.mxu0 0.0
        %1633 = vmatpush2.msra.mxu0 0.0
        %1634 = vmatprep.subr.mxu0 0.0
        %1635 = vmatpush2.msra.mxu0 0.0
        %1636 = vmatprep.subr.mxu0 0.0
        %1637 = vmatpush2.msra.mxu0 0.0
        %1638 = vmatprep.subr.mxu0 0.0
        %1639 = vmatpush2.msra.mxu0 0.0
        %1640 = vmatprep.mubr.f32.mxu0 0.0
        %1641 = vmatmul.mubr.f32.gmra.mxu0 %v1574
        %v1642 = vpop.f32.mrf.mxu0
        %v1643 = vadd.f32 0.0, %v1642
        %v1644 = vpop.f32.mrf.mxu0
        %1645 = vdwg.mxu0
        %v1646 = vsel %vm824, %v691, 0
        %1648 = vmatprep.subr.mxu0 0.0
        %1649 = vmatpush1.msra.mxu0 0.0
        %1650 = vmatprep.subr.mxu0 0.0
        %1651 = vmatpush1.msra.mxu0 0.0
        %1652 = vmatprep.subr.mxu0 0.0
        %1653 = vmatpush1.msra.mxu0 0.0
        %1654 = vmatprep.subr.mxu0 0.0
        %1655 = vmatpush1.msra.mxu0 0.0
        %1656 = vmatprep.subr.mxu0 0.0
        %1657 = vmatpush1.msra.mxu0 0.0
        %1658 = vmatprep.subr.mxu0 0.0
        %1659 = vmatpush1.msra.mxu0 0.0
        %1660 = vmatprep.subr.mxu0 0.0
        %1661 = vmatpush1.msra.mxu0 0.0
        %1662 = vmatprep.subr.mxu0 0.0
        %1663 = vmatpush1.msra.mxu0 0.0
        %1664 = vmatprep.subr.mxu0 0.0
        %1665 = vmatpush1.msra.mxu0 0.0
        %1666 = vmatprep.subr.mxu0 0.0
        %1667 = vmatpush1.msra.mxu0 0.0
        %1668 = vmatprep.subr.mxu0 0.0
        %1669 = vmatpush1.msra.mxu0 0.0
        %1670 = vmatprep.subr.mxu0 0.0
        %1671 = vmatpush1.msra.mxu0 0.0
        %1672 = vmatprep.subr.mxu0 0.0
        %1673 = vmatpush1.msra.mxu0 0.0
        %1674 = vmatprep.subr.mxu0 0.0
        %1675 = vmatpush1.msra.mxu0 0.0
        %1676 = vmatprep.subr.mxu0 0.0
        %1677 = vmatpush1.msra.mxu0 0.0
        %1678 = vmatprep.subr.mxu0 0.0
        %1679 = vmatpush1.msra.mxu0 %v1548
        %1680 = vmatprep.subr.mxu0 0.0
        %1681 = vmatpush2.msra.mxu0 0.0
        %1682 = vmatprep.subr.mxu0 0.0
        %1683 = vmatpush2.msra.mxu0 0.0
        %1684 = vmatprep.subr.mxu0 0.0
        %1685 = vmatpush2.msra.mxu0 0.0
        %1686 = vmatprep.subr.mxu0 0.0
        %1687 = vmatpush2.msra.mxu0 0.0
        %1688 = vmatprep.subr.mxu0 0.0
        %1689 = vmatpush2.msra.mxu0 0.0
        %1690 = vmatprep.subr.mxu0 0.0
        %1691 = vmatpush2.msra.mxu0 0.0
        %1692 = vmatprep.subr.mxu0 0.0
        %1693 = vmatpush2.msra.mxu0 0.0
        %1694 = vmatprep.subr.mxu0 0.0
        %1695 = vmatpush2.msra.mxu0 0.0
        %1696 = vmatprep.subr.mxu0 0.0
        %1697 = vmatpush2.msra.mxu0 0.0
        %1698 = vmatprep.subr.mxu0 0.0
        %1699 = vmatpush2.msra.mxu0 0.0
        %1700 = vmatprep.subr.mxu0 0.0
        %1701 = vmatpush2.msra.mxu0 0.0
        %1702 = vmatprep.subr.mxu0 0.0
        %1703 = vmatpush2.msra.mxu0 0.0
        %1704 = vmatprep.subr.mxu0 0.0
        %1705 = vmatpush2.msra.mxu0 0.0
        %1706 = vmatprep.subr.mxu0 0.0
        %1707 = vmatpush2.msra.mxu0 0.0
        %1708 = vmatprep.subr.mxu0 0.0
        %1709 = vmatpush2.msra.mxu0 0.0
        %1710 = vmatprep.subr.mxu0 0.0
        %1711 = vmatpush2.msra.mxu0 0.0
        %1712 = vmatprep.mubr.f32.mxu0 0.0
        %1713 = vmatmul.mubr.f32.gmra.mxu0 %v1646
        %v1714 = vpop.f32.mrf.mxu0
        %v1715 = vadd.f32 0.0, %v1714
        %v1716 = vpop.f32.mrf.mxu0
        %1717 = vdwg.mxu0
        %1719 = vrot.lane.b32.xlu0 %v1548, 64
        %v1720 = vpop.permute.xlu0 %1719
        %v1722 = vsel %vm1311, %v1643, %v1720
        %v1724 = vlaneseq
        %v1725 = vshrl.u32 %v1724, 7
        %v1726 = vsub.s32 0, %v1725
        %v1727 = vrot.slane %v1573, %v1726
        %v1730 = vsel %vm1311, %v1715, 0
        %1732 = vmatprep.subr.mxu0 0.0
        %1733 = vmatpush1.msra.mxu0 %v1564
        %1734 = vmatprep.subr.mxu0 0.0
        %1735 = vmatpush1.msra.mxu0 %v1563
        %1736 = vmatprep.subr.mxu0 0.0
        %1737 = vmatpush1.msra.mxu0 %v1562
        %1738 = vmatprep.subr.mxu0 0.0
        %1739 = vmatpush1.msra.mxu0 %v1561
        %1740 = vmatprep.subr.mxu0 0.0
        %1741 = vmatpush1.msra.mxu0 %v1560
        %1742 = vmatprep.subr.mxu0 0.0
        %1743 = vmatpush1.msra.mxu0 %v1559
        %1744 = vmatprep.subr.mxu0 0.0
        %1745 = vmatpush1.msra.mxu0 %v1558
        %1746 = vmatprep.subr.mxu0 0.0
        %1747 = vmatpush1.msra.mxu0 %v1557
        %1748 = vmatprep.subr.mxu0 0.0
        %1749 = vmatpush1.msra.mxu0 %v1556
        %1750 = vmatprep.subr.mxu0 0.0
        %1751 = vmatpush1.msra.mxu0 %v1555
        %1752 = vmatprep.subr.mxu0 0.0
        %1753 = vmatpush1.msra.mxu0 %v1554
        %1754 = vmatprep.subr.mxu0 0.0
        %1755 = vmatpush1.msra.mxu0 %v1553
        %1756 = vmatprep.subr.mxu0 0.0
        %1757 = vmatpush1.msra.mxu0 %v1552
        %1758 = vmatprep.subr.mxu0 0.0
        %1759 = vmatpush1.msra.mxu0 %v1551
        %1760 = vmatprep.subr.mxu0 0.0
        %1761 = vmatpush1.msra.mxu0 %v1550
        %1762 = vmatprep.subr.mxu0 0.0
        %1763 = vmatpush1.msra.mxu0 %v1549
        %1764 = vmatprep.subr.mxu0 0.0
        %1765 = vmatpush2.msra.mxu0 0.0
        %1766 = vmatprep.subr.mxu0 0.0
        %1767 = vmatpush2.msra.mxu0 0.0
        %1768 = vmatprep.subr.mxu0 0.0
        %1769 = vmatpush2.msra.mxu0 0.0
        %1770 = vmatprep.subr.mxu0 0.0
        %1771 = vmatpush2.msra.mxu0 0.0
        %1772 = vmatprep.subr.mxu0 0.0
        %1773 = vmatpush2.msra.mxu0 0.0
        %1774 = vmatprep.subr.mxu0 0.0
        %1775 = vmatpush2.msra.mxu0 0.0
        %1776 = vmatprep.subr.mxu0 0.0
        %1777 = vmatpush2.msra.mxu0 0.0
        %1778 = vmatprep.subr.mxu0 0.0
        %1779 = vmatpush2.msra.mxu0 0.0
        %1780 = vmatprep.subr.mxu0 0.0
        %1781 = vmatpush2.msra.mxu0 %v1572
        %1782 = vmatprep.subr.mxu0 0.0
        %1783 = vmatpush2.msra.mxu0 %v1571
        %1784 = vmatprep.subr.mxu0 0.0
        %1785 = vmatpush2.msra.mxu0 %v1570
        %1786 = vmatprep.subr.mxu0 0.0
        %1787 = vmatpush2.msra.mxu0 %v1569
        %1788 = vmatprep.subr.mxu0 0.0
        %1789 = vmatpush2.msra.mxu0 %v1568
        %1790 = vmatprep.subr.mxu0 0.0
        %1791 = vmatpush2.msra.mxu0 %v1567
        %1792 = vmatprep.subr.mxu0 0.0
        %1793 = vmatpush2.msra.mxu0 %v1566
        %1794 = vmatprep.subr.mxu0 0.0
        %1795 = vmatpush2.msra.mxu0 %v1565
        %1796 = vmatprep.mubr.f32.mxu0 %v1730
        %1797 = vmatmul.mubr.f32.gmra.mxu0 %v1722
        %v1798 = vpop.f32.mrf.mxu0
        %v1799 = vadd.f32 %v1727, %v1798
        %v1800 = vpop.f32.mrf.mxu0
        %1801 = vdwg.mxu0
        %v1802 = vtanh.pop %v1799
        %v1803 = vsel %vm824, %v948, 0
        %1805 = vmatprep.subr.mxu0 0.0
        %1806 = vmatpush1.msra.mxu0 0.0
        %1807 = vmatprep.subr.mxu0 0.0
        %1808 = vmatpush1.msra.mxu0 0.0
        %1809 = vmatprep.subr.mxu0 0.0
        %1810 = vmatpush1.msra.mxu0 0.0
        %1811 = vmatprep.subr.mxu0 0.0
        %1812 = vmatpush1.msra.mxu0 0.0
        %1813 = vmatprep.subr.mxu0 0.0
        %1814 = vmatpush1.msra.mxu0 0.0
        %1815 = vmatprep.subr.mxu0 0.0
        %1816 = vmatpush1.msra.mxu0 0.0
        %1817 = vmatprep.subr.mxu0 0.0
        %1818 = vmatpush1.msra.mxu0 0.0
        %1819 = vmatprep.subr.mxu0 0.0
        %1820 = vmatpush1.msra.mxu0 0.0
        %1821 = vmatprep.subr.mxu0 0.0
        %1822 = vmatpush1.msra.mxu0 0.0
        %1823 = vmatprep.subr.mxu0 0.0
        %1824 = vmatpush1.msra.mxu0 0.0
        %1825 = vmatprep.subr.mxu0 0.0
        %1826 = vmatpush1.msra.mxu0 0.0
        %1827 = vmatprep.subr.mxu0 0.0
        %1828 = vmatpush1.msra.mxu0 0.0
        %1829 = vmatprep.subr.mxu0 0.0
        %1830 = vmatpush1.msra.mxu0 0.0
        %1831 = vmatprep.subr.mxu0 0.0
        %1832 = vmatpush1.msra.mxu0 0.0
        %1833 = vmatprep.subr.mxu0 0.0
        %1834 = vmatpush1.msra.mxu0 0.0
        %1835 = vmatprep.subr.mxu0 0.0
        %1836 = vmatpush1.msra.mxu0 %v1802
        %1837 = vmatprep.subr.mxu0 0.0
        %1838 = vmatpush2.msra.mxu0 0.0
        %1839 = vmatprep.subr.mxu0 0.0
        %1840 = vmatpush2.msra.mxu0 0.0
        %1841 = vmatprep.subr.mxu0 0.0
        %1842 = vmatpush2.msra.mxu0 0.0
        %1843 = vmatprep.subr.mxu0 0.0
        %1844 = vmatpush2.msra.mxu0 0.0
        %1845 = vmatprep.subr.mxu0 0.0
        %1846 = vmatpush2.msra.mxu0 0.0
        %1847 = vmatprep.subr.mxu0 0.0
        %1848 = vmatpush2.msra.mxu0 0.0
        %1849 = vmatprep.subr.mxu0 0.0
        %1850 = vmatpush2.msra.mxu0 0.0
        %1851 = vmatprep.subr.mxu0 0.0
        %1852 = vmatpush2.msra.mxu0 0.0
        %1853 = vmatprep.subr.mxu0 0.0
        %1854 = vmatpush2.msra.mxu0 0.0
        %1855 = vmatprep.subr.mxu0 0.0
        %1856 = vmatpush2.msra.mxu0 0.0
        %1857 = vmatprep.subr.mxu0 0.0
        %1858 = vmatpush2.msra.mxu0 0.0
        %1859 = vmatprep.subr.mxu0 0.0
        %1860 = vmatpush2.msra.mxu0 0.0
        %1861 = vmatprep.subr.mxu0 0.0
        %1862 = vmatpush2.msra.mxu0 0.0
        %1863 = vmatprep.subr.mxu0 0.0
        %1864 = vmatpush2.msra.mxu0 0.0
        %1865 = vmatprep.subr.mxu0 0.0
        %1866 = vmatpush2.msra.mxu0 0.0
        %1867 = vmatprep.subr.mxu0 0.0
        %1868 = vmatpush2.msra.mxu0 0.0
        %1869 = vmatprep.mubr.f32.mxu0 0.0
        %1870 = vmatmul.mubr.f32.gmra.mxu0 %v1803
        %v1871 = vpop.f32.mrf.mxu0
        %v1872 = vadd.f32 0.0, %v1871
        %v1873 = vpop.f32.mrf.mxu0
        %1874 = vdwg.mxu0
        %v1875 = vsel %vm824, %v1037, 0
        %1877 = vmatprep.subr.mxu0 0.0
        %1878 = vmatpush1.msra.mxu0 0.0
        %1879 = vmatprep.subr.mxu0 0.0
        %1880 = vmatpush1.msra.mxu0 0.0
        %1881 = vmatprep.subr.mxu0 0.0
        %1882 = vmatpush1.msra.mxu0 0.0
        %1883 = vmatprep.subr.mxu0 0.0
        %1884 = vmatpush1.msra.mxu0 0.0
        %1885 = vmatprep.subr.mxu0 0.0
        %1886 = vmatpush1.msra.mxu0 0.0
        %1887 = vmatprep.subr.mxu0 0.0
        %1888 = vmatpush1.msra.mxu0 0.0
        %1889 = vmatprep.subr.mxu0 0.0
        %1890 = vmatpush1.msra.mxu0 0.0
        %1891 = vmatprep.subr.mxu0 0.0
        %1892 = vmatpush1.msra.mxu0 0.0
        %1893 = vmatprep.subr.mxu0 0.0
        %1894 = vmatpush1.msra.mxu0 0.0
        %1895 = vmatprep.subr.mxu0 0.0
        %1896 = vmatpush1.msra.mxu0 0.0
        %1897 = vmatprep.subr.mxu0 0.0
        %1898 = vmatpush1.msra.mxu0 0.0
        %1899 = vmatprep.subr.mxu0 0.0
        %1900 = vmatpush1.msra.mxu0 0.0
        %1901 = vmatprep.subr.mxu0 0.0
        %1902 = vmatpush1.msra.mxu0 0.0
        %1903 = vmatprep.subr.mxu0 0.0
        %1904 = vmatpush1.msra.mxu0 0.0
        %1905 = vmatprep.subr.mxu0 0.0
        %1906 = vmatpush1.msra.mxu0 0.0
        %1907 = vmatprep.subr.mxu0 0.0
        %1908 = vmatpush1.msra.mxu0 %v1802
        %1909 = vmatprep.subr.mxu0 0.0
        %1910 = vmatpush2.msra.mxu0 0.0
        %1911 = vmatprep.subr.mxu0 0.0
        %1912 = vmatpush2.msra.mxu0 0.0
        %1913 = vmatprep.subr.mxu0 0.0
        %1914 = vmatpush2.msra.mxu0 0.0
        %1915 = vmatprep.subr.mxu0 0.0
        %1916 = vmatpush2.msra.mxu0 0.0
        %1917 = vmatprep.subr.mxu0 0.0
        %1918 = vmatpush2.msra.mxu0 0.0
        %1919 = vmatprep.subr.mxu0 0.0
        %1920 = vmatpush2.msra.mxu0 0.0
        %1921 = vmatprep.subr.mxu0 0.0
        %1922 = vmatpush2.msra.mxu0 0.0
        %1923 = vmatprep.subr.mxu0 0.0
        %1924 = vmatpush2.msra.mxu0 0.0
        %1925 = vmatprep.subr.mxu0 0.0
        %1926 = vmatpush2.msra.mxu0 0.0
        %1927 = vmatprep.subr.mxu0 0.0
        %1928 = vmatpush2.msra.mxu0 0.0
        %1929 = vmatprep.subr.mxu0 0.0
        %1930 = vmatpush2.msra.mxu0 0.0
        %1931 = vmatprep.subr.mxu0 0.0
        %1932 = vmatpush2.msra.mxu0 0.0
        %1933 = vmatprep.subr.mxu0 0.0
        %1934 = vmatpush2.msra.mxu0 0.0
        %1935 = vmatprep.subr.mxu0 0.0
        %1936 = vmatpush2.msra.mxu0 0.0
        %1937 = vmatprep.subr.mxu0 0.0
        %1938 = vmatpush2.msra.mxu0 0.0
        %1939 = vmatprep.subr.mxu0 0.0
        %1940 = vmatpush2.msra.mxu0 0.0
        %1941 = vmatprep.mubr.f32.mxu0 0.0
        %1942 = vmatmul.mubr.f32.gmra.mxu0 %v1875
        %v1943 = vpop.f32.mrf.mxu0
        %v1944 = vadd.f32 0.0, %v1943
        %v1945 = vpop.f32.mrf.mxu0
        %1946 = vdwg.mxu0
        %v1947 = vmax.f32 %v1872, %v1944
        %v1948 = vld [vmem:[#allocation10] sm:$0xff]
        %v1949 = vld [vmem:[#allocation10 + $0x8] sm:$0xff]
        %v1950 = vld [vmem:[#allocation10 + $0x10] sm:$0xff]
        %v1951 = vld [vmem:[#allocation10 + $0x18] sm:$0xff]
        %v1952 = vld [vmem:[#allocation10 + $0x20] sm:$0xff]
        %v1953 = vld [vmem:[#allocation10 + $0x28] sm:$0xff]
        %v1954 = vld [vmem:[#allocation10 + $0x30] sm:$0xff]
        %v1955 = vld [vmem:[#allocation10 + $0x38] sm:$0xff]
        %v1956 = vld [vmem:[#allocation10 + $0x40] sm:$0xff]
        %v1957 = vld [vmem:[#allocation10 + $0x48] sm:$0xff]
        %v1958 = vld [vmem:[#allocation10 + $0x50] sm:$0xff]
        %v1959 = vld [vmem:[#allocation10 + $0x58] sm:$0xff]
        %v1960 = vld [vmem:[#allocation10 + $0x60] sm:$0xff]
        %v1961 = vld [vmem:[#allocation10 + $0x68] sm:$0xff]
        %v1962 = vld [vmem:[#allocation10 + $0x70] sm:$0xff]
        %v1963 = vld [vmem:[#allocation10 + $0x78] sm:$0xff]
        %v1964 = vld [vmem:[#allocation10 + $0x80] sm:$0xff]
        %v1965 = vld [vmem:[#allocation10 + $0x88] sm:$0xff]
        %v1966 = vld [vmem:[#allocation10 + $0x90] sm:$0xff]
        %v1967 = vld [vmem:[#allocation10 + $0x98] sm:$0xff]
        %v1968 = vld [vmem:[#allocation10 + $0xa0] sm:$0xff]
        %v1969 = vld [vmem:[#allocation10 + $0xa8] sm:$0xff]
        %v1970 = vld [vmem:[#allocation10 + $0xb0] sm:$0xff]
        %v1971 = vld [vmem:[#allocation10 + $0xb8] sm:$0xff]
        %v1972 = vld [vmem:[#allocation10 + $0xc0] sm:$0xff]
        %v1973 = vld [vmem:[#allocation10 + $0xc8] sm:$0xff]
        %v1974 = vld [vmem:[#allocation10 + $0xd0] sm:$0xff]
        %v1975 = vld [vmem:[#allocation10 + $0xd8] sm:$0xff]
        %v1976 = vld [vmem:[#allocation10 + $0xe0] sm:$0xff]
        %v1977 = vld [vmem:[#allocation10 + $0xe8] sm:$0xff]
        %v1978 = vld [vmem:[#allocation10 + $0xf0] sm:$0xff]
        %v1979 = vld [vmem:[#allocation10 + $0xf8] sm:$0xff]
        %v1980 = vld [vmem:[#allocation10 + $0x100] sm:$0xff]
        %v1981 = vld [vmem:[#allocation10 + $0x108] sm:$0xff]
        %v1982 = vld [vmem:[#allocation10 + $0x110] sm:$0xff]
        %v1983 = vld [vmem:[#allocation10 + $0x118] sm:$0xff]
        %v1984 = vld [vmem:[#allocation10 + $0x120] sm:$0xff]
        %v1985 = vld [vmem:[#allocation10 + $0x128] sm:$0xff]
        %v1986 = vld [vmem:[#allocation10 + $0x130] sm:$0xff]
        %v1987 = vld [vmem:[#allocation10 + $0x138] sm:$0xff]
        %v1988 = vld [vmem:[#allocation10 + $0x140] sm:$0xff]
        %v1989 = vld [vmem:[#allocation10 + $0x148] sm:$0xff]
        %v1990 = vld [vmem:[#allocation10 + $0x150] sm:$0xff]
        %v1991 = vld [vmem:[#allocation10 + $0x158] sm:$0xff]
        %v1992 = vld [vmem:[#allocation10 + $0x160] sm:$0xff]
        %v1993 = vld [vmem:[#allocation10 + $0x168] sm:$0xff]
        %v1994 = vld [vmem:[#allocation10 + $0x170] sm:$0xff]
        %v1995 = vld [vmem:[#allocation10 + $0x178] sm:$0xff]
        %v1996 = vld [vmem:[#allocation10 + $0x180] sm:$0xff]
        %v1997 = vld [vmem:[#allocation10 + $0x188] sm:$0xff]
        %v1998 = vld [vmem:[#allocation10 + $0x190] sm:$0xff]
        %v1999 = vld [vmem:[#allocation10 + $0x198] sm:$0xff]
        %v2000 = vld [vmem:[#allocation10 + $0x1a0] sm:$0xff]
        %v2001 = vld [vmem:[#allocation10 + $0x1a8] sm:$0xff]
        %v2002 = vld [vmem:[#allocation10 + $0x1b0] sm:$0xff]
        %v2003 = vld [vmem:[#allocation10 + $0x1b8] sm:$0xff]
        %v2004 = vld [vmem:[#allocation10 + $0x1c0] sm:$0xff]
        %v2005 = vld [vmem:[#allocation10 + $0x1c8] sm:$0xff]
        %v2006 = vld [vmem:[#allocation10 + $0x1d0] sm:$0xff]
        %v2007 = vld [vmem:[#allocation10 + $0x1d8] sm:$0xff]
        %v2008 = vld [vmem:[#allocation10 + $0x1e0] sm:$0xff]
        %v2009 = vld [vmem:[#allocation10 + $0x1e8] sm:$0xff]
        %v2010 = vld [vmem:[#allocation10 + $0x1f0] sm:$0xff]
        %v2011 = vld [vmem:[#allocation10 + $0x1f8] sm:$0xff]
        %v2012 = vld [vmem:[#allocation10 + $0x200] sm:$0xff]
        %v2013 = vld [vmem:[#allocation10 + $0x208] sm:$0xff]
        %v2014 = vld [vmem:[#allocation10 + $0x210] sm:$0xff]
        %v2015 = vld [vmem:[#allocation10 + $0x218] sm:$0xff]
        %v2016 = vld [vmem:[#allocation10 + $0x220] sm:$0xff]
        %v2017 = vld [vmem:[#allocation10 + $0x228] sm:$0xff]
        %v2018 = vld [vmem:[#allocation10 + $0x230] sm:$0xff]
        %v2019 = vld [vmem:[#allocation10 + $0x238] sm:$0xff]
        %v2020 = vld [vmem:[#allocation10 + $0x240] sm:$0xff]
        %v2021 = vld [vmem:[#allocation10 + $0x248] sm:$0xff]
        %v2022 = vld [vmem:[#allocation10 + $0x250] sm:$0xff]
        %v2023 = vld [vmem:[#allocation10 + $0x258] sm:$0xff]
        %v2024 = vld [vmem:[#allocation10 + $0x260] sm:$0xff]
        %v2025 = vld [vmem:[#allocation10 + $0x268] sm:$0xff]
        %v2026 = vld [vmem:[#allocation10 + $0x270] sm:$0xff]
        %v2027 = vld [vmem:[#allocation10 + $0x278] sm:$0xff]
        %v2028 = vld [vmem:[#allocation10 + $0x280] sm:$0xff]
        %v2029 = vld [vmem:[#allocation10 + $0x288] sm:$0xff]
        %v2030 = vld [vmem:[#allocation10 + $0x290] sm:$0xff]
        %v2031 = vld [vmem:[#allocation10 + $0x298] sm:$0xff]
        %v2032 = vld [vmem:[#allocation10 + $0x2a0] sm:$0xff]
        %v2033 = vld [vmem:[#allocation10 + $0x2a8] sm:$0xff]
        %v2034 = vld [vmem:[#allocation10 + $0x2b0] sm:$0xff]
        %v2035 = vld [vmem:[#allocation10 + $0x2b8] sm:$0xff]
        %v2036 = vld [vmem:[#allocation10 + $0x2c0] sm:$0xff]
        %v2037 = vld [vmem:[#allocation10 + $0x2c8] sm:$0xff]
        %v2038 = vld [vmem:[#allocation10 + $0x2d0] sm:$0xff]
        %v2039 = vld [vmem:[#allocation10 + $0x2d8] sm:$0xff]
        %v2040 = vld [vmem:[#allocation10 + $0x2e0] sm:$0xff]
        %v2041 = vld [vmem:[#allocation10 + $0x2e8] sm:$0xff]
        %v2042 = vld [vmem:[#allocation10 + $0x2f0] sm:$0xff]
        %v2043 = vld [vmem:[#allocation10 + $0x2f8] sm:$0xff]
        %v2044 = vld [vmem:[#allocation12] sm:$0x3]
        %vm2045 = vcmask 31744
        %v2046 = vsel %vm2045, %v577, 0
        %vm2048 = vcmask 1043456
        %v2050 = vsel %vm2048, %v1947, 0
        %2052 = vmatprep.subr.mxu0 0.0
        %2053 = vmatpush1.msra.mxu0 0.0
        %2054 = vmatprep.subr.mxu0 0.0
        %2055 = vmatpush1.msra.mxu0 0.0
        %2056 = vmatprep.subr.mxu0 0.0
        %2057 = vmatpush1.msra.mxu0 0.0
        %2058 = vmatprep.subr.mxu0 0.0
        %2059 = vmatpush1.msra.mxu0 0.0
        %2060 = vmatprep.subr.mxu0 0.0
        %2061 = vmatpush1.msra.mxu0 0.0
        %2062 = vmatprep.subr.mxu0 0.0
        %2063 = vmatpush1.msra.mxu0 0.0
        %2064 = vmatprep.subr.mxu0 0.0
        %2065 = vmatpush1.msra.mxu0 0.0
        %2066 = vmatprep.subr.mxu0 0.0
        %2067 = vmatpush1.msra.mxu0 0.0
        %2068 = vmatprep.subr.mxu0 0.0
        %2069 = vmatpush1.msra.mxu0 0.0
        %2070 = vmatprep.subr.mxu0 0.0
        %2071 = vmatpush1.msra.mxu0 0.0
        %2072 = vmatprep.subr.mxu0 0.0
        %2073 = vmatpush1.msra.mxu0 0.0
        %2074 = vmatprep.subr.mxu0 0.0
        %2075 = vmatpush1.msra.mxu0 0.0
        %2076 = vmatprep.subr.mxu0 0.0
        %2077 = vmatpush1.msra.mxu0 0.0
        %2078 = vmatprep.subr.mxu0 0.0
        %2079 = vmatpush1.msra.mxu0 0.0
        %2080 = vmatprep.subr.mxu0 0.0
        %2081 = vmatpush1.msra.mxu0 0.0
        %2082 = vmatprep.subr.mxu0 0.0
        %2083 = vmatpush1.msra.mxu0 %v2050
        %2084 = vmatprep.subr.mxu0 0.0
        %2085 = vmatpush2.msra.mxu0 0.0
        %2086 = vmatprep.subr.mxu0 0.0
        %2087 = vmatpush2.msra.mxu0 0.0
        %2088 = vmatprep.subr.mxu0 0.0
        %2089 = vmatpush2.msra.mxu0 0.0
        %2090 = vmatprep.subr.mxu0 0.0
        %2091 = vmatpush2.msra.mxu0 0.0
        %2092 = vmatprep.subr.mxu0 0.0
        %2093 = vmatpush2.msra.mxu0 0.0
        %2094 = vmatprep.subr.mxu0 0.0
        %2095 = vmatpush2.msra.mxu0 0.0
        %2096 = vmatprep.subr.mxu0 0.0
        %2097 = vmatpush2.msra.mxu0 0.0
        %2098 = vmatprep.subr.mxu0 0.0
        %2099 = vmatpush2.msra.mxu0 0.0
        %2100 = vmatprep.subr.mxu0 0.0
        %2101 = vmatpush2.msra.mxu0 0.0
        %2102 = vmatprep.subr.mxu0 0.0
        %2103 = vmatpush2.msra.mxu0 0.0
        %2104 = vmatprep.subr.mxu0 0.0
        %2105 = vmatpush2.msra.mxu0 0.0
        %2106 = vmatprep.subr.mxu0 0.0
        %2107 = vmatpush2.msra.mxu0 0.0
        %2108 = vmatprep.subr.mxu0 0.0
        %2109 = vmatpush2.msra.mxu0 0.0
        %2110 = vmatprep.subr.mxu0 0.0
        %2111 = vmatpush2.msra.mxu0 0.0
        %2112 = vmatprep.subr.mxu0 0.0
        %2113 = vmatpush2.msra.mxu0 0.0
        %2114 = vmatprep.subr.mxu0 0.0
        %2115 = vmatpush2.msra.mxu0 0.0
        %2116 = vmatprep.mubr.f32.mxu0 0.0
        %2117 = vmatmul.mubr.f32.gmra.mxu0 %v2046
        %v2118 = vpop.f32.mrf.mxu0
        %v2119 = vadd.f32 0.0, %v2118
        %v2120 = vpop.f32.mrf.mxu0
        %2121 = vdwg.mxu0
        %v2122 = vsel %vm2045, %v691, 0
        %2124 = vmatprep.subr.mxu0 0.0
        %2125 = vmatpush1.msra.mxu0 0.0
        %2126 = vmatprep.subr.mxu0 0.0
        %2127 = vmatpush1.msra.mxu0 0.0
        %2128 = vmatprep.subr.mxu0 0.0
        %2129 = vmatpush1.msra.mxu0 0.0
        %2130 = vmatprep.subr.mxu0 0.0
        %2131 = vmatpush1.msra.mxu0 0.0
        %2132 = vmatprep.subr.mxu0 0.0
        %2133 = vmatpush1.msra.mxu0 0.0
        %2134 = vmatprep.subr.mxu0 0.0
        %2135 = vmatpush1.msra.mxu0 0.0
        %2136 = vmatprep.subr.mxu0 0.0
        %2137 = vmatpush1.msra.mxu0 0.0
        %2138 = vmatprep.subr.mxu0 0.0
        %2139 = vmatpush1.msra.mxu0 0.0
        %2140 = vmatprep.subr.mxu0 0.0
        %2141 = vmatpush1.msra.mxu0 0.0
        %2142 = vmatprep.subr.mxu0 0.0
        %2143 = vmatpush1.msra.mxu0 0.0
        %2144 = vmatprep.subr.mxu0 0.0
        %2145 = vmatpush1.msra.mxu0 0.0
        %2146 = vmatprep.subr.mxu0 0.0
        %2147 = vmatpush1.msra.mxu0 0.0
        %2148 = vmatprep.subr.mxu0 0.0
        %2149 = vmatpush1.msra.mxu0 0.0
        %2150 = vmatprep.subr.mxu0 0.0
        %2151 = vmatpush1.msra.mxu0 0.0
        %2152 = vmatprep.subr.mxu0 0.0
        %2153 = vmatpush1.msra.mxu0 0.0
        %2154 = vmatprep.subr.mxu0 0.0
        %2155 = vmatpush1.msra.mxu0 %v2050
        %2156 = vmatprep.subr.mxu0 0.0
        %2157 = vmatpush2.msra.mxu0 0.0
        %2158 = vmatprep.subr.mxu0 0.0
        %2159 = vmatpush2.msra.mxu0 0.0
        %2160 = vmatprep.subr.mxu0 0.0
        %2161 = vmatpush2.msra.mxu0 0.0
        %2162 = vmatprep.subr.mxu0 0.0
        %2163 = vmatpush2.msra.mxu0 0.0
        %2164 = vmatprep.subr.mxu0 0.0
        %2165 = vmatpush2.msra.mxu0 0.0
        %2166 = vmatprep.subr.mxu0 0.0
        %2167 = vmatpush2.msra.mxu0 0.0
        %2168 = vmatprep.subr.mxu0 0.0
        %2169 = vmatpush2.msra.mxu0 0.0
        %2170 = vmatprep.subr.mxu0 0.0
        %2171 = vmatpush2.msra.mxu0 0.0
        %2172 = vmatprep.subr.mxu0 0.0
        %2173 = vmatpush2.msra.mxu0 0.0
        %2174 = vmatprep.subr.mxu0 0.0
        %2175 = vmatpush2.msra.mxu0 0.0
        %2176 = vmatprep.subr.mxu0 0.0
        %2177 = vmatpush2.msra.mxu0 0.0
        %2178 = vmatprep.subr.mxu0 0.0
        %2179 = vmatpush2.msra.mxu0 0.0
        %2180 = vmatprep.subr.mxu0 0.0
        %2181 = vmatpush2.msra.mxu0 0.0
        %2182 = vmatprep.subr.mxu0 0.0
        %2183 = vmatpush2.msra.mxu0 0.0
        %2184 = vmatprep.subr.mxu0 0.0
        %2185 = vmatpush2.msra.mxu0 0.0
        %2186 = vmatprep.subr.mxu0 0.0
        %2187 = vmatpush2.msra.mxu0 0.0
        %2188 = vmatprep.mubr.f32.mxu0 0.0
        %2189 = vmatmul.mubr.f32.gmra.mxu0 %v2122
        %v2190 = vpop.f32.mrf.mxu0
        %v2191 = vadd.f32 0.0, %v2190
        %v2192 = vpop.f32.mrf.mxu0
        %2193 = vdwg.mxu0
        %v2195 = vlaneseq
        %v2196 = vshrl.u32 %v2195, 7
        %v2197 = vsub.s32 0, %v2196
        %v2198 = vrot.slane %v2044, %v2197
        %v2199 = vlaneseq
        %v2200 = vshrl.u32 %v2199, 7
        %v2201 = vsub.s32 1, %v2200
        %v2202 = vrot.slane %v2044, %v2201
        %2205 = vmatprep.subr.mxu0 %v1979
        %2206 = vmatpush1.msra.mxu0 %v1978
        %2207 = vmatprep.subr.mxu0 %v1977
        %2208 = vmatpush1.msra.mxu0 %v1976
        %2209 = vmatprep.subr.mxu0 %v1975
        %2210 = vmatpush1.msra.mxu0 %v1974
        %2211 = vmatprep.subr.mxu0 %v1973
        %2212 = vmatpush1.msra.mxu0 %v1972
        %2213 = vmatprep.subr.mxu0 %v1971
        %2214 = vmatpush1.msra.mxu0 %v1970
        %2215 = vmatprep.subr.mxu0 %v1969
        %2216 = vmatpush1.msra.mxu0 %v1968
        %2217 = vmatprep.subr.mxu0 %v1967
        %2218 = vmatpush1.msra.mxu0 %v1966
        %2219 = vmatprep.subr.mxu0 %v1965
        %2220 = vmatpush1.msra.mxu0 %v1964
        %2221 = vmatprep.subr.mxu0 %v1963
        %2222 = vmatpush1.msra.mxu0 %v1962
        %2223 = vmatprep.subr.mxu0 %v1961
        %2224 = vmatpush1.msra.mxu0 %v1960
        %2225 = vmatprep.subr.mxu0 %v1959
        %2226 = vmatpush1.msra.mxu0 %v1958
        %2227 = vmatprep.subr.mxu0 %v1957
        %2228 = vmatpush1.msra.mxu0 %v1956
        %2229 = vmatprep.subr.mxu0 %v1955
        %2230 = vmatpush1.msra.mxu0 %v1954
        %2231 = vmatprep.subr.mxu0 %v1953
        %2232 = vmatpush1.msra.mxu0 %v1952
        %2233 = vmatprep.subr.mxu0 %v1951
        %2234 = vmatpush1.msra.mxu0 %v1950
        %2235 = vmatprep.subr.mxu0 %v1949
        %2236 = vmatpush1.msra.mxu0 %v1948
        %2237 = vmatprep.subr.mxu0 %v2011
        %2238 = vmatpush2.msra.mxu0 %v2010
        %2239 = vmatprep.subr.mxu0 %v2009
        %2240 = vmatpush2.msra.mxu0 %v2008
        %2241 = vmatprep.subr.mxu0 %v2007
        %2242 = vmatpush2.msra.mxu0 %v2006
        %2243 = vmatprep.subr.mxu0 %v2005
        %2244 = vmatpush2.msra.mxu0 %v2004
        %2245 = vmatprep.subr.mxu0 %v2003
        %2246 = vmatpush2.msra.mxu0 %v2002
        %2247 = vmatprep.subr.mxu0 %v2001
        %2248 = vmatpush2.msra.mxu0 %v2000
        %2249 = vmatprep.subr.mxu0 %v1999
        %2250 = vmatpush2.msra.mxu0 %v1998
        %2251 = vmatprep.subr.mxu0 %v1997
        %2252 = vmatpush2.msra.mxu0 %v1996
        %2253 = vmatprep.subr.mxu0 %v1995
        %2254 = vmatpush2.msra.mxu0 %v1994
        %2255 = vmatprep.subr.mxu0 %v1993
        %2256 = vmatpush2.msra.mxu0 %v1992
        %2257 = vmatprep.subr.mxu0 %v1991
        %2258 = vmatpush2.msra.mxu0 %v1990
        %2259 = vmatprep.subr.mxu0 %v1989
        %2260 = vmatpush2.msra.mxu0 %v1988
        %2261 = vmatprep.subr.mxu0 %v1987
        %2262 = vmatpush2.msra.mxu0 %v1986
        %2263 = vmatprep.subr.mxu0 %v1985
        %2264 = vmatpush2.msra.mxu0 %v1984
        %2265 = vmatprep.subr.mxu0 %v1983
        %2266 = vmatpush2.msra.mxu0 %v1982
        %2267 = vmatprep.subr.mxu0 %v1981
        %2268 = vmatpush2.msra.mxu0 %v1980
        %2269 = vmatprep.mubr.f32.mxu0 %v1947
        %2270 = vmatmul.mubr.f32.gmra.mxu0 %v2119
        %v2271 = vpop.f32.mrf.mxu0
        %v2272 = vadd.f32 %v2198, %v2271
        %v2273 = vpop.f32.mrf.mxu0
        %v2274 = vadd.f32 %v2202, %v2273
        %2275 = vdwg.mxu0
        %2276 = vmatprep.subr.mxu0 %v2043
        %2277 = vmatpush1.msra.mxu0 %v2042
        %2278 = vmatprep.subr.mxu0 %v2041
        %2279 = vmatpush1.msra.mxu0 %v2040
        %2280 = vmatprep.subr.mxu0 %v2039
        %2281 = vmatpush1.msra.mxu0 %v2038
        %2282 = vmatprep.subr.mxu0 %v2037
        %2283 = vmatpush1.msra.mxu0 %v2036
        %2284 = vmatprep.subr.mxu0 %v2035
        %2285 = vmatpush1.msra.mxu0 %v2034
        %2286 = vmatprep.subr.mxu0 %v2033
        %2287 = vmatpush1.msra.mxu0 %v2032
        %2288 = vmatprep.subr.mxu0 %v2031
        %2289 = vmatpush1.msra.mxu0 %v2030
        %2290 = vmatprep.subr.mxu0 %v2029
        %2291 = vmatpush1.msra.mxu0 %v2028
        %2292 = vmatprep.subr.mxu0 %v2027
        %2293 = vmatpush1.msra.mxu0 %v2026
        %2294 = vmatprep.subr.mxu0 %v2025
        %2295 = vmatpush1.msra.mxu0 %v2024
        %2296 = vmatprep.subr.mxu0 %v2023
        %2297 = vmatpush1.msra.mxu0 %v2022
        %2298 = vmatprep.subr.mxu0 %v2021
        %2299 = vmatpush1.msra.mxu0 %v2020
        %2300 = vmatprep.subr.mxu0 %v2019
        %2301 = vmatpush1.msra.mxu0 %v2018
        %2302 = vmatprep.subr.mxu0 %v2017
        %2303 = vmatpush1.msra.mxu0 %v2016
        %2304 = vmatprep.subr.mxu0 %v2015
        %2305 = vmatpush1.msra.mxu0 %v2014
        %2306 = vmatprep.subr.mxu0 %v2013
        %2307 = vmatpush1.msra.mxu0 %v2012
        %2308 = vmatprep.subr.mxu0 0.0
        %2309 = vmatpush2.msra.mxu0 0.0
        %2310 = vmatprep.subr.mxu0 0.0
        %2311 = vmatpush2.msra.mxu0 0.0
        %2312 = vmatprep.subr.mxu0 0.0
        %2313 = vmatpush2.msra.mxu0 0.0
        %2314 = vmatprep.subr.mxu0 0.0
        %2315 = vmatpush2.msra.mxu0 0.0
        %2316 = vmatprep.subr.mxu0 0.0
        %2317 = vmatpush2.msra.mxu0 0.0
        %2318 = vmatprep.subr.mxu0 0.0
        %2319 = vmatpush2.msra.mxu0 0.0
        %2320 = vmatprep.subr.mxu0 0.0
        %2321 = vmatpush2.msra.mxu0 0.0
        %2322 = vmatprep.subr.mxu0 0.0
        %2323 = vmatpush2.msra.mxu0 0.0
        %2324 = vmatprep.subr.mxu0 0.0
        %2325 = vmatpush2.msra.mxu0 0.0
        %2326 = vmatprep.subr.mxu0 0.0
        %2327 = vmatpush2.msra.mxu0 0.0
        %2328 = vmatprep.subr.mxu0 0.0
        %2329 = vmatpush2.msra.mxu0 0.0
        %2330 = vmatprep.subr.mxu0 0.0
        %2331 = vmatpush2.msra.mxu0 0.0
        %2332 = vmatprep.subr.mxu0 0.0
        %2333 = vmatpush2.msra.mxu0 0.0
        %2334 = vmatprep.subr.mxu0 0.0
        %2335 = vmatpush2.msra.mxu0 0.0
        %2336 = vmatprep.subr.mxu0 0.0
        %2337 = vmatpush2.msra.mxu0 0.0
        %2338 = vmatprep.subr.mxu0 0.0
        %2339 = vmatpush2.msra.mxu0 0.0
        %2340 = vmatprep.mubr.f32.mxu0 0.0
        %2341 = vmatmul.mubr.f32.gmra.mxu0 %v2191
        %v2342 = vpop.f32.mrf.mxu0
        %v2343 = vadd.f32 %v2272, %v2342
        %v2344 = vpop.f32.mrf.mxu0
        %v2345 = vadd.f32 %v2274, %v2344
        %2346 = vdwg.mxu0
        %v2347 = vtanh.pop %v2343
        %v2348 = vtanh.pop %v2345
        %v2349 = vsel %vm2045, %v948, 0
        %v2352 = vsel %vm2048, %v2347, 0
        %v2355 = vsel %vm2048, %v2348, 0
        %2357 = vmatprep.subr.mxu0 0.0
        %2358 = vmatpush1.msra.mxu0 0.0
        %2359 = vmatprep.subr.mxu0 0.0
        %2360 = vmatpush1.msra.mxu0 0.0
        %2361 = vmatprep.subr.mxu0 0.0
        %2362 = vmatpush1.msra.mxu0 0.0
        %2363 = vmatprep.subr.mxu0 0.0
        %2364 = vmatpush1.msra.mxu0 0.0
        %2365 = vmatprep.subr.mxu0 0.0
        %2366 = vmatpush1.msra.mxu0 0.0
        %2367 = vmatprep.subr.mxu0 0.0
        %2368 = vmatpush1.msra.mxu0 0.0
        %2369 = vmatprep.subr.mxu0 0.0
        %2370 = vmatpush1.msra.mxu0 0.0
        %2371 = vmatprep.subr.mxu0 0.0
        %2372 = vmatpush1.msra.mxu0 0.0
        %2373 = vmatprep.subr.mxu0 0.0
        %2374 = vmatpush1.msra.mxu0 0.0
        %2375 = vmatprep.subr.mxu0 0.0
        %2376 = vmatpush1.msra.mxu0 0.0
        %2377 = vmatprep.subr.mxu0 0.0
        %2378 = vmatpush1.msra.mxu0 0.0
        %2379 = vmatprep.subr.mxu0 0.0
        %2380 = vmatpush1.msra.mxu0 0.0
        %2381 = vmatprep.subr.mxu0 0.0
        %2382 = vmatpush1.msra.mxu0 0.0
        %2383 = vmatprep.subr.mxu0 0.0
        %2384 = vmatpush1.msra.mxu0 0.0
        %2385 = vmatprep.subr.mxu0 0.0
        %2386 = vmatpush1.msra.mxu0 0.0
        %2387 = vmatprep.subr.mxu0 %v2355
        %2388 = vmatpush1.msra.mxu0 %v2352
        %2389 = vmatprep.subr.mxu0 0.0
        %2390 = vmatpush2.msra.mxu0 0.0
        %2391 = vmatprep.subr.mxu0 0.0
        %2392 = vmatpush2.msra.mxu0 0.0
        %2393 = vmatprep.subr.mxu0 0.0
        %2394 = vmatpush2.msra.mxu0 0.0
        %2395 = vmatprep.subr.mxu0 0.0
        %2396 = vmatpush2.msra.mxu0 0.0
        %2397 = vmatprep.subr.mxu0 0.0
        %2398 = vmatpush2.msra.mxu0 0.0
        %2399 = vmatprep.subr.mxu0 0.0
        %2400 = vmatpush2.msra.mxu0 0.0
        %2401 = vmatprep.subr.mxu0 0.0
        %2402 = vmatpush2.msra.mxu0 0.0
        %2403 = vmatprep.subr.mxu0 0.0
        %2404 = vmatpush2.msra.mxu0 0.0
        %2405 = vmatprep.subr.mxu0 0.0
        %2406 = vmatpush2.msra.mxu0 0.0
        %2407 = vmatprep.subr.mxu0 0.0
        %2408 = vmatpush2.msra.mxu0 0.0
        %2409 = vmatprep.subr.mxu0 0.0
        %2410 = vmatpush2.msra.mxu0 0.0
        %2411 = vmatprep.subr.mxu0 0.0
        %2412 = vmatpush2.msra.mxu0 0.0
        %2413 = vmatprep.subr.mxu0 0.0
        %2414 = vmatpush2.msra.mxu0 0.0
        %2415 = vmatprep.subr.mxu0 0.0
        %2416 = vmatpush2.msra.mxu0 0.0
        %2417 = vmatprep.subr.mxu0 0.0
        %2418 = vmatpush2.msra.mxu0 0.0
        %2419 = vmatprep.subr.mxu0 0.0
        %2420 = vmatpush2.msra.mxu0 0.0
        %2421 = vmatprep.mubr.f32.mxu0 0.0
        %2422 = vmatmul.mubr.f32.gmra.mxu0 %v2349
        %v2423 = vpop.f32.mrf.mxu0
        %v2424 = vadd.f32 0.0, %v2423
        %v2425 = vpop.f32.mrf.mxu0
        %v2426 = vadd.f32 0.0, %v2425
        %2427 = vdwg.mxu0
        %v2428 = vsel %vm2045, %v1037, 0
        %2430 = vmatprep.subr.mxu0 0.0
        %2431 = vmatpush1.msra.mxu0 0.0
        %2432 = vmatprep.subr.mxu0 0.0
        %2433 = vmatpush1.msra.mxu0 0.0
        %2434 = vmatprep.subr.mxu0 0.0
        %2435 = vmatpush1.msra.mxu0 0.0
        %2436 = vmatprep.subr.mxu0 0.0
        %2437 = vmatpush1.msra.mxu0 0.0
        %2438 = vmatprep.subr.mxu0 0.0
        %2439 = vmatpush1.msra.mxu0 0.0
        %2440 = vmatprep.subr.mxu0 0.0
        %2441 = vmatpush1.msra.mxu0 0.0
        %2442 = vmatprep.subr.mxu0 0.0
        %2443 = vmatpush1.msra.mxu0 0.0
        %2444 = vmatprep.subr.mxu0 0.0
        %2445 = vmatpush1.msra.mxu0 0.0
        %2446 = vmatprep.subr.mxu0 0.0
        %2447 = vmatpush1.msra.mxu0 0.0
        %2448 = vmatprep.subr.mxu0 0.0
        %2449 = vmatpush1.msra.mxu0 0.0
        %2450 = vmatprep.subr.mxu0 0.0
        %2451 = vmatpush1.msra.mxu0 0.0
        %2452 = vmatprep.subr.mxu0 0.0
        %2453 = vmatpush1.msra.mxu0 0.0
        %2454 = vmatprep.subr.mxu0 0.0
        %2455 = vmatpush1.msra.mxu0 0.0
        %2456 = vmatprep.subr.mxu0 0.0
        %2457 = vmatpush1.msra.mxu0 0.0
        %2458 = vmatprep.subr.mxu0 0.0
        %2459 = vmatpush1.msra.mxu0 0.0
        %2460 = vmatprep.subr.mxu0 %v2355
        %2461 = vmatpush1.msra.mxu0 %v2352
        %2462 = vmatprep.subr.mxu0 0.0
        %2463 = vmatpush2.msra.mxu0 0.0
        %2464 = vmatprep.subr.mxu0 0.0
        %2465 = vmatpush2.msra.mxu0 0.0
        %2466 = vmatprep.subr.mxu0 0.0
        %2467 = vmatpush2.msra.mxu0 0.0
        %2468 = vmatprep.subr.mxu0 0.0
        %2469 = vmatpush2.msra.mxu0 0.0
        %2470 = vmatprep.subr.mxu0 0.0
        %2471 = vmatpush2.msra.mxu0 0.0
        %2472 = vmatprep.subr.mxu0 0.0
        %2473 = vmatpush2.msra.mxu0 0.0
        %2474 = vmatprep.subr.mxu0 0.0
        %2475 = vmatpush2.msra.mxu0 0.0
        %2476 = vmatprep.subr.mxu0 0.0
        %2477 = vmatpush2.msra.mxu0 0.0
        %2478 = vmatprep.subr.mxu0 0.0
        %2479 = vmatpush2.msra.mxu0 0.0
        %2480 = vmatprep.subr.mxu0 0.0
        %2481 = vmatpush2.msra.mxu0 0.0
        %2482 = vmatprep.subr.mxu0 0.0
        %2483 = vmatpush2.msra.mxu0 0.0
        %2484 = vmatprep.subr.mxu0 0.0
        %2485 = vmatpush2.msra.mxu0 0.0
        %2486 = vmatprep.subr.mxu0 0.0
        %2487 = vmatpush2.msra.mxu0 0.0
        %2488 = vmatprep.subr.mxu0 0.0
        %2489 = vmatpush2.msra.mxu0 0.0
        %2490 = vmatprep.subr.mxu0 0.0
        %2491 = vmatpush2.msra.mxu0 0.0
        %2492 = vmatprep.subr.mxu0 0.0
        %2493 = vmatpush2.msra.mxu0 0.0
        %2494 = vmatprep.mubr.f32.mxu0 0.0
        %2495 = vmatmul.mubr.f32.gmra.mxu0 %v2428
        %v2496 = vpop.f32.mrf.mxu0
        %v2497 = vadd.f32 0.0, %v2496
        %v2498 = vpop.f32.mrf.mxu0
        %v2499 = vadd.f32 0.0, %v2498
        %2500 = vdwg.mxu0
        %v2501 = vmax.f32 %v2424, %v2497
        %v2502 = vmax.f32 %v2426, %v2499
        %v2503 = vld [vmem:[#allocation13] sm:$0xff]
        %v2504 = vld [vmem:[#allocation13 + $0x8] sm:$0xff]
        %v2505 = vld [vmem:[#allocation13 + $0x10] sm:$0xff]
        %v2506 = vld [vmem:[#allocation13 + $0x18] sm:$0xff]
        %v2507 = vld [vmem:[#allocation13 + $0x20] sm:$0xff]
        %v2508 = vld [vmem:[#allocation13 + $0x28] sm:$0xff]
        %v2509 = vld [vmem:[#allocation13 + $0x30] sm:$0xff]
        %v2510 = vld [vmem:[#allocation13 + $0x38] sm:$0xff]
        %v2511 = vld [vmem:[#allocation13 + $0x40] sm:$0xff]
        %v2512 = vld [vmem:[#allocation13 + $0x48] sm:$0xff]
        %v2513 = vld [vmem:[#allocation13 + $0x50] sm:$0xff]
        %v2514 = vld [vmem:[#allocation13 + $0x58] sm:$0xff]
        %v2515 = vld [vmem:[#allocation13 + $0x60] sm:$0xff]
        %v2516 = vld [vmem:[#allocation13 + $0x68] sm:$0xff]
        %v2517 = vld [vmem:[#allocation13 + $0x70] sm:$0xff]
        %v2518 = vld [vmem:[#allocation13 + $0x78] sm:$0xff]
        %v2519 = vld [vmem:[#allocation13 + $0x80] sm:$0xff]
        %v2520 = vld [vmem:[#allocation13 + $0x88] sm:$0xff]
        %v2521 = vld [vmem:[#allocation13 + $0x90] sm:$0xff]
        %v2522 = vld [vmem:[#allocation13 + $0x98] sm:$0xff]
        %v2523 = vld [vmem:[#allocation13 + $0xa0] sm:$0xff]
        %v2524 = vld [vmem:[#allocation13 + $0xa8] sm:$0xff]
        %v2525 = vld [vmem:[#allocation13 + $0xb0] sm:$0xff]
        %v2526 = vld [vmem:[#allocation13 + $0xb8] sm:$0xff]
        %v2527 = vld [vmem:[#allocation13 + $0xc0] sm:$0xff]
        %v2528 = vld [vmem:[#allocation13 + $0xc8] sm:$0xff]
        %v2529 = vld [vmem:[#allocation13 + $0xd0] sm:$0xff]
        %v2530 = vld [vmem:[#allocation13 + $0xd8] sm:$0xff]
        %v2531 = vld [vmem:[#allocation13 + $0xe0] sm:$0xff]
        %v2532 = vld [vmem:[#allocation13 + $0xe8] sm:$0xff]
        %v2533 = vld [vmem:[#allocation13 + $0xf0] sm:$0xff]
        %v2534 = vld [vmem:[#allocation13 + $0xf8] sm:$0xff]
        %v2535 = vld [vmem:[#allocation13 + $0x100] sm:$0xff]
        %v2536 = vld [vmem:[#allocation13 + $0x108] sm:$0xff]
        %v2537 = vld [vmem:[#allocation13 + $0x110] sm:$0xff]
        %v2538 = vld [vmem:[#allocation13 + $0x118] sm:$0xff]
        %v2539 = vld [vmem:[#allocation13 + $0x120] sm:$0xff]
        %v2540 = vld [vmem:[#allocation13 + $0x128] sm:$0xff]
        %v2541 = vld [vmem:[#allocation13 + $0x130] sm:$0xff]
        %v2542 = vld [vmem:[#allocation13 + $0x138] sm:$0xff]
        %v2543 = vld [vmem:[#allocation13 + $0x140] sm:$0xff]
        %v2544 = vld [vmem:[#allocation13 + $0x148] sm:$0xff]
        %v2545 = vld [vmem:[#allocation13 + $0x150] sm:$0xff]
        %v2546 = vld [vmem:[#allocation13 + $0x158] sm:$0xff]
        %v2547 = vld [vmem:[#allocation13 + $0x160] sm:$0xff]
        %v2548 = vld [vmem:[#allocation13 + $0x168] sm:$0xff]
        %v2549 = vld [vmem:[#allocation13 + $0x170] sm:$0xff]
        %v2550 = vld [vmem:[#allocation13 + $0x178] sm:$0xff]
        %v2551 = vld [vmem:[#allocation13 + $0x180] sm:$0xff]
        %v2552 = vld [vmem:[#allocation13 + $0x188] sm:$0xff]
        %v2553 = vld [vmem:[#allocation13 + $0x190] sm:$0xff]
        %v2554 = vld [vmem:[#allocation13 + $0x198] sm:$0xff]
        %v2555 = vld [vmem:[#allocation13 + $0x1a0] sm:$0xff]
        %v2556 = vld [vmem:[#allocation13 + $0x1a8] sm:$0xff]
        %v2557 = vld [vmem:[#allocation13 + $0x1b0] sm:$0xff]
        %v2558 = vld [vmem:[#allocation13 + $0x1b8] sm:$0xff]
        %v2559 = vld [vmem:[#allocation13 + $0x1c0] sm:$0xff]
        %v2560 = vld [vmem:[#allocation13 + $0x1c8] sm:$0xff]
        %v2561 = vld [vmem:[#allocation13 + $0x1d0] sm:$0xff]
        %v2562 = vld [vmem:[#allocation13 + $0x1d8] sm:$0xff]
        %v2563 = vld [vmem:[#allocation13 + $0x1e0] sm:$0xff]
        %v2564 = vld [vmem:[#allocation13 + $0x1e8] sm:$0xff]
        %v2565 = vld [vmem:[#allocation13 + $0x1f0] sm:$0xff]
        %v2566 = vld [vmem:[#allocation13 + $0x1f8] sm:$0xff]
        %v2567 = vld [vmem:[#allocation13 + $0x200] sm:$0xff]
        %v2568 = vld [vmem:[#allocation13 + $0x208] sm:$0xff]
        %v2569 = vld [vmem:[#allocation13 + $0x210] sm:$0xff]
        %v2570 = vld [vmem:[#allocation13 + $0x218] sm:$0xff]
        %v2571 = vld [vmem:[#allocation13 + $0x220] sm:$0xff]
        %v2572 = vld [vmem:[#allocation13 + $0x228] sm:$0xff]
        %v2573 = vld [vmem:[#allocation13 + $0x230] sm:$0xff]
        %v2574 = vld [vmem:[#allocation13 + $0x238] sm:$0xff]
        %v2575 = vld [vmem:[#allocation13 + $0x240] sm:$0xff]
        %v2576 = vld [vmem:[#allocation13 + $0x248] sm:$0xff]
        %v2577 = vld [vmem:[#allocation13 + $0x250] sm:$0xff]
        %v2578 = vld [vmem:[#allocation13 + $0x258] sm:$0xff]
        %v2579 = vld [vmem:[#allocation13 + $0x260] sm:$0xff]
        %v2580 = vld [vmem:[#allocation13 + $0x268] sm:$0xff]
        %v2581 = vld [vmem:[#allocation13 + $0x270] sm:$0xff]
        %v2582 = vld [vmem:[#allocation13 + $0x278] sm:$0xff]
        %v2583 = vld [vmem:[#allocation13 + $0x280] sm:$0xff]
        %v2584 = vld [vmem:[#allocation13 + $0x288] sm:$0xff]
        %v2585 = vld [vmem:[#allocation13 + $0x290] sm:$0xff]
        %v2586 = vld [vmem:[#allocation13 + $0x298] sm:$0xff]
        %v2587 = vld [vmem:[#allocation13 + $0x2a0] sm:$0xff]
        %v2588 = vld [vmem:[#allocation13 + $0x2a8] sm:$0xff]
        %v2589 = vld [vmem:[#allocation13 + $0x2b0] sm:$0xff]
        %v2590 = vld [vmem:[#allocation13 + $0x2b8] sm:$0xff]
        %v2591 = vld [vmem:[#allocation13 + $0x2c0] sm:$0xff]
        %v2592 = vld [vmem:[#allocation13 + $0x2c8] sm:$0xff]
        %v2593 = vld [vmem:[#allocation13 + $0x2d0] sm:$0xff]
        %v2594 = vld [vmem:[#allocation13 + $0x2d8] sm:$0xff]
        %v2595 = vld [vmem:[#allocation13 + $0x2e0] sm:$0xff]
        %v2596 = vld [vmem:[#allocation13 + $0x2e8] sm:$0xff]
        %v2597 = vld [vmem:[#allocation13 + $0x2f0] sm:$0xff]
        %v2598 = vld [vmem:[#allocation13 + $0x2f8] sm:$0xff]
        %v2599 = vld [vmem:[#allocation13 + $0x300] sm:$0xff]
        %v2600 = vld [vmem:[#allocation13 + $0x308] sm:$0xff]
        %v2601 = vld [vmem:[#allocation13 + $0x310] sm:$0xff]
        %v2602 = vld [vmem:[#allocation13 + $0x318] sm:$0xff]
        %v2603 = vld [vmem:[#allocation13 + $0x320] sm:$0xff]
        %v2604 = vld [vmem:[#allocation13 + $0x328] sm:$0xff]
        %v2605 = vld [vmem:[#allocation13 + $0x330] sm:$0xff]
        %v2606 = vld [vmem:[#allocation13 + $0x338] sm:$0xff]
        %v2607 = vld [vmem:[#allocation13 + $0x340] sm:$0xff]
        %v2608 = vld [vmem:[#allocation13 + $0x348] sm:$0xff]
        %v2609 = vld [vmem:[#allocation13 + $0x350] sm:$0xff]
        %v2610 = vld [vmem:[#allocation13 + $0x358] sm:$0xff]
        %v2611 = vld [vmem:[#allocation13 + $0x360] sm:$0xff]
        %v2612 = vld [vmem:[#allocation13 + $0x368] sm:$0xff]
        %v2613 = vld [vmem:[#allocation13 + $0x370] sm:$0xff]
        %v2614 = vld [vmem:[#allocation13 + $0x378] sm:$0xff]
        %v2615 = vld [vmem:[#allocation13 + $0x380] sm:$0xff]
        %v2616 = vld [vmem:[#allocation13 + $0x388] sm:$0xff]
        %v2617 = vld [vmem:[#allocation13 + $0x390] sm:$0xff]
        %v2618 = vld [vmem:[#allocation13 + $0x398] sm:$0xff]
        %v2619 = vld [vmem:[#allocation13 + $0x3a0] sm:$0xff]
        %v2620 = vld [vmem:[#allocation13 + $0x3a8] sm:$0xff]
        %v2621 = vld [vmem:[#allocation13 + $0x3b0] sm:$0xff]
        %v2622 = vld [vmem:[#allocation13 + $0x3b8] sm:$0xff]
        %v2623 = vld [vmem:[#allocation13 + $0x3c0] sm:$0xff]
        %v2624 = vld [vmem:[#allocation13 + $0x3c8] sm:$0xff]
        %v2625 = vld [vmem:[#allocation13 + $0x3d0] sm:$0xff]
        %v2626 = vld [vmem:[#allocation13 + $0x3d8] sm:$0xff]
        %v2627 = vld [vmem:[#allocation13 + $0x3e0] sm:$0xff]
        %v2628 = vld [vmem:[#allocation13 + $0x3e8] sm:$0xff]
        %v2629 = vld [vmem:[#allocation13 + $0x3f0] sm:$0xff]
        %v2630 = vld [vmem:[#allocation13 + $0x3f8] sm:$0xff]
        %v2631 = vld [vmem:[#allocation13 + $0x400] sm:$0xff]
        %v2632 = vld [vmem:[#allocation13 + $0x408] sm:$0xff]
        %v2633 = vld [vmem:[#allocation13 + $0x410] sm:$0xff]
        %v2634 = vld [vmem:[#allocation13 + $0x418] sm:$0xff]
        %v2635 = vld [vmem:[#allocation13 + $0x420] sm:$0xff]
        %v2636 = vld [vmem:[#allocation13 + $0x428] sm:$0xff]
        %v2637 = vld [vmem:[#allocation13 + $0x430] sm:$0xff]
        %v2638 = vld [vmem:[#allocation13 + $0x438] sm:$0xff]
        %v2639 = vld [vmem:[#allocation13 + $0x440] sm:$0xff]
        %v2640 = vld [vmem:[#allocation13 + $0x448] sm:$0xff]
        %v2641 = vld [vmem:[#allocation13 + $0x450] sm:$0xff]
        %v2642 = vld [vmem:[#allocation13 + $0x458] sm:$0xff]
        %v2643 = vld [vmem:[#allocation13 + $0x460] sm:$0xff]
        %v2644 = vld [vmem:[#allocation13 + $0x468] sm:$0xff]
        %v2645 = vld [vmem:[#allocation13 + $0x470] sm:$0xff]
        %v2646 = vld [vmem:[#allocation13 + $0x478] sm:$0xff]
        %v2647 = vld [vmem:[#allocation13 + $0x480] sm:$0xff]
        %v2648 = vld [vmem:[#allocation13 + $0x488] sm:$0xff]
        %v2649 = vld [vmem:[#allocation13 + $0x490] sm:$0xff]
        %v2650 = vld [vmem:[#allocation13 + $0x498] sm:$0xff]
        %v2651 = vld [vmem:[#allocation13 + $0x4a0] sm:$0xff]
        %v2652 = vld [vmem:[#allocation13 + $0x4a8] sm:$0xff]
        %v2653 = vld [vmem:[#allocation13 + $0x4b0] sm:$0xff]
        %v2654 = vld [vmem:[#allocation13 + $0x4b8] sm:$0xff]
        %v2655 = vld [vmem:[#allocation13 + $0x4c0] sm:$0xff]
        %v2656 = vld [vmem:[#allocation13 + $0x4c8] sm:$0xff]
        %v2657 = vld [vmem:[#allocation13 + $0x4d0] sm:$0xff]
        %v2658 = vld [vmem:[#allocation13 + $0x4d8] sm:$0xff]
        %v2659 = vld [vmem:[#allocation13 + $0x4e0] sm:$0xff]
        %v2660 = vld [vmem:[#allocation13 + $0x4e8] sm:$0xff]
        %v2661 = vld [vmem:[#allocation13 + $0x4f0] sm:$0xff]
        %v2662 = vld [vmem:[#allocation13 + $0x4f8] sm:$0xff]
        %v2663 = vld [vmem:[#allocation13 + $0x500] sm:$0xff]
        %v2664 = vld [vmem:[#allocation13 + $0x508] sm:$0xff]
        %v2665 = vld [vmem:[#allocation13 + $0x510] sm:$0xff]
        %v2666 = vld [vmem:[#allocation13 + $0x518] sm:$0xff]
        %v2667 = vld [vmem:[#allocation13 + $0x520] sm:$0xff]
        %v2668 = vld [vmem:[#allocation13 + $0x528] sm:$0xff]
        %v2669 = vld [vmem:[#allocation13 + $0x530] sm:$0xff]
        %v2670 = vld [vmem:[#allocation13 + $0x538] sm:$0xff]
        %v2671 = vld [vmem:[#allocation13 + $0x540] sm:$0xff]
        %v2672 = vld [vmem:[#allocation13 + $0x548] sm:$0xff]
        %v2673 = vld [vmem:[#allocation13 + $0x550] sm:$0xff]
        %v2674 = vld [vmem:[#allocation13 + $0x558] sm:$0xff]
        %v2675 = vld [vmem:[#allocation13 + $0x560] sm:$0xff]
        %v2676 = vld [vmem:[#allocation13 + $0x568] sm:$0xff]
        %v2677 = vld [vmem:[#allocation13 + $0x570] sm:$0xff]
        %v2678 = vld [vmem:[#allocation13 + $0x578] sm:$0xff]
        %v2679 = vld [vmem:[#allocation13 + $0x580] sm:$0xff]
        %v2680 = vld [vmem:[#allocation13 + $0x588] sm:$0xff]
        %v2681 = vld [vmem:[#allocation13 + $0x590] sm:$0xff]
        %v2682 = vld [vmem:[#allocation13 + $0x598] sm:$0xff]
        %v2683 = vld [vmem:[#allocation13 + $0x5a0] sm:$0xff]
        %v2684 = vld [vmem:[#allocation13 + $0x5a8] sm:$0xff]
        %v2685 = vld [vmem:[#allocation13 + $0x5b0] sm:$0xff]
        %v2686 = vld [vmem:[#allocation13 + $0x5b8] sm:$0xff]
        %v2687 = vld [vmem:[#allocation13 + $0x5c0] sm:$0xff]
        %v2688 = vld [vmem:[#allocation13 + $0x5c8] sm:$0xff]
        %v2689 = vld [vmem:[#allocation13 + $0x5d0] sm:$0xff]
        %v2690 = vld [vmem:[#allocation13 + $0x5d8] sm:$0xff]
        %v2691 = vld [vmem:[#allocation13 + $0x5e0] sm:$0xff]
        %v2692 = vld [vmem:[#allocation13 + $0x5e8] sm:$0xff]
        %v2693 = vld [vmem:[#allocation13 + $0x5f0] sm:$0xff]
        %v2694 = vld [vmem:[#allocation13 + $0x5f8] sm:$0xff]
        %v2695 = vld [vmem:[#allocation13 + $0x600] sm:$0xff]
        %v2696 = vld [vmem:[#allocation13 + $0x608] sm:$0xff]
        %v2697 = vld [vmem:[#allocation13 + $0x610] sm:$0xff]
        %v2698 = vld [vmem:[#allocation13 + $0x618] sm:$0xff]
        %v2699 = vld [vmem:[#allocation13 + $0x620] sm:$0xff]
        %v2700 = vld [vmem:[#allocation13 + $0x628] sm:$0xff]
        %v2701 = vld [vmem:[#allocation13 + $0x630] sm:$0xff]
        %v2702 = vld [vmem:[#allocation13 + $0x638] sm:$0xff]
        %v2703 = vld [vmem:[#allocation13 + $0x640] sm:$0xff]
        %v2704 = vld [vmem:[#allocation13 + $0x648] sm:$0xff]
        %v2705 = vld [vmem:[#allocation13 + $0x650] sm:$0xff]
        %v2706 = vld [vmem:[#allocation13 + $0x658] sm:$0xff]
        %v2707 = vld [vmem:[#allocation13 + $0x660] sm:$0xff]
        %v2708 = vld [vmem:[#allocation13 + $0x668] sm:$0xff]
        %v2709 = vld [vmem:[#allocation13 + $0x670] sm:$0xff]
        %v2710 = vld [vmem:[#allocation13 + $0x678] sm:$0xff]
        %v2711 = vld [vmem:[#allocation13 + $0x680] sm:$0xff]
        %v2712 = vld [vmem:[#allocation13 + $0x688] sm:$0xff]
        %v2713 = vld [vmem:[#allocation13 + $0x690] sm:$0xff]
        %v2714 = vld [vmem:[#allocation13 + $0x698] sm:$0xff]
        %v2715 = vld [vmem:[#allocation13 + $0x6a0] sm:$0xff]
        %v2716 = vld [vmem:[#allocation13 + $0x6a8] sm:$0xff]
        %v2717 = vld [vmem:[#allocation13 + $0x6b0] sm:$0xff]
        %v2718 = vld [vmem:[#allocation13 + $0x6b8] sm:$0xff]
        %v2719 = vld [vmem:[#allocation13 + $0x6c0] sm:$0xff]
        %v2720 = vld [vmem:[#allocation13 + $0x6c8] sm:$0xff]
        %v2721 = vld [vmem:[#allocation13 + $0x6d0] sm:$0xff]
        %v2722 = vld [vmem:[#allocation13 + $0x6d8] sm:$0xff]
        %v2723 = vld [vmem:[#allocation13 + $0x6e0] sm:$0xff]
        %v2724 = vld [vmem:[#allocation13 + $0x6e8] sm:$0xff]
        %v2725 = vld [vmem:[#allocation13 + $0x6f0] sm:$0xff]
        %v2726 = vld [vmem:[#allocation13 + $0x6f8] sm:$0xff]
        %v2727 = vld [vmem:[#allocation13 + $0x700] sm:$0xff]
        %v2728 = vld [vmem:[#allocation13 + $0x708] sm:$0xff]
        %v2729 = vld [vmem:[#allocation13 + $0x710] sm:$0xff]
        %v2730 = vld [vmem:[#allocation13 + $0x718] sm:$0xff]
        %v2731 = vld [vmem:[#allocation13 + $0x720] sm:$0xff]
        %v2732 = vld [vmem:[#allocation13 + $0x728] sm:$0xff]
        %v2733 = vld [vmem:[#allocation13 + $0x730] sm:$0xff]
        %v2734 = vld [vmem:[#allocation13 + $0x738] sm:$0xff]
        %v2735 = vld [vmem:[#allocation13 + $0x740] sm:$0xff]
        %v2736 = vld [vmem:[#allocation13 + $0x748] sm:$0xff]
        %v2737 = vld [vmem:[#allocation13 + $0x750] sm:$0xff]
        %v2738 = vld [vmem:[#allocation13 + $0x758] sm:$0xff]
        %v2739 = vld [vmem:[#allocation13 + $0x760] sm:$0xff]
        %v2740 = vld [vmem:[#allocation13 + $0x768] sm:$0xff]
        %v2741 = vld [vmem:[#allocation13 + $0x770] sm:$0xff]
        %v2742 = vld [vmem:[#allocation13 + $0x778] sm:$0xff]
        %v2743 = vld [vmem:[#allocation13 + $0x780] sm:$0xff]
        %v2744 = vld [vmem:[#allocation13 + $0x788] sm:$0xff]
        %v2745 = vld [vmem:[#allocation13 + $0x790] sm:$0xff]
        %v2746 = vld [vmem:[#allocation13 + $0x798] sm:$0xff]
        %v2747 = vld [vmem:[#allocation13 + $0x7a0] sm:$0xff]
        %v2748 = vld [vmem:[#allocation13 + $0x7a8] sm:$0xff]
        %v2749 = vld [vmem:[#allocation13 + $0x7b0] sm:$0xff]
        %v2750 = vld [vmem:[#allocation13 + $0x7b8] sm:$0xff]
        %v2751 = vld [vmem:[#allocation13 + $0x7c0] sm:$0xff]
        %v2752 = vld [vmem:[#allocation13 + $0x7c8] sm:$0xff]
        %v2753 = vld [vmem:[#allocation13 + $0x7d0] sm:$0xff]
        %v2754 = vld [vmem:[#allocation13 + $0x7d8] sm:$0xff]
        %v2755 = vld [vmem:[#allocation13 + $0x7e0] sm:$0xff]
        %v2756 = vld [vmem:[#allocation13 + $0x7e8] sm:$0xff]
        %v2757 = vld [vmem:[#allocation13 + $0x7f0] sm:$0xff]
        %v2758 = vld [vmem:[#allocation13 + $0x7f8] sm:$0xff]
        %v2759 = vld [vmem:[#allocation13 + $0x800] sm:$0xff]
        %v2760 = vld [vmem:[#allocation13 + $0x808] sm:$0xff]
        %v2761 = vld [vmem:[#allocation13 + $0x810] sm:$0xff]
        %v2762 = vld [vmem:[#allocation13 + $0x818] sm:$0xff]
        %v2763 = vld [vmem:[#allocation13 + $0x820] sm:$0xff]
        %v2764 = vld [vmem:[#allocation13 + $0x828] sm:$0xff]
        %v2765 = vld [vmem:[#allocation13 + $0x830] sm:$0xff]
        %v2766 = vld [vmem:[#allocation13 + $0x838] sm:$0xff]
        %v2767 = vld [vmem:[#allocation13 + $0x840] sm:$0xff]
        %v2768 = vld [vmem:[#allocation13 + $0x848] sm:$0xff]
        %v2769 = vld [vmem:[#allocation13 + $0x850] sm:$0xff]
        %v2770 = vld [vmem:[#allocation13 + $0x858] sm:$0xff]
        %v2771 = vld [vmem:[#allocation13 + $0x860] sm:$0xff]
        %v2772 = vld [vmem:[#allocation13 + $0x868] sm:$0xff]
        %v2773 = vld [vmem:[#allocation13 + $0x870] sm:$0xff]
        %v2774 = vld [vmem:[#allocation13 + $0x878] sm:$0xff]
        %v2775 = vld [vmem:[#allocation13 + $0x880] sm:$0xff]
        %v2776 = vld [vmem:[#allocation13 + $0x888] sm:$0xff]
        %v2777 = vld [vmem:[#allocation13 + $0x890] sm:$0xff]
        %v2778 = vld [vmem:[#allocation13 + $0x898] sm:$0xff]
        %v2779 = vld [vmem:[#allocation13 + $0x8a0] sm:$0xff]
        %v2780 = vld [vmem:[#allocation13 + $0x8a8] sm:$0xff]
        %v2781 = vld [vmem:[#allocation13 + $0x8b0] sm:$0xff]
        %v2782 = vld [vmem:[#allocation13 + $0x8b8] sm:$0xff]
        %v2783 = vld [vmem:[#allocation13 + $0x8c0] sm:$0xff]
        %v2784 = vld [vmem:[#allocation13 + $0x8c8] sm:$0xff]
        %v2785 = vld [vmem:[#allocation13 + $0x8d0] sm:$0xff]
        %v2786 = vld [vmem:[#allocation13 + $0x8d8] sm:$0xff]
        %v2787 = vld [vmem:[#allocation13 + $0x8e0] sm:$0xff]
        %v2788 = vld [vmem:[#allocation13 + $0x8e8] sm:$0xff]
        %v2789 = vld [vmem:[#allocation13 + $0x8f0] sm:$0xff]
        %v2790 = vld [vmem:[#allocation13 + $0x8f8] sm:$0xff]
        %v2791 = vld [vmem:[#allocation13 + $0x900] sm:$0xff]
        %v2792 = vld [vmem:[#allocation13 + $0x908] sm:$0xff]
        %v2793 = vld [vmem:[#allocation13 + $0x910] sm:$0xff]
        %v2794 = vld [vmem:[#allocation13 + $0x918] sm:$0xff]
        %v2795 = vld [vmem:[#allocation13 + $0x920] sm:$0xff]
        %v2796 = vld [vmem:[#allocation13 + $0x928] sm:$0xff]
        %v2797 = vld [vmem:[#allocation13 + $0x930] sm:$0xff]
        %v2798 = vld [vmem:[#allocation13 + $0x938] sm:$0xff]
        %v2799 = vld [vmem:[#allocation13 + $0x940] sm:$0xff]
        %v2800 = vld [vmem:[#allocation13 + $0x948] sm:$0xff]
        %v2801 = vld [vmem:[#allocation13 + $0x950] sm:$0xff]
        %v2802 = vld [vmem:[#allocation13 + $0x958] sm:$0xff]
        %v2803 = vld [vmem:[#allocation13 + $0x960] sm:$0xff]
        %v2804 = vld [vmem:[#allocation13 + $0x968] sm:$0xff]
        %v2805 = vld [vmem:[#allocation13 + $0x970] sm:$0xff]
        %v2806 = vld [vmem:[#allocation13 + $0x978] sm:$0xff]
        %v2807 = vld [vmem:[#allocation13 + $0x980] sm:$0xff]
        %v2808 = vld [vmem:[#allocation13 + $0x988] sm:$0xff]
        %v2809 = vld [vmem:[#allocation13 + $0x990] sm:$0xff]
        %v2810 = vld [vmem:[#allocation13 + $0x998] sm:$0xff]
        %v2811 = vld [vmem:[#allocation13 + $0x9a0] sm:$0xff]
        %v2812 = vld [vmem:[#allocation13 + $0x9a8] sm:$0xff]
        %v2813 = vld [vmem:[#allocation13 + $0x9b0] sm:$0xff]
        %v2814 = vld [vmem:[#allocation13 + $0x9b8] sm:$0xff]
        %v2815 = vld [vmem:[#allocation13 + $0x9c0] sm:$0xff]
        %v2816 = vld [vmem:[#allocation13 + $0x9c8] sm:$0xff]
        %v2817 = vld [vmem:[#allocation13 + $0x9d0] sm:$0xff]
        %v2818 = vld [vmem:[#allocation13 + $0x9d8] sm:$0xff]
        %v2819 = vld [vmem:[#allocation13 + $0x9e0] sm:$0xff]
        %v2820 = vld [vmem:[#allocation13 + $0x9e8] sm:$0xff]
        %v2821 = vld [vmem:[#allocation13 + $0x9f0] sm:$0xff]
        %v2822 = vld [vmem:[#allocation13 + $0x9f8] sm:$0xff]
        %v2823 = vld [vmem:[#allocation13 + $0xa00] sm:$0xff]
        %v2824 = vld [vmem:[#allocation13 + $0xa08] sm:$0xff]
        %v2825 = vld [vmem:[#allocation13 + $0xa10] sm:$0xff]
        %v2826 = vld [vmem:[#allocation13 + $0xa18] sm:$0xff]
        %v2827 = vld [vmem:[#allocation13 + $0xa20] sm:$0xff]
        %v2828 = vld [vmem:[#allocation13 + $0xa28] sm:$0xff]
        %v2829 = vld [vmem:[#allocation13 + $0xa30] sm:$0xff]
        %v2830 = vld [vmem:[#allocation13 + $0xa38] sm:$0xff]
        %v2831 = vld [vmem:[#allocation13 + $0xa40] sm:$0xff]
        %v2832 = vld [vmem:[#allocation13 + $0xa48] sm:$0xff]
        %v2833 = vld [vmem:[#allocation13 + $0xa50] sm:$0xff]
        %v2834 = vld [vmem:[#allocation13 + $0xa58] sm:$0xff]
        %v2835 = vld [vmem:[#allocation13 + $0xa60] sm:$0xff]
        %v2836 = vld [vmem:[#allocation13 + $0xa68] sm:$0xff]
        %v2837 = vld [vmem:[#allocation13 + $0xa70] sm:$0xff]
        %v2838 = vld [vmem:[#allocation13 + $0xa78] sm:$0xff]
        %v2839 = vld [vmem:[#allocation13 + $0xa80] sm:$0xff]
        %v2840 = vld [vmem:[#allocation13 + $0xa88] sm:$0xff]
        %v2841 = vld [vmem:[#allocation13 + $0xa90] sm:$0xff]
        %v2842 = vld [vmem:[#allocation13 + $0xa98] sm:$0xff]
        %v2843 = vld [vmem:[#allocation13 + $0xaa0] sm:$0xff]
        %v2844 = vld [vmem:[#allocation13 + $0xaa8] sm:$0xff]
        %v2845 = vld [vmem:[#allocation13 + $0xab0] sm:$0xff]
        %v2846 = vld [vmem:[#allocation13 + $0xab8] sm:$0xff]
        %v2847 = vld [vmem:[#allocation13 + $0xac0] sm:$0xff]
        %v2848 = vld [vmem:[#allocation13 + $0xac8] sm:$0xff]
        %v2849 = vld [vmem:[#allocation13 + $0xad0] sm:$0xff]
        %v2850 = vld [vmem:[#allocation13 + $0xad8] sm:$0xff]
        %v2851 = vld [vmem:[#allocation13 + $0xae0] sm:$0xff]
        %v2852 = vld [vmem:[#allocation13 + $0xae8] sm:$0xff]
        %v2853 = vld [vmem:[#allocation13 + $0xaf0] sm:$0xff]
        %v2854 = vld [vmem:[#allocation13 + $0xaf8] sm:$0xff]
        %v2855 = vld [vmem:[#allocation13 + $0xb00] sm:$0xff]
        %v2856 = vld [vmem:[#allocation13 + $0xb08] sm:$0xff]
        %v2857 = vld [vmem:[#allocation13 + $0xb10] sm:$0xff]
        %v2858 = vld [vmem:[#allocation13 + $0xb18] sm:$0xff]
        %v2859 = vld [vmem:[#allocation13 + $0xb20] sm:$0xff]
        %v2860 = vld [vmem:[#allocation13 + $0xb28] sm:$0xff]
        %v2861 = vld [vmem:[#allocation13 + $0xb30] sm:$0xff]
        %v2862 = vld [vmem:[#allocation13 + $0xb38] sm:$0xff]
        %v2863 = vld [vmem:[#allocation13 + $0xb40] sm:$0xff]
        %v2864 = vld [vmem:[#allocation13 + $0xb48] sm:$0xff]
        %v2865 = vld [vmem:[#allocation13 + $0xb50] sm:$0xff]
        %v2866 = vld [vmem:[#allocation13 + $0xb58] sm:$0xff]
        %v2867 = vld [vmem:[#allocation13 + $0xb60] sm:$0xff]
        %v2868 = vld [vmem:[#allocation13 + $0xb68] sm:$0xff]
        %v2869 = vld [vmem:[#allocation13 + $0xb70] sm:$0xff]
        %v2870 = vld [vmem:[#allocation13 + $0xb78] sm:$0xff]
        %v2871 = vld [vmem:[#allocation13 + $0xb80] sm:$0xff]
        %v2872 = vld [vmem:[#allocation13 + $0xb88] sm:$0xff]
        %v2873 = vld [vmem:[#allocation13 + $0xb90] sm:$0xff]
        %v2874 = vld [vmem:[#allocation13 + $0xb98] sm:$0xff]
        %v2875 = vld [vmem:[#allocation13 + $0xba0] sm:$0xff]
        %v2876 = vld [vmem:[#allocation13 + $0xba8] sm:$0xff]
        %v2877 = vld [vmem:[#allocation13 + $0xbb0] sm:$0xff]
        %v2878 = vld [vmem:[#allocation13 + $0xbb8] sm:$0xff]
        %v2879 = vld [vmem:[#allocation13 + $0xbc0] sm:$0xff]
        %v2880 = vld [vmem:[#allocation13 + $0xbc8] sm:$0xff]
        %v2881 = vld [vmem:[#allocation13 + $0xbd0] sm:$0xff]
        %v2882 = vld [vmem:[#allocation13 + $0xbd8] sm:$0xff]
        %v2883 = vld [vmem:[#allocation13 + $0xbe0] sm:$0xff]
        %v2884 = vld [vmem:[#allocation13 + $0xbe8] sm:$0xff]
        %v2885 = vld [vmem:[#allocation13 + $0xbf0] sm:$0xff]
        %v2886 = vld [vmem:[#allocation13 + $0xbf8] sm:$0xff]
        %v2887 = vld [vmem:[#allocation15] sm:$0xf]
        %vm2888 = vcmask 15360
        %v2889 = vsel %vm2888, %v577, 0
        %vm2891 = vcmask 1041408
        %v2893 = vsel %vm2891, %v2501, 0
        %v2896 = vsel %vm2891, %v2502, 0
        %2898 = vmatprep.subr.mxu0 0.0
        %2899 = vmatpush1.msra.mxu0 0.0
        %2900 = vmatprep.subr.mxu0 0.0
        %2901 = vmatpush1.msra.mxu0 0.0
        %2902 = vmatprep.subr.mxu0 0.0
        %2903 = vmatpush1.msra.mxu0 0.0
        %2904 = vmatprep.subr.mxu0 0.0
        %2905 = vmatpush1.msra.mxu0 0.0
        %2906 = vmatprep.subr.mxu0 0.0
        %2907 = vmatpush1.msra.mxu0 0.0
        %2908 = vmatprep.subr.mxu0 0.0
        %2909 = vmatpush1.msra.mxu0 0.0
        %2910 = vmatprep.subr.mxu0 0.0
        %2911 = vmatpush1.msra.mxu0 0.0
        %2912 = vmatprep.subr.mxu0 0.0
        %2913 = vmatpush1.msra.mxu0 0.0
        %2914 = vmatprep.subr.mxu0 0.0
        %2915 = vmatpush1.msra.mxu0 0.0
        %2916 = vmatprep.subr.mxu0 0.0
        %2917 = vmatpush1.msra.mxu0 0.0
        %2918 = vmatprep.subr.mxu0 0.0
        %2919 = vmatpush1.msra.mxu0 0.0
        %2920 = vmatprep.subr.mxu0 0.0
        %2921 = vmatpush1.msra.mxu0 0.0
        %2922 = vmatprep.subr.mxu0 0.0
        %2923 = vmatpush1.msra.mxu0 0.0
        %2924 = vmatprep.subr.mxu0 0.0
        %2925 = vmatpush1.msra.mxu0 0.0
        %2926 = vmatprep.subr.mxu0 0.0
        %2927 = vmatpush1.msra.mxu0 0.0
        %2928 = vmatprep.subr.mxu0 %v2896
        %2929 = vmatpush1.msra.mxu0 %v2893
        %2930 = vmatprep.subr.mxu0 0.0
        %2931 = vmatpush2.msra.mxu0 0.0
        %2932 = vmatprep.subr.mxu0 0.0
        %2933 = vmatpush2.msra.mxu0 0.0
        %2934 = vmatprep.subr.mxu0 0.0
        %2935 = vmatpush2.msra.mxu0 0.0
        %2936 = vmatprep.subr.mxu0 0.0
        %2937 = vmatpush2.msra.mxu0 0.0
        %2938 = vmatprep.subr.mxu0 0.0
        %2939 = vmatpush2.msra.mxu0 0.0
        %2940 = vmatprep.subr.mxu0 0.0
        %2941 = vmatpush2.msra.mxu0 0.0
        %2942 = vmatprep.subr.mxu0 0.0
        %2943 = vmatpush2.msra.mxu0 0.0
        %2944 = vmatprep.subr.mxu0 0.0
        %2945 = vmatpush2.msra.mxu0 0.0
        %2946 = vmatprep.subr.mxu0 0.0
        %2947 = vmatpush2.msra.mxu0 0.0
        %2948 = vmatprep.subr.mxu0 0.0
        %2949 = vmatpush2.msra.mxu0 0.0
        %2950 = vmatprep.subr.mxu0 0.0
        %2951 = vmatpush2.msra.mxu0 0.0
        %2952 = vmatprep.subr.mxu0 0.0
        %2953 = vmatpush2.msra.mxu0 0.0
        %2954 = vmatprep.subr.mxu0 0.0
        %2955 = vmatpush2.msra.mxu0 0.0
        %2956 = vmatprep.subr.mxu0 0.0
        %2957 = vmatpush2.msra.mxu0 0.0
        %2958 = vmatprep.subr.mxu0 0.0
        %2959 = vmatpush2.msra.mxu0 0.0
        %2960 = vmatprep.subr.mxu0 0.0
        %2961 = vmatpush2.msra.mxu0 0.0
        %2962 = vmatprep.mubr.f32.mxu0 0.0
        %2963 = vmatmul.mubr.f32.gmra.mxu0 %v2889
        %v2964 = vpop.f32.mrf.mxu0
        %v2965 = vadd.f32 0.0, %v2964
        %v2966 = vpop.f32.mrf.mxu0
        %v2967 = vadd.f32 0.0, %v2966
        %2968 = vdwg.mxu0
        %v2969 = vsel %vm2888, %v691, 0
        %2971 = vmatprep.subr.mxu0 0.0
        %2972 = vmatpush1.msra.mxu0 0.0
        %2973 = vmatprep.subr.mxu0 0.0
        %2974 = vmatpush1.msra.mxu0 0.0
        %2975 = vmatprep.subr.mxu0 0.0
        %2976 = vmatpush1.msra.mxu0 0.0
        %2977 = vmatprep.subr.mxu0 0.0
        %2978 = vmatpush1.msra.mxu0 0.0
        %2979 = vmatprep.subr.mxu0 0.0
        %2980 = vmatpush1.msra.mxu0 0.0
        %2981 = vmatprep.subr.mxu0 0.0
        %2982 = vmatpush1.msra.mxu0 0.0
        %2983 = vmatprep.subr.mxu0 0.0
        %2984 = vmatpush1.msra.mxu0 0.0
        %2985 = vmatprep.subr.mxu0 0.0
        %2986 = vmatpush1.msra.mxu0 0.0
        %2987 = vmatprep.subr.mxu0 0.0
        %2988 = vmatpush1.msra.mxu0 0.0
        %2989 = vmatprep.subr.mxu0 0.0
        %2990 = vmatpush1.msra.mxu0 0.0
        %2991 = vmatprep.subr.mxu0 0.0
        %2992 = vmatpush1.msra.mxu0 0.0
        %2993 = vmatprep.subr.mxu0 0.0
        %2994 = vmatpush1.msra.mxu0 0.0
        %2995 = vmatprep.subr.mxu0 0.0
        %2996 = vmatpush1.msra.mxu0 0.0
        %2997 = vmatprep.subr.mxu0 0.0
        %2998 = vmatpush1.msra.mxu0 0.0
        %2999 = vmatprep.subr.mxu0 0.0
        %3000 = vmatpush1.msra.mxu0 0.0
        %3001 = vmatprep.subr.mxu0 %v2896
        %3002 = vmatpush1.msra.mxu0 %v2893
        %3003 = vmatprep.subr.mxu0 0.0
        %3004 = vmatpush2.msra.mxu0 0.0
        %3005 = vmatprep.subr.mxu0 0.0
        %3006 = vmatpush2.msra.mxu0 0.0
        %3007 = vmatprep.subr.mxu0 0.0
        %3008 = vmatpush2.msra.mxu0 0.0
        %3009 = vmatprep.subr.mxu0 0.0
        %3010 = vmatpush2.msra.mxu0 0.0
        %3011 = vmatprep.subr.mxu0 0.0
        %3012 = vmatpush2.msra.mxu0 0.0
        %3013 = vmatprep.subr.mxu0 0.0
        %3014 = vmatpush2.msra.mxu0 0.0
        %3015 = vmatprep.subr.mxu0 0.0
        %3016 = vmatpush2.msra.mxu0 0.0
        %3017 = vmatprep.subr.mxu0 0.0
        %3018 = vmatpush2.msra.mxu0 0.0
        %3019 = vmatprep.subr.mxu0 0.0
        %3020 = vmatpush2.msra.mxu0 0.0
        %3021 = vmatprep.subr.mxu0 0.0
        %3022 = vmatpush2.msra.mxu0 0.0
        %3023 = vmatprep.subr.mxu0 0.0
        %3024 = vmatpush2.msra.mxu0 0.0
        %3025 = vmatprep.subr.mxu0 0.0
        %3026 = vmatpush2.msra.mxu0 0.0
        %3027 = vmatprep.subr.mxu0 0.0
        %3028 = vmatpush2.msra.mxu0 0.0
        %3029 = vmatprep.subr.mxu0 0.0
        %3030 = vmatpush2.msra.mxu0 0.0
        %3031 = vmatprep.subr.mxu0 0.0
        %3032 = vmatpush2.msra.mxu0 0.0
        %3033 = vmatprep.subr.mxu0 0.0
        %3034 = vmatpush2.msra.mxu0 0.0
        %3035 = vmatprep.mubr.f32.mxu0 0.0
        %3036 = vmatmul.mubr.f32.gmra.mxu0 %v2969
        %v3037 = vpop.f32.mrf.mxu0
        %v3038 = vadd.f32 0.0, %v3037
        %v3039 = vpop.f32.mrf.mxu0
        %v3040 = vadd.f32 0.0, %v3039
        %3041 = vdwg.mxu0
        %v3043 = vlaneseq
        %v3044 = vshrl.u32 %v3043, 7
        %v3045 = vsub.s32 0, %v3044
        %v3046 = vrot.slane %v2887, %v3045
        %v3047 = vlaneseq
        %v3048 = vshrl.u32 %v3047, 7
        %v3049 = vsub.s32 1, %v3048
        %v3050 = vrot.slane %v2887, %v3049
        %v3051 = vlaneseq
        %v3052 = vshrl.u32 %v3051, 7
        %v3053 = vsub.s32 2, %v3052
        %v3054 = vrot.slane %v2887, %v3053
        %v3055 = vlaneseq
        %v3056 = vshrl.u32 %v3055, 7
        %v3057 = vsub.s32 3, %v3056
        %v3058 = vrot.slane %v2887, %v3057
        %3063 = vmatprep.subr.mxu0 %v2564
        %3064 = vmatpush1.msra.mxu0 %v2563
        %3065 = vmatprep.subr.mxu0 %v2560
        %3066 = vmatpush1.msra.mxu0 %v2559
        %3067 = vmatprep.subr.mxu0 %v2556
        %3068 = vmatpush1.msra.mxu0 %v2555
        %3069 = vmatprep.subr.mxu0 %v2552
        %3070 = vmatpush1.msra.mxu0 %v2551
        %3071 = vmatprep.subr.mxu0 %v2548
        %3072 = vmatpush1.msra.mxu0 %v2547
        %3073 = vmatprep.subr.mxu0 %v2544
        %3074 = vmatpush1.msra.mxu0 %v2543
        %3075 = vmatprep.subr.mxu0 %v2540
        %3076 = vmatpush1.msra.mxu0 %v2539
        %3077 = vmatprep.subr.mxu0 %v2536
        %3078 = vmatpush1.msra.mxu0 %v2535
        %3079 = vmatprep.subr.mxu0 %v2532
        %3080 = vmatpush1.msra.mxu0 %v2531
        %3081 = vmatprep.subr.mxu0 %v2528
        %3082 = vmatpush1.msra.mxu0 %v2527
        %3083 = vmatprep.subr.mxu0 %v2524
        %3084 = vmatpush1.msra.mxu0 %v2523
        %3085 = vmatprep.subr.mxu0 %v2520
        %3086 = vmatpush1.msra.mxu0 %v2519
        %3087 = vmatprep.subr.mxu0 %v2516
        %3088 = vmatpush1.msra.mxu0 %v2515
        %3089 = vmatprep.subr.mxu0 %v2512
        %3090 = vmatpush1.msra.mxu0 %v2511
        %3091 = vmatprep.subr.mxu0 %v2508
        %3092 = vmatpush1.msra.mxu0 %v2507
        %3093 = vmatprep.subr.mxu0 %v2504
        %3094 = vmatpush1.msra.mxu0 %v2503
        %3095 = vmatprep.subr.mxu0 %v2628
        %3096 = vmatpush2.msra.mxu0 %v2627
        %3097 = vmatprep.subr.mxu0 %v2624
        %3098 = vmatpush2.msra.mxu0 %v2623
        %3099 = vmatprep.subr.mxu0 %v2620
        %3100 = vmatpush2.msra.mxu0 %v2619
        %3101 = vmatprep.subr.mxu0 %v2616
        %3102 = vmatpush2.msra.mxu0 %v2615
        %3103 = vmatprep.subr.mxu0 %v2612
        %3104 = vmatpush2.msra.mxu0 %v2611
        %3105 = vmatprep.subr.mxu0 %v2608
        %3106 = vmatpush2.msra.mxu0 %v2607
        %3107 = vmatprep.subr.mxu0 %v2604
        %3108 = vmatpush2.msra.mxu0 %v2603
        %3109 = vmatprep.subr.mxu0 %v2600
        %3110 = vmatpush2.msra.mxu0 %v2599
        %3111 = vmatprep.subr.mxu0 %v2596
        %3112 = vmatpush2.msra.mxu0 %v2595
        %3113 = vmatprep.subr.mxu0 %v2592
        %3114 = vmatpush2.msra.mxu0 %v2591
        %3115 = vmatprep.subr.mxu0 %v2588
        %3116 = vmatpush2.msra.mxu0 %v2587
        %3117 = vmatprep.subr.mxu0 %v2584
        %3118 = vmatpush2.msra.mxu0 %v2583
        %3119 = vmatprep.subr.mxu0 %v2580
        %3120 = vmatpush2.msra.mxu0 %v2579
        %3121 = vmatprep.subr.mxu0 %v2576
        %3122 = vmatpush2.msra.mxu0 %v2575
        %3123 = vmatprep.subr.mxu0 %v2572
        %3124 = vmatpush2.msra.mxu0 %v2571
        %3125 = vmatprep.subr.mxu0 %v2568
        %3126 = vmatpush2.msra.mxu0 %v2567
        %3127 = vmatprep.mubr.f32.mxu0 %v2967
        %3128 = vmatmul.mubr.f32.gmra.mxu0 %v2965
        %v3129 = vpop.f32.mrf.mxu0
        %v3130 = vadd.f32 %v3046, %v3129
        %v3131 = vpop.f32.mrf.mxu0
        %v3132 = vadd.f32 %v3050, %v3131
        %3133 = vdwg.mxu0
        %3134 = vmatprep.subr.mxu0 %v2692
        %3135 = vmatpush1.msra.mxu0 %v2691
        %3136 = vmatprep.subr.mxu0 %v2688
        %3137 = vmatpush1.msra.mxu0 %v2687
        %3138 = vmatprep.subr.mxu0 %v2684
        %3139 = vmatpush1.msra.mxu0 %v2683
        %3140 = vmatprep.subr.mxu0 %v2680
        %3141 = vmatpush1.msra.mxu0 %v2679
        %3142 = vmatprep.subr.mxu0 %v2676
        %3143 = vmatpush1.msra.mxu0 %v2675
        %3144 = vmatprep.subr.mxu0 %v2672
        %3145 = vmatpush1.msra.mxu0 %v2671
        %3146 = vmatprep.subr.mxu0 %v2668
        %3147 = vmatpush1.msra.mxu0 %v2667
        %3148 = vmatprep.subr.mxu0 %v2664
        %3149 = vmatpush1.msra.mxu0 %v2663
        %3150 = vmatprep.subr.mxu0 %v2660
        %3151 = vmatpush1.msra.mxu0 %v2659
        %3152 = vmatprep.subr.mxu0 %v2656
        %3153 = vmatpush1.msra.mxu0 %v2655
        %3154 = vmatprep.subr.mxu0 %v2652
        %3155 = vmatpush1.msra.mxu0 %v2651
        %3156 = vmatprep.subr.mxu0 %v2648
        %3157 = vmatpush1.msra.mxu0 %v2647
        %3158 = vmatprep.subr.mxu0 %v2644
        %3159 = vmatpush1.msra.mxu0 %v2643
        %3160 = vmatprep.subr.mxu0 %v2640
        %3161 = vmatpush1.msra.mxu0 %v2639
        %3162 = vmatprep.subr.mxu0 %v2636
        %3163 = vmatpush1.msra.mxu0 %v2635
        %3164 = vmatprep.subr.mxu0 %v2632
        %3165 = vmatpush1.msra.mxu0 %v2631
        %3166 = vmatprep.subr.mxu0 %v2756
        %3167 = vmatpush2.msra.mxu0 %v2755
        %3168 = vmatprep.subr.mxu0 %v2752
        %3169 = vmatpush2.msra.mxu0 %v2751
        %3170 = vmatprep.subr.mxu0 %v2748
        %3171 = vmatpush2.msra.mxu0 %v2747
        %3172 = vmatprep.subr.mxu0 %v2744
        %3173 = vmatpush2.msra.mxu0 %v2743
        %3174 = vmatprep.subr.mxu0 %v2740
        %3175 = vmatpush2.msra.mxu0 %v2739
        %3176 = vmatprep.subr.mxu0 %v2736
        %3177 = vmatpush2.msra.mxu0 %v2735
        %3178 = vmatprep.subr.mxu0 %v2732
        %3179 = vmatpush2.msra.mxu0 %v2731
        %3180 = vmatprep.subr.mxu0 %v2728
        %3181 = vmatpush2.msra.mxu0 %v2727
        %3182 = vmatprep.subr.mxu0 %v2724
        %3183 = vmatpush2.msra.mxu0 %v2723
        %3184 = vmatprep.subr.mxu0 %v2720
        %3185 = vmatpush2.msra.mxu0 %v2719
        %3186 = vmatprep.subr.mxu0 %v2716
        %3187 = vmatpush2.msra.mxu0 %v2715
        %3188 = vmatprep.subr.mxu0 %v2712
        %3189 = vmatpush2.msra.mxu0 %v2711
        %3190 = vmatprep.subr.mxu0 %v2708
        %3191 = vmatpush2.msra.mxu0 %v2707
        %3192 = vmatprep.subr.mxu0 %v2704
        %3193 = vmatpush2.msra.mxu0 %v2703
        %3194 = vmatprep.subr.mxu0 %v2700
        %3195 = vmatpush2.msra.mxu0 %v2699
        %3196 = vmatprep.subr.mxu0 %v2696
        %3197 = vmatpush2.msra.mxu0 %v2695
        %3198 = vmatprep.mubr.f32.mxu0 %v2502
        %3199 = vmatmul.mubr.f32.gmra.mxu0 %v2501
        %v3200 = vpop.f32.mrf.mxu0
        %v3201 = vadd.f32 %v3130, %v3200
        %v3202 = vpop.f32.mrf.mxu0
        %v3203 = vadd.f32 %v3132, %v3202
        %3204 = vdwg.mxu0
        %3205 = vmatprep.subr.mxu0 %v2820
        %3206 = vmatpush1.msra.mxu0 %v2819
        %3207 = vmatprep.subr.mxu0 %v2816
        %3208 = vmatpush1.msra.mxu0 %v2815
        %3209 = vmatprep.subr.mxu0 %v2812
        %3210 = vmatpush1.msra.mxu0 %v2811
        %3211 = vmatprep.subr.mxu0 %v2808
        %3212 = vmatpush1.msra.mxu0 %v2807
        %3213 = vmatprep.subr.mxu0 %v2804
        %3214 = vmatpush1.msra.mxu0 %v2803
        %3215 = vmatprep.subr.mxu0 %v2800
        %3216 = vmatpush1.msra.mxu0 %v2799
        %3217 = vmatprep.subr.mxu0 %v2796
        %3218 = vmatpush1.msra.mxu0 %v2795
        %3219 = vmatprep.subr.mxu0 %v2792
        %3220 = vmatpush1.msra.mxu0 %v2791
        %3221 = vmatprep.subr.mxu0 %v2788
        %3222 = vmatpush1.msra.mxu0 %v2787
        %3223 = vmatprep.subr.mxu0 %v2784
        %3224 = vmatpush1.msra.mxu0 %v2783
        %3225 = vmatprep.subr.mxu0 %v2780
        %3226 = vmatpush1.msra.mxu0 %v2779
        %3227 = vmatprep.subr.mxu0 %v2776
        %3228 = vmatpush1.msra.mxu0 %v2775
        %3229 = vmatprep.subr.mxu0 %v2772
        %3230 = vmatpush1.msra.mxu0 %v2771
        %3231 = vmatprep.subr.mxu0 %v2768
        %3232 = vmatpush1.msra.mxu0 %v2767
        %3233 = vmatprep.subr.mxu0 %v2764
        %3234 = vmatpush1.msra.mxu0 %v2763
        %3235 = vmatprep.subr.mxu0 %v2760
        %3236 = vmatpush1.msra.mxu0 %v2759
        %3237 = vmatprep.subr.mxu0 %v2884
        %3238 = vmatpush2.msra.mxu0 %v2883
        %3239 = vmatprep.subr.mxu0 %v2880
        %3240 = vmatpush2.msra.mxu0 %v2879
        %3241 = vmatprep.subr.mxu0 %v2876
        %3242 = vmatpush2.msra.mxu0 %v2875
        %3243 = vmatprep.subr.mxu0 %v2872
        %3244 = vmatpush2.msra.mxu0 %v2871
        %3245 = vmatprep.subr.mxu0 %v2868
        %3246 = vmatpush2.msra.mxu0 %v2867
        %3247 = vmatprep.subr.mxu0 %v2864
        %3248 = vmatpush2.msra.mxu0 %v2863
        %3249 = vmatprep.subr.mxu0 %v2860
        %3250 = vmatpush2.msra.mxu0 %v2859
        %3251 = vmatprep.subr.mxu0 %v2856
        %3252 = vmatpush2.msra.mxu0 %v2855
        %3253 = vmatprep.subr.mxu0 %v2852
        %3254 = vmatpush2.msra.mxu0 %v2851
        %3255 = vmatprep.subr.mxu0 %v2848
        %3256 = vmatpush2.msra.mxu0 %v2847
        %3257 = vmatprep.subr.mxu0 %v2844
        %3258 = vmatpush2.msra.mxu0 %v2843
        %3259 = vmatprep.subr.mxu0 %v2840
        %3260 = vmatpush2.msra.mxu0 %v2839
        %3261 = vmatprep.subr.mxu0 %v2836
        %3262 = vmatpush2.msra.mxu0 %v2835
        %3263 = vmatprep.subr.mxu0 %v2832
        %3264 = vmatpush2.msra.mxu0 %v2831
        %3265 = vmatprep.subr.mxu0 %v2828
        %3266 = vmatpush2.msra.mxu0 %v2827
        %3267 = vmatprep.subr.mxu0 %v2824
        %3268 = vmatpush2.msra.mxu0 %v2823
        %3269 = vmatprep.mubr.f32.mxu0 %v3040
        %3270 = vmatmul.mubr.f32.gmra.mxu0 %v3038
        %v3271 = vpop.f32.mrf.mxu0
        %v3272 = vadd.f32 %v3201, %v3271
        %v3273 = vpop.f32.mrf.mxu0
        %v3274 = vadd.f32 %v3203, %v3273
        %3275 = vdwg.mxu0
        %3276 = vmatprep.subr.mxu0 %v2566
        %3277 = vmatpush1.msra.mxu0 %v2565
        %3278 = vmatprep.subr.mxu0 %v2562
        %3279 = vmatpush1.msra.mxu0 %v2561
        %3280 = vmatprep.subr.mxu0 %v2558
        %3281 = vmatpush1.msra.mxu0 %v2557
        %3282 = vmatprep.subr.mxu0 %v2554
        %3283 = vmatpush1.msra.mxu0 %v2553
        %3284 = vmatprep.subr.mxu0 %v2550
        %3285 = vmatpush1.msra.mxu0 %v2549
        %3286 = vmatprep.subr.mxu0 %v2546
        %3287 = vmatpush1.msra.mxu0 %v2545
        %3288 = vmatprep.subr.mxu0 %v2542
        %3289 = vmatpush1.msra.mxu0 %v2541
        %3290 = vmatprep.subr.mxu0 %v2538
        %3291 = vmatpush1.msra.mxu0 %v2537
        %3292 = vmatprep.subr.mxu0 %v2534
        %3293 = vmatpush1.msra.mxu0 %v2533
        %3294 = vmatprep.subr.mxu0 %v2530
        %3295 = vmatpush1.msra.mxu0 %v2529
        %3296 = vmatprep.subr.mxu0 %v2526
        %3297 = vmatpush1.msra.mxu0 %v2525
        %3298 = vmatprep.subr.mxu0 %v2522
        %3299 = vmatpush1.msra.mxu0 %v2521
        %3300 = vmatprep.subr.mxu0 %v2518
        %3301 = vmatpush1.msra.mxu0 %v2517
        %3302 = vmatprep.subr.mxu0 %v2514
        %3303 = vmatpush1.msra.mxu0 %v2513
        %3304 = vmatprep.subr.mxu0 %v2510
        %3305 = vmatpush1.msra.mxu0 %v2509
        %3306 = vmatprep.subr.mxu0 %v2506
        %3307 = vmatpush1.msra.mxu0 %v2505
        %3308 = vmatprep.subr.mxu0 %v2630
        %3309 = vmatpush2.msra.mxu0 %v2629
        %3310 = vmatprep.subr.mxu0 %v2626
        %3311 = vmatpush2.msra.mxu0 %v2625
        %3312 = vmatprep.subr.mxu0 %v2622
        %3313 = vmatpush2.msra.mxu0 %v2621
        %3314 = vmatprep.subr.mxu0 %v2618
        %3315 = vmatpush2.msra.mxu0 %v2617
        %3316 = vmatprep.subr.mxu0 %v2614
        %3317 = vmatpush2.msra.mxu0 %v2613
        %3318 = vmatprep.subr.mxu0 %v2610
        %3319 = vmatpush2.msra.mxu0 %v2609
        %3320 = vmatprep.subr.mxu0 %v2606
        %3321 = vmatpush2.msra.mxu0 %v2605
        %3322 = vmatprep.subr.mxu0 %v2602
        %3323 = vmatpush2.msra.mxu0 %v2601
        %3324 = vmatprep.subr.mxu0 %v2598
        %3325 = vmatpush2.msra.mxu0 %v2597
        %3326 = vmatprep.subr.mxu0 %v2594
        %3327 = vmatpush2.msra.mxu0 %v2593
        %3328 = vmatprep.subr.mxu0 %v2590
        %3329 = vmatpush2.msra.mxu0 %v2589
        %3330 = vmatprep.subr.mxu0 %v2586
        %3331 = vmatpush2.msra.mxu0 %v2585
        %3332 = vmatprep.subr.mxu0 %v2582
        %3333 = vmatpush2.msra.mxu0 %v2581
        %3334 = vmatprep.subr.mxu0 %v2578
        %3335 = vmatpush2.msra.mxu0 %v2577
        %3336 = vmatprep.subr.mxu0 %v2574
        %3337 = vmatpush2.msra.mxu0 %v2573
        %3338 = vmatprep.subr.mxu0 %v2570
        %3339 = vmatpush2.msra.mxu0 %v2569
        %3340 = vmatprep.mubr.f32.mxu0 %v2967
        %3341 = vmatmul.mubr.f32.gmra.mxu0 %v2965
        %v3342 = vpop.f32.mrf.mxu0
        %v3343 = vadd.f32 %v3054, %v3342
        %v3344 = vpop.f32.mrf.mxu0
        %v3345 = vadd.f32 %v3058, %v3344
        %3346 = vdwg.mxu0
        %3347 = vmatprep.subr.mxu0 %v2694
        %3348 = vmatpush1.msra.mxu0 %v2693
        %3349 = vmatprep.subr.mxu0 %v2690
        %3350 = vmatpush1.msra.mxu0 %v2689
        %3351 = vmatprep.subr.mxu0 %v2686
        %3352 = vmatpush1.msra.mxu0 %v2685
        %3353 = vmatprep.subr.mxu0 %v2682
        %3354 = vmatpush1.msra.mxu0 %v2681
        %3355 = vmatprep.subr.mxu0 %v2678
        %3356 = vmatpush1.msra.mxu0 %v2677
        %3357 = vmatprep.subr.mxu0 %v2674
        %3358 = vmatpush1.msra.mxu0 %v2673
        %3359 = vmatprep.subr.mxu0 %v2670
        %3360 = vmatpush1.msra.mxu0 %v2669
        %3361 = vmatprep.subr.mxu0 %v2666
        %3362 = vmatpush1.msra.mxu0 %v2665
        %3363 = vmatprep.subr.mxu0 %v2662
        %3364 = vmatpush1.msra.mxu0 %v2661
        %3365 = vmatprep.subr.mxu0 %v2658
        %3366 = vmatpush1.msra.mxu0 %v2657
        %3367 = vmatprep.subr.mxu0 %v2654
        %3368 = vmatpush1.msra.mxu0 %v2653
        %3369 = vmatprep.subr.mxu0 %v2650
        %3370 = vmatpush1.msra.mxu0 %v2649
        %3371 = vmatprep.subr.mxu0 %v2646
        %3372 = vmatpush1.msra.mxu0 %v2645
        %3373 = vmatprep.subr.mxu0 %v2642
        %3374 = vmatpush1.msra.mxu0 %v2641
        %3375 = vmatprep.subr.mxu0 %v2638
        %3376 = vmatpush1.msra.mxu0 %v2637
        %3377 = vmatprep.subr.mxu0 %v2634
        %3378 = vmatpush1.msra.mxu0 %v2633
        %3379 = vmatprep.subr.mxu0 %v2758
        %3380 = vmatpush2.msra.mxu0 %v2757
        %3381 = vmatprep.subr.mxu0 %v2754
        %3382 = vmatpush2.msra.mxu0 %v2753
        %3383 = vmatprep.subr.mxu0 %v2750
        %3384 = vmatpush2.msra.mxu0 %v2749
        %3385 = vmatprep.subr.mxu0 %v2746
        %3386 = vmatpush2.msra.mxu0 %v2745
        %3387 = vmatprep.subr.mxu0 %v2742
        %3388 = vmatpush2.msra.mxu0 %v2741
        %3389 = vmatprep.subr.mxu0 %v2738
        %3390 = vmatpush2.msra.mxu0 %v2737
        %3391 = vmatprep.subr.mxu0 %v2734
        %3392 = vmatpush2.msra.mxu0 %v2733
        %3393 = vmatprep.subr.mxu0 %v2730
        %3394 = vmatpush2.msra.mxu0 %v2729
        %3395 = vmatprep.subr.mxu0 %v2726
        %3396 = vmatpush2.msra.mxu0 %v2725
        %3397 = vmatprep.subr.mxu0 %v2722
        %3398 = vmatpush2.msra.mxu0 %v2721
        %3399 = vmatprep.subr.mxu0 %v2718
        %3400 = vmatpush2.msra.mxu0 %v2717
        %3401 = vmatprep.subr.mxu0 %v2714
        %3402 = vmatpush2.msra.mxu0 %v2713
        %3403 = vmatprep.subr.mxu0 %v2710
        %3404 = vmatpush2.msra.mxu0 %v2709
        %3405 = vmatprep.subr.mxu0 %v2706
        %3406 = vmatpush2.msra.mxu0 %v2705
        %3407 = vmatprep.subr.mxu0 %v2702
        %3408 = vmatpush2.msra.mxu0 %v2701
        %3409 = vmatprep.subr.mxu0 %v2698
        %3410 = vmatpush2.msra.mxu0 %v2697
        %3411 = vmatprep.mubr.f32.mxu0 %v2502
        %3412 = vmatmul.mubr.f32.gmra.mxu0 %v2501
        %v3413 = vpop.f32.mrf.mxu0
        %v3414 = vadd.f32 %v3343, %v3413
        %v3415 = vpop.f32.mrf.mxu0
        %v3416 = vadd.f32 %v3345, %v3415
        %3417 = vdwg.mxu0
        %3418 = vmatprep.subr.mxu0 %v2822
        %3419 = vmatpush1.msra.mxu0 %v2821
        %3420 = vmatprep.subr.mxu0 %v2818
        %3421 = vmatpush1.msra.mxu0 %v2817
        %3422 = vmatprep.subr.mxu0 %v2814
        %3423 = vmatpush1.msra.mxu0 %v2813
        %3424 = vmatprep.subr.mxu0 %v2810
        %3425 = vmatpush1.msra.mxu0 %v2809
        %3426 = vmatprep.subr.mxu0 %v2806
        %3427 = vmatpush1.msra.mxu0 %v2805
        %3428 = vmatprep.subr.mxu0 %v2802
        %3429 = vmatpush1.msra.mxu0 %v2801
        %3430 = vmatprep.subr.mxu0 %v2798
        %3431 = vmatpush1.msra.mxu0 %v2797
        %3432 = vmatprep.subr.mxu0 %v2794
        %3433 = vmatpush1.msra.mxu0 %v2793
        %3434 = vmatprep.subr.mxu0 %v2790
        %3435 = vmatpush1.msra.mxu0 %v2789
        %3436 = vmatprep.subr.mxu0 %v2786
        %3437 = vmatpush1.msra.mxu0 %v2785
        %3438 = vmatprep.subr.mxu0 %v2782
        %3439 = vmatpush1.msra.mxu0 %v2781
        %3440 = vmatprep.subr.mxu0 %v2778
        %3441 = vmatpush1.msra.mxu0 %v2777
        %3442 = vmatprep.subr.mxu0 %v2774
        %3443 = vmatpush1.msra.mxu0 %v2773
        %3444 = vmatprep.subr.mxu0 %v2770
        %3445 = vmatpush1.msra.mxu0 %v2769
        %3446 = vmatprep.subr.mxu0 %v2766
        %3447 = vmatpush1.msra.mxu0 %v2765
        %3448 = vmatprep.subr.mxu0 %v2762
        %3449 = vmatpush1.msra.mxu0 %v2761
        %3450 = vmatprep.subr.mxu0 %v2886
        %3451 = vmatpush2.msra.mxu0 %v2885
        %3452 = vmatprep.subr.mxu0 %v2882
        %3453 = vmatpush2.msra.mxu0 %v2881
        %3454 = vmatprep.subr.mxu0 %v2878
        %3455 = vmatpush2.msra.mxu0 %v2877
        %3456 = vmatprep.subr.mxu0 %v2874
        %3457 = vmatpush2.msra.mxu0 %v2873
        %3458 = vmatprep.subr.mxu0 %v2870
        %3459 = vmatpush2.msra.mxu0 %v2869
        %3460 = vmatprep.subr.mxu0 %v2866
        %3461 = vmatpush2.msra.mxu0 %v2865
        %3462 = vmatprep.subr.mxu0 %v2862
        %3463 = vmatpush2.msra.mxu0 %v2861
        %3464 = vmatprep.subr.mxu0 %v2858
        %3465 = vmatpush2.msra.mxu0 %v2857
        %3466 = vmatprep.subr.mxu0 %v2854
        %3467 = vmatpush2.msra.mxu0 %v2853
        %3468 = vmatprep.subr.mxu0 %v2850
        %3469 = vmatpush2.msra.mxu0 %v2849
        %3470 = vmatprep.subr.mxu0 %v2846
        %3471 = vmatpush2.msra.mxu0 %v2845
        %3472 = vmatprep.subr.mxu0 %v2842
        %3473 = vmatpush2.msra.mxu0 %v2841
        %3474 = vmatprep.subr.mxu0 %v2838
        %3475 = vmatpush2.msra.mxu0 %v2837
        %3476 = vmatprep.subr.mxu0 %v2834
        %3477 = vmatpush2.msra.mxu0 %v2833
        %3478 = vmatprep.subr.mxu0 %v2830
        %3479 = vmatpush2.msra.mxu0 %v2829
        %3480 = vmatprep.subr.mxu0 %v2826
        %3481 = vmatpush2.msra.mxu0 %v2825
        %3482 = vmatprep.mubr.f32.mxu0 %v3040
        %3483 = vmatmul.mubr.f32.gmra.mxu0 %v3038
        %v3484 = vpop.f32.mrf.mxu0
        %v3485 = vadd.f32 %v3414, %v3484
        %v3486 = vpop.f32.mrf.mxu0
        %v3487 = vadd.f32 %v3416, %v3486
        %3488 = vdwg.mxu0
        %v3489 = vtanh.pop %v3272
        %v3490 = vtanh.pop %v3274
        %v3491 = vtanh.pop %v3485
        %v3492 = vtanh.pop %v3487
        %v3493 = vsel %vm2888, %v948, 0
        %v3496 = vsel %vm2891, %v3489, 0
        %v3499 = vsel %vm2891, %v3490, 0
        %v3502 = vsel %vm2891, %v3491, 0
        %v3505 = vsel %vm2891, %v3492, 0
        %3507 = vmatprep.subr.mxu0 0.0
        %3508 = vmatpush1.msra.mxu0 0.0
        %3509 = vmatprep.subr.mxu0 0.0
        %3510 = vmatpush1.msra.mxu0 0.0
        %3511 = vmatprep.subr.mxu0 0.0
        %3512 = vmatpush1.msra.mxu0 0.0
        %3513 = vmatprep.subr.mxu0 0.0
        %3514 = vmatpush1.msra.mxu0 0.0
        %3515 = vmatprep.subr.mxu0 0.0
        %3516 = vmatpush1.msra.mxu0 0.0
        %3517 = vmatprep.subr.mxu0 0.0
        %3518 = vmatpush1.msra.mxu0 0.0
        %3519 = vmatprep.subr.mxu0 0.0
        %3520 = vmatpush1.msra.mxu0 0.0
        %3521 = vmatprep.subr.mxu0 0.0
        %3522 = vmatpush1.msra.mxu0 0.0
        %3523 = vmatprep.subr.mxu0 0.0
        %3524 = vmatpush1.msra.mxu0 0.0
        %3525 = vmatprep.subr.mxu0 0.0
        %3526 = vmatpush1.msra.mxu0 0.0
        %3527 = vmatprep.subr.mxu0 0.0
        %3528 = vmatpush1.msra.mxu0 0.0
        %3529 = vmatprep.subr.mxu0 0.0
        %3530 = vmatpush1.msra.mxu0 0.0
        %3531 = vmatprep.subr.mxu0 0.0
        %3532 = vmatpush1.msra.mxu0 0.0
        %3533 = vmatprep.subr.mxu0 0.0
        %3534 = vmatpush1.msra.mxu0 0.0
        %3535 = vmatprep.subr.mxu0 0.0
        %3536 = vmatpush1.msra.mxu0 0.0
        %3537 = vmatprep.subr.mxu0 %v3499
        %3538 = vmatpush1.msra.mxu0 %v3496
        %3539 = vmatprep.subr.mxu0 0.0
        %3540 = vmatpush2.msra.mxu0 0.0
        %3541 = vmatprep.subr.mxu0 0.0
        %3542 = vmatpush2.msra.mxu0 0.0
        %3543 = vmatprep.subr.mxu0 0.0
        %3544 = vmatpush2.msra.mxu0 0.0
        %3545 = vmatprep.subr.mxu0 0.0
        %3546 = vmatpush2.msra.mxu0 0.0
        %3547 = vmatprep.subr.mxu0 0.0
        %3548 = vmatpush2.msra.mxu0 0.0
        %3549 = vmatprep.subr.mxu0 0.0
        %3550 = vmatpush2.msra.mxu0 0.0
        %3551 = vmatprep.subr.mxu0 0.0
        %3552 = vmatpush2.msra.mxu0 0.0
        %3553 = vmatprep.subr.mxu0 0.0
        %3554 = vmatpush2.msra.mxu0 0.0
        %3555 = vmatprep.subr.mxu0 0.0
        %3556 = vmatpush2.msra.mxu0 0.0
        %3557 = vmatprep.subr.mxu0 0.0
        %3558 = vmatpush2.msra.mxu0 0.0
        %3559 = vmatprep.subr.mxu0 0.0
        %3560 = vmatpush2.msra.mxu0 0.0
        %3561 = vmatprep.subr.mxu0 0.0
        %3562 = vmatpush2.msra.mxu0 0.0
        %3563 = vmatprep.subr.mxu0 0.0
        %3564 = vmatpush2.msra.mxu0 0.0
        %3565 = vmatprep.subr.mxu0 0.0
        %3566 = vmatpush2.msra.mxu0 0.0
        %3567 = vmatprep.subr.mxu0 0.0
        %3568 = vmatpush2.msra.mxu0 0.0
        %3569 = vmatprep.subr.mxu0 0.0
        %3570 = vmatpush2.msra.mxu0 0.0
        %3571 = vmatprep.mubr.f32.mxu0 0.0
        %3572 = vmatmul.mubr.f32.gmra.mxu0 %v3493
        %v3573 = vpop.f32.mrf.mxu0
        %v3574 = vadd.f32 0.0, %v3573
        %v3575 = vpop.f32.mrf.mxu0
        %v3576 = vadd.f32 0.0, %v3575
        %3577 = vdwg.mxu0
        %3578 = vmatprep.subr.mxu0 0.0
        %3579 = vmatpush1.msra.mxu0 0.0
        %3580 = vmatprep.subr.mxu0 0.0
        %3581 = vmatpush1.msra.mxu0 0.0
        %3582 = vmatprep.subr.mxu0 0.0
        %3583 = vmatpush1.msra.mxu0 0.0
        %3584 = vmatprep.subr.mxu0 0.0
        %3585 = vmatpush1.msra.mxu0 0.0
        %3586 = vmatprep.subr.mxu0 0.0
        %3587 = vmatpush1.msra.mxu0 0.0
        %3588 = vmatprep.subr.mxu0 0.0
        %3589 = vmatpush1.msra.mxu0 0.0
        %3590 = vmatprep.subr.mxu0 0.0
        %3591 = vmatpush1.msra.mxu0 0.0
        %3592 = vmatprep.subr.mxu0 0.0
        %3593 = vmatpush1.msra.mxu0 0.0
        %3594 = vmatprep.subr.mxu0 0.0
        %3595 = vmatpush1.msra.mxu0 0.0
        %3596 = vmatprep.subr.mxu0 0.0
        %3597 = vmatpush1.msra.mxu0 0.0
        %3598 = vmatprep.subr.mxu0 0.0
        %3599 = vmatpush1.msra.mxu0 0.0
        %3600 = vmatprep.subr.mxu0 0.0
        %3601 = vmatpush1.msra.mxu0 0.0
        %3602 = vmatprep.subr.mxu0 0.0
        %3603 = vmatpush1.msra.mxu0 0.0
        %3604 = vmatprep.subr.mxu0 0.0
        %3605 = vmatpush1.msra.mxu0 0.0
        %3606 = vmatprep.subr.mxu0 0.0
        %3607 = vmatpush1.msra.mxu0 0.0
        %3608 = vmatprep.subr.mxu0 %v3505
        %3609 = vmatpush1.msra.mxu0 %v3502
        %3610 = vmatprep.subr.mxu0 0.0
        %3611 = vmatpush2.msra.mxu0 0.0
        %3612 = vmatprep.subr.mxu0 0.0
        %3613 = vmatpush2.msra.mxu0 0.0
        %3614 = vmatprep.subr.mxu0 0.0
        %3615 = vmatpush2.msra.mxu0 0.0
        %3616 = vmatprep.subr.mxu0 0.0
        %3617 = vmatpush2.msra.mxu0 0.0
        %3618 = vmatprep.subr.mxu0 0.0
        %3619 = vmatpush2.msra.mxu0 0.0
        %3620 = vmatprep.subr.mxu0 0.0
        %3621 = vmatpush2.msra.mxu0 0.0
        %3622 = vmatprep.subr.mxu0 0.0
        %3623 = vmatpush2.msra.mxu0 0.0
        %3624 = vmatprep.subr.mxu0 0.0
        %3625 = vmatpush2.msra.mxu0 0.0
        %3626 = vmatprep.subr.mxu0 0.0
        %3627 = vmatpush2.msra.mxu0 0.0
        %3628 = vmatprep.subr.mxu0 0.0
        %3629 = vmatpush2.msra.mxu0 0.0
        %3630 = vmatprep.subr.mxu0 0.0
        %3631 = vmatpush2.msra.mxu0 0.0
        %3632 = vmatprep.subr.mxu0 0.0
        %3633 = vmatpush2.msra.mxu0 0.0
        %3634 = vmatprep.subr.mxu0 0.0
        %3635 = vmatpush2.msra.mxu0 0.0
        %3636 = vmatprep.subr.mxu0 0.0
        %3637 = vmatpush2.msra.mxu0 0.0
        %3638 = vmatprep.subr.mxu0 0.0
        %3639 = vmatpush2.msra.mxu0 0.0
        %3640 = vmatprep.subr.mxu0 0.0
        %3641 = vmatpush2.msra.mxu0 0.0
        %3642 = vmatprep.mubr.f32.mxu0 0.0
        %3643 = vmatmul.mubr.f32.gmra.mxu0 %v3493
        %v3644 = vpop.f32.mrf.mxu0
        %v3645 = vadd.f32 0.0, %v3644
        %v3646 = vpop.f32.mrf.mxu0
        %v3647 = vadd.f32 0.0, %v3646
        %3648 = vdwg.mxu0
        %v3649 = vsel %vm2888, %v1037, 0
        %3651 = vmatprep.subr.mxu0 0.0
        %3652 = vmatpush1.msra.mxu0 0.0
        %3653 = vmatprep.subr.mxu0 0.0
        %3654 = vmatpush1.msra.mxu0 0.0
        %3655 = vmatprep.subr.mxu0 0.0
        %3656 = vmatpush1.msra.mxu0 0.0
        %3657 = vmatprep.subr.mxu0 0.0
        %3658 = vmatpush1.msra.mxu0 0.0
        %3659 = vmatprep.subr.mxu0 0.0
        %3660 = vmatpush1.msra.mxu0 0.0
        %3661 = vmatprep.subr.mxu0 0.0
        %3662 = vmatpush1.msra.mxu0 0.0
        %3663 = vmatprep.subr.mxu0 0.0
        %3664 = vmatpush1.msra.mxu0 0.0
        %3665 = vmatprep.subr.mxu0 0.0
        %3666 = vmatpush1.msra.mxu0 0.0
        %3667 = vmatprep.subr.mxu0 0.0
        %3668 = vmatpush1.msra.mxu0 0.0
        %3669 = vmatprep.subr.mxu0 0.0
        %3670 = vmatpush1.msra.mxu0 0.0
        %3671 = vmatprep.subr.mxu0 0.0
        %3672 = vmatpush1.msra.mxu0 0.0
        %3673 = vmatprep.subr.mxu0 0.0
        %3674 = vmatpush1.msra.mxu0 0.0
        %3675 = vmatprep.subr.mxu0 0.0
        %3676 = vmatpush1.msra.mxu0 0.0
        %3677 = vmatprep.subr.mxu0 0.0
        %3678 = vmatpush1.msra.mxu0 0.0
        %3679 = vmatprep.subr.mxu0 0.0
        %3680 = vmatpush1.msra.mxu0 0.0
        %3681 = vmatprep.subr.mxu0 %v3499
        %3682 = vmatpush1.msra.mxu0 %v3496
        %3683 = vmatprep.subr.mxu0 0.0
        %3684 = vmatpush2.msra.mxu0 0.0
        %3685 = vmatprep.subr.mxu0 0.0
        %3686 = vmatpush2.msra.mxu0 0.0
        %3687 = vmatprep.subr.mxu0 0.0
        %3688 = vmatpush2.msra.mxu0 0.0
        %3689 = vmatprep.subr.mxu0 0.0
        %3690 = vmatpush2.msra.mxu0 0.0
        %3691 = vmatprep.subr.mxu0 0.0
        %3692 = vmatpush2.msra.mxu0 0.0
        %3693 = vmatprep.subr.mxu0 0.0
        %3694 = vmatpush2.msra.mxu0 0.0
        %3695 = vmatprep.subr.mxu0 0.0
        %3696 = vmatpush2.msra.mxu0 0.0
        %3697 = vmatprep.subr.mxu0 0.0
        %3698 = vmatpush2.msra.mxu0 0.0
        %3699 = vmatprep.subr.mxu0 0.0
        %3700 = vmatpush2.msra.mxu0 0.0
        %3701 = vmatprep.subr.mxu0 0.0
        %3702 = vmatpush2.msra.mxu0 0.0
        %3703 = vmatprep.subr.mxu0 0.0
        %3704 = vmatpush2.msra.mxu0 0.0
        %3705 = vmatprep.subr.mxu0 0.0
        %3706 = vmatpush2.msra.mxu0 0.0
        %3707 = vmatprep.subr.mxu0 0.0
        %3708 = vmatpush2.msra.mxu0 0.0
        %3709 = vmatprep.subr.mxu0 0.0
        %3710 = vmatpush2.msra.mxu0 0.0
        %3711 = vmatprep.subr.mxu0 0.0
        %3712 = vmatpush2.msra.mxu0 0.0
        %3713 = vmatprep.subr.mxu0 0.0
        %3714 = vmatpush2.msra.mxu0 0.0
        %3715 = vmatprep.mubr.f32.mxu0 0.0
        %3716 = vmatmul.mubr.f32.gmra.mxu0 %v3649
        %v3717 = vpop.f32.mrf.mxu0
        %v3718 = vadd.f32 0.0, %v3717
        %v3719 = vpop.f32.mrf.mxu0
        %v3720 = vadd.f32 0.0, %v3719
        %3721 = vdwg.mxu0
        %3722 = vmatprep.subr.mxu0 0.0
        %3723 = vmatpush1.msra.mxu0 0.0
        %3724 = vmatprep.subr.mxu0 0.0
        %3725 = vmatpush1.msra.mxu0 0.0
        %3726 = vmatprep.subr.mxu0 0.0
        %3727 = vmatpush1.msra.mxu0 0.0
        %3728 = vmatprep.subr.mxu0 0.0
        %3729 = vmatpush1.msra.mxu0 0.0
        %3730 = vmatprep.subr.mxu0 0.0
        %3731 = vmatpush1.msra.mxu0 0.0
        %3732 = vmatprep.subr.mxu0 0.0
        %3733 = vmatpush1.msra.mxu0 0.0
        %3734 = vmatprep.subr.mxu0 0.0
        %3735 = vmatpush1.msra.mxu0 0.0
        %3736 = vmatprep.subr.mxu0 0.0
        %3737 = vmatpush1.msra.mxu0 0.0
        %3738 = vmatprep.subr.mxu0 0.0
        %3739 = vmatpush1.msra.mxu0 0.0
        %3740 = vmatprep.subr.mxu0 0.0
        %3741 = vmatpush1.msra.mxu0 0.0
        %3742 = vmatprep.subr.mxu0 0.0
        %3743 = vmatpush1.msra.mxu0 0.0
        %3744 = vmatprep.subr.mxu0 0.0
        %3745 = vmatpush1.msra.mxu0 0.0
        %3746 = vmatprep.subr.mxu0 0.0
        %3747 = vmatpush1.msra.mxu0 0.0
        %3748 = vmatprep.subr.mxu0 0.0
        %3749 = vmatpush1.msra.mxu0 0.0
        %3750 = vmatprep.subr.mxu0 0.0
        %3751 = vmatpush1.msra.mxu0 0.0
        %3752 = vmatprep.subr.mxu0 %v3505
        %3753 = vmatpush1.msra.mxu0 %v3502
        %3754 = vmatprep.subr.mxu0 0.0
        %3755 = vmatpush2.msra.mxu0 0.0
        %3756 = vmatprep.subr.mxu0 0.0
        %3757 = vmatpush2.msra.mxu0 0.0
        %3758 = vmatprep.subr.mxu0 0.0
        %3759 = vmatpush2.msra.mxu0 0.0
        %3760 = vmatprep.subr.mxu0 0.0
        %3761 = vmatpush2.msra.mxu0 0.0
        %3762 = vmatprep.subr.mxu0 0.0
        %3763 = vmatpush2.msra.mxu0 0.0
        %3764 = vmatprep.subr.mxu0 0.0
        %3765 = vmatpush2.msra.mxu0 0.0
        %3766 = vmatprep.subr.mxu0 0.0
        %3767 = vmatpush2.msra.mxu0 0.0
        %3768 = vmatprep.subr.mxu0 0.0
        %3769 = vmatpush2.msra.mxu0 0.0
        %3770 = vmatprep.subr.mxu0 0.0
        %3771 = vmatpush2.msra.mxu0 0.0
        %3772 = vmatprep.subr.mxu0 0.0
        %3773 = vmatpush2.msra.mxu0 0.0
        %3774 = vmatprep.subr.mxu0 0.0
        %3775 = vmatpush2.msra.mxu0 0.0
        %3776 = vmatprep.subr.mxu0 0.0
        %3777 = vmatpush2.msra.mxu0 0.0
        %3778 = vmatprep.subr.mxu0 0.0
        %3779 = vmatpush2.msra.mxu0 0.0
        %3780 = vmatprep.subr.mxu0 0.0
        %3781 = vmatpush2.msra.mxu0 0.0
        %3782 = vmatprep.subr.mxu0 0.0
        %3783 = vmatpush2.msra.mxu0 0.0
        %3784 = vmatprep.subr.mxu0 0.0
        %3785 = vmatpush2.msra.mxu0 0.0
        %3786 = vmatprep.mubr.f32.mxu0 0.0
        %3787 = vmatmul.mubr.f32.gmra.mxu0 %v3649
        %v3788 = vpop.f32.mrf.mxu0
        %v3789 = vadd.f32 0.0, %v3788
        %v3790 = vpop.f32.mrf.mxu0
        %v3791 = vadd.f32 0.0, %v3790
        %3792 = vdwg.mxu0
        %v3793 = vmax.f32 %v3574, %v3718
        %v3794 = vmax.f32 %v3576, %v3720
        %v3795 = vmax.f32 %v3645, %v3789
        %v3796 = vmax.f32 %v3647, %v3791
        %v3797 = vld [vmem:[#allocation16] sm:$0xff]
        %v3798 = vld [vmem:[#allocation16 + $0x8] sm:$0xff]
        %v3799 = vld [vmem:[#allocation16 + $0x10] sm:$0xff]
        %v3800 = vld [vmem:[#allocation16 + $0x18] sm:$0xff]
        %v3801 = vld [vmem:[#allocation16 + $0x20] sm:$0xff]
        %v3802 = vld [vmem:[#allocation16 + $0x28] sm:$0xff]
        %v3803 = vld [vmem:[#allocation16 + $0x30] sm:$0xff]
        %v3804 = vld [vmem:[#allocation16 + $0x38] sm:$0xff]
        %v3805 = vld [vmem:[#allocation16 + $0x40] sm:$0xff]
        %v3806 = vld [vmem:[#allocation16 + $0x48] sm:$0xff]
        %v3807 = vld [vmem:[#allocation16 + $0x50] sm:$0xff]
        %v3808 = vld [vmem:[#allocation16 + $0x58] sm:$0xff]
        %v3809 = vld [vmem:[#allocation16 + $0x60] sm:$0xff]
        %v3810 = vld [vmem:[#allocation16 + $0x68] sm:$0xff]
        %v3811 = vld [vmem:[#allocation16 + $0x70] sm:$0xff]
        %v3812 = vld [vmem:[#allocation16 + $0x78] sm:$0xff]
        %v3813 = vld [vmem:[#allocation16 + $0x80] sm:$0xff]
        %v3814 = vld [vmem:[#allocation16 + $0x88] sm:$0xff]
        %v3815 = vld [vmem:[#allocation16 + $0x90] sm:$0xff]
        %v3816 = vld [vmem:[#allocation16 + $0x98] sm:$0xff]
        %v3817 = vld [vmem:[#allocation16 + $0xa0] sm:$0xff]
        %v3818 = vld [vmem:[#allocation16 + $0xa8] sm:$0xff]
        %v3819 = vld [vmem:[#allocation16 + $0xb0] sm:$0xff]
        %v3820 = vld [vmem:[#allocation16 + $0xb8] sm:$0xff]
        %v3821 = vld [vmem:[#allocation16 + $0xc0] sm:$0xff]
        %v3822 = vld [vmem:[#allocation16 + $0xc8] sm:$0xff]
        %v3823 = vld [vmem:[#allocation16 + $0xd0] sm:$0xff]
        %v3824 = vld [vmem:[#allocation16 + $0xd8] sm:$0xff]
        %v3825 = vld [vmem:[#allocation16 + $0xe0] sm:$0xff]
        %v3826 = vld [vmem:[#allocation16 + $0xe8] sm:$0xff]
        %v3827 = vld [vmem:[#allocation16 + $0xf0] sm:$0xff]
        %v3828 = vld [vmem:[#allocation16 + $0xf8] sm:$0xff]
        %v3829 = vld [vmem:[#allocation16 + $0x100] sm:$0xff]
        %v3830 = vld [vmem:[#allocation16 + $0x108] sm:$0xff]
        %v3831 = vld [vmem:[#allocation16 + $0x110] sm:$0xff]
        %v3832 = vld [vmem:[#allocation16 + $0x118] sm:$0xff]
        %v3833 = vld [vmem:[#allocation16 + $0x120] sm:$0xff]
        %v3834 = vld [vmem:[#allocation16 + $0x128] sm:$0xff]
        %v3835 = vld [vmem:[#allocation16 + $0x130] sm:$0xff]
        %v3836 = vld [vmem:[#allocation16 + $0x138] sm:$0xff]
        %v3837 = vld [vmem:[#allocation16 + $0x140] sm:$0xff]
        %v3838 = vld [vmem:[#allocation16 + $0x148] sm:$0xff]
        %v3839 = vld [vmem:[#allocation16 + $0x150] sm:$0xff]
        %v3840 = vld [vmem:[#allocation16 + $0x158] sm:$0xff]
        %v3841 = vld [vmem:[#allocation16 + $0x160] sm:$0xff]
        %v3842 = vld [vmem:[#allocation16 + $0x168] sm:$0xff]
        %v3843 = vld [vmem:[#allocation16 + $0x170] sm:$0xff]
        %v3844 = vld [vmem:[#allocation16 + $0x178] sm:$0xff]
        %v3845 = vld [vmem:[#allocation16 + $0x180] sm:$0xff]
        %v3846 = vld [vmem:[#allocation16 + $0x188] sm:$0xff]
        %v3847 = vld [vmem:[#allocation16 + $0x190] sm:$0xff]
        %v3848 = vld [vmem:[#allocation16 + $0x198] sm:$0xff]
        %v3849 = vld [vmem:[#allocation16 + $0x1a0] sm:$0xff]
        %v3850 = vld [vmem:[#allocation16 + $0x1a8] sm:$0xff]
        %v3851 = vld [vmem:[#allocation16 + $0x1b0] sm:$0xff]
        %v3852 = vld [vmem:[#allocation16 + $0x1b8] sm:$0xff]
        %v3853 = vld [vmem:[#allocation16 + $0x1c0] sm:$0xff]
        %v3854 = vld [vmem:[#allocation16 + $0x1c8] sm:$0xff]
        %v3855 = vld [vmem:[#allocation16 + $0x1d0] sm:$0xff]
        %v3856 = vld [vmem:[#allocation16 + $0x1d8] sm:$0xff]
        %v3857 = vld [vmem:[#allocation16 + $0x1e0] sm:$0xff]
        %v3858 = vld [vmem:[#allocation16 + $0x1e8] sm:$0xff]
        %v3859 = vld [vmem:[#allocation16 + $0x1f0] sm:$0xff]
        %v3860 = vld [vmem:[#allocation16 + $0x1f8] sm:$0xff]
        %v3861 = vld [vmem:[#allocation16 + $0x200] sm:$0xff]
        %v3862 = vld [vmem:[#allocation16 + $0x208] sm:$0xff]
        %v3863 = vld [vmem:[#allocation16 + $0x210] sm:$0xff]
        %v3864 = vld [vmem:[#allocation16 + $0x218] sm:$0xff]
        %v3865 = vld [vmem:[#allocation16 + $0x220] sm:$0xff]
        %v3866 = vld [vmem:[#allocation16 + $0x228] sm:$0xff]
        %v3867 = vld [vmem:[#allocation16 + $0x230] sm:$0xff]
        %v3868 = vld [vmem:[#allocation16 + $0x238] sm:$0xff]
        %v3869 = vld [vmem:[#allocation16 + $0x240] sm:$0xff]
        %v3870 = vld [vmem:[#allocation16 + $0x248] sm:$0xff]
        %v3871 = vld [vmem:[#allocation16 + $0x250] sm:$0xff]
        %v3872 = vld [vmem:[#allocation16 + $0x258] sm:$0xff]
        %v3873 = vld [vmem:[#allocation16 + $0x260] sm:$0xff]
        %v3874 = vld [vmem:[#allocation16 + $0x268] sm:$0xff]
        %v3875 = vld [vmem:[#allocation16 + $0x270] sm:$0xff]
        %v3876 = vld [vmem:[#allocation16 + $0x278] sm:$0xff]
        %v3877 = vld [vmem:[#allocation16 + $0x280] sm:$0xff]
        %v3878 = vld [vmem:[#allocation16 + $0x288] sm:$0xff]
        %v3879 = vld [vmem:[#allocation16 + $0x290] sm:$0xff]
        %v3880 = vld [vmem:[#allocation16 + $0x298] sm:$0xff]
        %v3881 = vld [vmem:[#allocation16 + $0x2a0] sm:$0xff]
        %v3882 = vld [vmem:[#allocation16 + $0x2a8] sm:$0xff]
        %v3883 = vld [vmem:[#allocation16 + $0x2b0] sm:$0xff]
        %v3884 = vld [vmem:[#allocation16 + $0x2b8] sm:$0xff]
        %v3885 = vld [vmem:[#allocation16 + $0x2c0] sm:$0xff]
        %v3886 = vld [vmem:[#allocation16 + $0x2c8] sm:$0xff]
        %v3887 = vld [vmem:[#allocation16 + $0x2d0] sm:$0xff]
        %v3888 = vld [vmem:[#allocation16 + $0x2d8] sm:$0xff]
        %v3889 = vld [vmem:[#allocation16 + $0x2e0] sm:$0xff]
        %v3890 = vld [vmem:[#allocation16 + $0x2e8] sm:$0xff]
        %v3891 = vld [vmem:[#allocation16 + $0x2f0] sm:$0xff]
        %v3892 = vld [vmem:[#allocation16 + $0x2f8] sm:$0xff]
        %v3893 = vld [vmem:[#allocation16 + $0x300] sm:$0xff]
        %v3894 = vld [vmem:[#allocation16 + $0x308] sm:$0xff]
        %v3895 = vld [vmem:[#allocation16 + $0x310] sm:$0xff]
        %v3896 = vld [vmem:[#allocation16 + $0x318] sm:$0xff]
        %v3897 = vld [vmem:[#allocation16 + $0x320] sm:$0xff]
        %v3898 = vld [vmem:[#allocation16 + $0x328] sm:$0xff]
        %v3899 = vld [vmem:[#allocation16 + $0x330] sm:$0xff]
        %v3900 = vld [vmem:[#allocation16 + $0x338] sm:$0xff]
        %v3901 = vld [vmem:[#allocation16 + $0x340] sm:$0xff]
        %v3902 = vld [vmem:[#allocation16 + $0x348] sm:$0xff]
        %v3903 = vld [vmem:[#allocation16 + $0x350] sm:$0xff]
        %v3904 = vld [vmem:[#allocation16 + $0x358] sm:$0xff]
        %v3905 = vld [vmem:[#allocation16 + $0x360] sm:$0xff]
        %v3906 = vld [vmem:[#allocation16 + $0x368] sm:$0xff]
        %v3907 = vld [vmem:[#allocation16 + $0x370] sm:$0xff]
        %v3908 = vld [vmem:[#allocation16 + $0x378] sm:$0xff]
        %v3909 = vld [vmem:[#allocation16 + $0x380] sm:$0xff]
        %v3910 = vld [vmem:[#allocation16 + $0x388] sm:$0xff]
        %v3911 = vld [vmem:[#allocation16 + $0x390] sm:$0xff]
        %v3912 = vld [vmem:[#allocation16 + $0x398] sm:$0xff]
        %v3913 = vld [vmem:[#allocation16 + $0x3a0] sm:$0xff]
        %v3914 = vld [vmem:[#allocation16 + $0x3a8] sm:$0xff]
        %v3915 = vld [vmem:[#allocation16 + $0x3b0] sm:$0xff]
        %v3916 = vld [vmem:[#allocation16 + $0x3b8] sm:$0xff]
        %v3917 = vld [vmem:[#allocation16 + $0x3c0] sm:$0xff]
        %v3918 = vld [vmem:[#allocation16 + $0x3c8] sm:$0xff]
        %v3919 = vld [vmem:[#allocation16 + $0x3d0] sm:$0xff]
        %v3920 = vld [vmem:[#allocation16 + $0x3d8] sm:$0xff]
        %v3921 = vld [vmem:[#allocation16 + $0x3e0] sm:$0x3]
        %v3922 = vld [vmem:[#allocation16 + $0x3e8] sm:$0x3]
        %v3923 = vld [vmem:[#allocation16 + $0x3f0] sm:$0x3]
        %v3924 = vld [vmem:[#allocation16 + $0x3f8] sm:$0x3]
        %v3925 = vlaneseq
        %v3926 = vshrl.u32 %v3925, 7
        %v3927 = vsub.s32 0, %v3926
        %v3928 = vrot.slane %v3793, %v3927
        %v3929 = vlaneseq
        %v3930 = vshrl.u32 %v3929, 7
        %v3931 = vsub.s32 0, %v3930
        %v3932 = vrot.slane %v3794, %v3931
        %v3933 = vlaneseq
        %v3934 = vshrl.u32 %v3933, 7
        %v3935 = vsub.s32 0, %v3934
        %v3936 = vrot.slane %v3795, %v3935
        %v3937 = vlaneseq
        %v3938 = vshrl.u32 %v3937, 7
        %v3939 = vsub.s32 0, %v3938
        %v3940 = vrot.slane %v3796, %v3939
        %v3941 = vadd.f32 %v3928, %v3797
        %v3942 = vadd.f32 %v3932, %v3798
        %v3943 = vadd.f32 %v3936, %v3799
        %v3944 = vadd.f32 %v3940, %v3800
        %v3945 = vadd.f32 %v3928, %v3801
        %v3946 = vadd.f32 %v3932, %v3802
        %v3947 = vadd.f32 %v3936, %v3803
        %v3948 = vadd.f32 %v3940, %v3804
        %v3949 = vadd.f32 %v3928, %v3805
        %v3950 = vadd.f32 %v3932, %v3806
        %v3951 = vadd.f32 %v3936, %v3807
        %v3952 = vadd.f32 %v3940, %v3808
        %v3953 = vadd.f32 %v3928, %v3809
        %v3954 = vadd.f32 %v3932, %v3810
        %v3955 = vadd.f32 %v3936, %v3811
        %v3956 = vadd.f32 %v3940, %v3812
        %v3957 = vadd.f32 %v3928, %v3813
        %v3958 = vadd.f32 %v3932, %v3814
        %v3959 = vadd.f32 %v3936, %v3815
        %v3960 = vadd.f32 %v3940, %v3816
        %v3961 = vadd.f32 %v3928, %v3817
        %v3962 = vadd.f32 %v3932, %v3818
        %v3963 = vadd.f32 %v3936, %v3819
        %v3964 = vadd.f32 %v3940, %v3820
        %v3965 = vadd.f32 %v3928, %v3821
        %v3966 = vadd.f32 %v3932, %v3822
        %v3967 = vadd.f32 %v3936, %v3823
        %v3968 = vadd.f32 %v3940, %v3824
        %v3969 = vadd.f32 %v3928, %v3825
        %v3970 = vadd.f32 %v3932, %v3826
        %v3971 = vadd.f32 %v3936, %v3827
        %v3972 = vadd.f32 %v3940, %v3828
        %v3973 = vadd.f32 %v3928, %v3829
        %v3974 = vadd.f32 %v3932, %v3830
        %v3975 = vadd.f32 %v3936, %v3831
        %v3976 = vadd.f32 %v3940, %v3832
        %v3977 = vadd.f32 %v3928, %v3833
        %v3978 = vadd.f32 %v3932, %v3834
        %v3979 = vadd.f32 %v3936, %v3835
        %v3980 = vadd.f32 %v3940, %v3836
        %v3981 = vadd.f32 %v3928, %v3837
        %v3982 = vadd.f32 %v3932, %v3838
        %v3983 = vadd.f32 %v3936, %v3839
        %v3984 = vadd.f32 %v3940, %v3840
        %v3985 = vadd.f32 %v3928, %v3841
        %v3986 = vadd.f32 %v3932, %v3842
        %v3987 = vadd.f32 %v3936, %v3843
        %v3988 = vadd.f32 %v3940, %v3844
        %v3989 = vadd.f32 %v3928, %v3845
        %v3990 = vadd.f32 %v3932, %v3846
        %v3991 = vadd.f32 %v3936, %v3847
        %v3992 = vadd.f32 %v3940, %v3848
        %v3993 = vadd.f32 %v3928, %v3849
        %v3994 = vadd.f32 %v3932, %v3850
        %v3995 = vadd.f32 %v3936, %v3851
        %v3996 = vadd.f32 %v3940, %v3852
        %v3997 = vadd.f32 %v3928, %v3853
        %v3998 = vadd.f32 %v3932, %v3854
        %v3999 = vadd.f32 %v3936, %v3855
        %v4000 = vadd.f32 %v3940, %v3856
        %v4001 = vadd.f32 %v3928, %v3857
        %v4002 = vadd.f32 %v3932, %v3858
        %v4003 = vadd.f32 %v3936, %v3859
        %v4004 = vadd.f32 %v3940, %v3860
        %v4005 = vadd.f32 %v3928, %v3861
        %v4006 = vadd.f32 %v3932, %v3862
        %v4007 = vadd.f32 %v3936, %v3863
        %v4008 = vadd.f32 %v3940, %v3864
        %v4009 = vadd.f32 %v3928, %v3865
        %v4010 = vadd.f32 %v3932, %v3866
        %v4011 = vadd.f32 %v3936, %v3867
        %v4012 = vadd.f32 %v3940, %v3868
        %v4013 = vadd.f32 %v3928, %v3869
        %v4014 = vadd.f32 %v3932, %v3870
        %v4015 = vadd.f32 %v3936, %v3871
        %v4016 = vadd.f32 %v3940, %v3872
        %v4017 = vadd.f32 %v3928, %v3873
        %v4018 = vadd.f32 %v3932, %v3874
        %v4019 = vadd.f32 %v3936, %v3875
        %v4020 = vadd.f32 %v3940, %v3876
        %v4021 = vadd.f32 %v3928, %v3877
        %v4022 = vadd.f32 %v3932, %v3878
        %v4023 = vadd.f32 %v3936, %v3879
        %v4024 = vadd.f32 %v3940, %v3880
        %v4025 = vadd.f32 %v3928, %v3881
        %v4026 = vadd.f32 %v3932, %v3882
        %v4027 = vadd.f32 %v3936, %v3883
        %v4028 = vadd.f32 %v3940, %v3884
        %v4029 = vadd.f32 %v3928, %v3885
        %v4030 = vadd.f32 %v3932, %v3886
        %v4031 = vadd.f32 %v3936, %v3887
        %v4032 = vadd.f32 %v3940, %v3888
        %v4033 = vadd.f32 %v3928, %v3889
        %v4034 = vadd.f32 %v3932, %v3890
        %v4035 = vadd.f32 %v3936, %v3891
        %v4036 = vadd.f32 %v3940, %v3892
        %v4037 = vadd.f32 %v3928, %v3893
        %v4038 = vadd.f32 %v3932, %v3894
        %v4039 = vadd.f32 %v3936, %v3895
        %v4040 = vadd.f32 %v3940, %v3896
        %v4041 = vadd.f32 %v3928, %v3897
        %v4042 = vadd.f32 %v3932, %v3898
        %v4043 = vadd.f32 %v3936, %v3899
        %v4044 = vadd.f32 %v3940, %v3900
        %v4045 = vadd.f32 %v3928, %v3901
        %v4046 = vadd.f32 %v3932, %v3902
        %v4047 = vadd.f32 %v3936, %v3903
        %v4048 = vadd.f32 %v3940, %v3904
        %v4049 = vadd.f32 %v3928, %v3905
        %v4050 = vadd.f32 %v3932, %v3906
        %v4051 = vadd.f32 %v3936, %v3907
        %v4052 = vadd.f32 %v3940, %v3908
        %v4053 = vadd.f32 %v3928, %v3909
        %v4054 = vadd.f32 %v3932, %v3910
        %v4055 = vadd.f32 %v3936, %v3911
        %v4056 = vadd.f32 %v3940, %v3912
        %v4057 = vadd.f32 %v3928, %v3913
        %v4058 = vadd.f32 %v3932, %v3914
        %v4059 = vadd.f32 %v3936, %v3915
        %v4060 = vadd.f32 %v3940, %v3916
        %v4061 = vadd.f32 %v3928, %v3917
        %v4062 = vadd.f32 %v3932, %v3918
        %v4063 = vadd.f32 %v3936, %v3919
        %v4064 = vadd.f32 %v3940, %v3920
        %v4065 = vadd.f32 %v3928, %v3921
        %v4066 = vadd.f32 %v3932, %v3922
        %v4067 = vadd.f32 %v3936, %v3923
        %v4068 = vadd.f32 %v3940, %v3924
        %4069 = vst [vmem:[%s549] sm:$0xff] %v3941
        %4070 = vst [vmem:[%s549 + $0x8] sm:$0xff] %v3942
        %4071 = vst [vmem:[%s549 + $0x10] sm:$0xff] %v3943
        %4072 = vst [vmem:[%s549 + $0x18] sm:$0xff] %v3944
        %4073 = vst [vmem:[%s549 + $0x20] sm:$0xff] %v3945
        %4074 = vst [vmem:[%s549 + $0x28] sm:$0xff] %v3946
        %4075 = vst [vmem:[%s549 + $0x30] sm:$0xff] %v3947
        %4076 = vst [vmem:[%s549 + $0x38] sm:$0xff] %v3948
        %4077 = vst [vmem:[%s549 + $0x40] sm:$0xff] %v3949
        %4078 = vst [vmem:[%s549 + $0x48] sm:$0xff] %v3950
        %4079 = vst [vmem:[%s549 + $0x50] sm:$0xff] %v3951
        %4080 = vst [vmem:[%s549 + $0x58] sm:$0xff] %v3952
        %4081 = vst [vmem:[%s549 + $0x60] sm:$0xff] %v3953
        %4082 = vst [vmem:[%s549 + $0x68] sm:$0xff] %v3954
        %4083 = vst [vmem:[%s549 + $0x70] sm:$0xff] %v3955
        %4084 = vst [vmem:[%s549 + $0x78] sm:$0xff] %v3956
        %4085 = vst [vmem:[%s549 + $0x80] sm:$0xff] %v3957
        %4086 = vst [vmem:[%s549 + $0x88] sm:$0xff] %v3958
        %4087 = vst [vmem:[%s549 + $0x90] sm:$0xff] %v3959
        %4088 = vst [vmem:[%s549 + $0x98] sm:$0xff] %v3960
        %4089 = vst [vmem:[%s549 + $0xa0] sm:$0xff] %v3961
        %4090 = vst [vmem:[%s549 + $0xa8] sm:$0xff] %v3962
        %4091 = vst [vmem:[%s549 + $0xb0] sm:$0xff] %v3963
        %4092 = vst [vmem:[%s549 + $0xb8] sm:$0xff] %v3964
        %4093 = vst [vmem:[%s549 + $0xc0] sm:$0xff] %v3965
        %4094 = vst [vmem:[%s549 + $0xc8] sm:$0xff] %v3966
        %4095 = vst [vmem:[%s549 + $0xd0] sm:$0xff] %v3967
        %4096 = vst [vmem:[%s549 + $0xd8] sm:$0xff] %v3968
        %4097 = vst [vmem:[%s549 + $0xe0] sm:$0xff] %v3969
        %4098 = vst [vmem:[%s549 + $0xe8] sm:$0xff] %v3970
        %4099 = vst [vmem:[%s549 + $0xf0] sm:$0xff] %v3971
        %4100 = vst [vmem:[%s549 + $0xf8] sm:$0xff] %v3972
        %4101 = vst [vmem:[%s549 + $0x100] sm:$0xff] %v3973
        %4102 = vst [vmem:[%s549 + $0x108] sm:$0xff] %v3974
        %4103 = vst [vmem:[%s549 + $0x110] sm:$0xff] %v3975
        %4104 = vst [vmem:[%s549 + $0x118] sm:$0xff] %v3976
        %4105 = vst [vmem:[%s549 + $0x120] sm:$0xff] %v3977
        %4106 = vst [vmem:[%s549 + $0x128] sm:$0xff] %v3978
        %4107 = vst [vmem:[%s549 + $0x130] sm:$0xff] %v3979
        %4108 = vst [vmem:[%s549 + $0x138] sm:$0xff] %v3980
        %4109 = vst [vmem:[%s549 + $0x140] sm:$0xff] %v3981
        %4110 = vst [vmem:[%s549 + $0x148] sm:$0xff] %v3982
        %4111 = vst [vmem:[%s549 + $0x150] sm:$0xff] %v3983
        %4112 = vst [vmem:[%s549 + $0x158] sm:$0xff] %v3984
        %4113 = vst [vmem:[%s549 + $0x160] sm:$0xff] %v3985
        %4114 = vst [vmem:[%s549 + $0x168] sm:$0xff] %v3986
        %4115 = vst [vmem:[%s549 + $0x170] sm:$0xff] %v3987
        %4116 = vst [vmem:[%s549 + $0x178] sm:$0xff] %v3988
        %4117 = vst [vmem:[%s549 + $0x180] sm:$0xff] %v3989
        %4118 = vst [vmem:[%s549 + $0x188] sm:$0xff] %v3990
        %4119 = vst [vmem:[%s549 + $0x190] sm:$0xff] %v3991
        %4120 = vst [vmem:[%s549 + $0x198] sm:$0xff] %v3992
        %4121 = vst [vmem:[%s549 + $0x1a0] sm:$0xff] %v3993
        %4122 = vst [vmem:[%s549 + $0x1a8] sm:$0xff] %v3994
        %4123 = vst [vmem:[%s549 + $0x1b0] sm:$0xff] %v3995
        %4124 = vst [vmem:[%s549 + $0x1b8] sm:$0xff] %v3996
        %4125 = vst [vmem:[%s549 + $0x1c0] sm:$0xff] %v3997
        %4126 = vst [vmem:[%s549 + $0x1c8] sm:$0xff] %v3998
        %4127 = vst [vmem:[%s549 + $0x1d0] sm:$0xff] %v3999
        %4128 = vst [vmem:[%s549 + $0x1d8] sm:$0xff] %v4000
        %4129 = vst [vmem:[%s549 + $0x1e0] sm:$0xff] %v4001
        %4130 = vst [vmem:[%s549 + $0x1e8] sm:$0xff] %v4002
        %4131 = vst [vmem:[%s549 + $0x1f0] sm:$0xff] %v4003
        %4132 = vst [vmem:[%s549 + $0x1f8] sm:$0xff] %v4004
        %4133 = vst [vmem:[%s549 + $0x200] sm:$0xff] %v4005
        %4134 = vst [vmem:[%s549 + $0x208] sm:$0xff] %v4006
        %4135 = vst [vmem:[%s549 + $0x210] sm:$0xff] %v4007
        %4136 = vst [vmem:[%s549 + $0x218] sm:$0xff] %v4008
        %4137 = vst [vmem:[%s549 + $0x220] sm:$0xff] %v4009
        %4138 = vst [vmem:[%s549 + $0x228] sm:$0xff] %v4010
        %4139 = vst [vmem:[%s549 + $0x230] sm:$0xff] %v4011
        %4140 = vst [vmem:[%s549 + $0x238] sm:$0xff] %v4012
        %4141 = vst [vmem:[%s549 + $0x240] sm:$0xff] %v4013
        %4142 = vst [vmem:[%s549 + $0x248] sm:$0xff] %v4014
        %4143 = vst [vmem:[%s549 + $0x250] sm:$0xff] %v4015
        %4144 = vst [vmem:[%s549 + $0x258] sm:$0xff] %v4016
        %4145 = vst [vmem:[%s549 + $0x260] sm:$0xff] %v4017
        %4146 = vst [vmem:[%s549 + $0x268] sm:$0xff] %v4018
        %4147 = vst [vmem:[%s549 + $0x270] sm:$0xff] %v4019
        %4148 = vst [vmem:[%s549 + $0x278] sm:$0xff] %v4020
        %4149 = vst [vmem:[%s549 + $0x280] sm:$0xff] %v4021
        %4150 = vst [vmem:[%s549 + $0x288] sm:$0xff] %v4022
        %4151 = vst [vmem:[%s549 + $0x290] sm:$0xff] %v4023
        %4152 = vst [vmem:[%s549 + $0x298] sm:$0xff] %v4024
        %4153 = vst [vmem:[%s549 + $0x2a0] sm:$0xff] %v4025
        %4154 = vst [vmem:[%s549 + $0x2a8] sm:$0xff] %v4026
        %4155 = vst [vmem:[%s549 + $0x2b0] sm:$0xff] %v4027
        %4156 = vst [vmem:[%s549 + $0x2b8] sm:$0xff] %v4028
        %4157 = vst [vmem:[%s549 + $0x2c0] sm:$0xff] %v4029
        %4158 = vst [vmem:[%s549 + $0x2c8] sm:$0xff] %v4030
        %4159 = vst [vmem:[%s549 + $0x2d0] sm:$0xff] %v4031
        %4160 = vst [vmem:[%s549 + $0x2d8] sm:$0xff] %v4032
        %4161 = vst [vmem:[%s549 + $0x2e0] sm:$0xff] %v4033
        %4162 = vst [vmem:[%s549 + $0x2e8] sm:$0xff] %v4034
        %4163 = vst [vmem:[%s549 + $0x2f0] sm:$0xff] %v4035
        %4164 = vst [vmem:[%s549 + $0x2f8] sm:$0xff] %v4036
        %4165 = vst [vmem:[%s549 + $0x300] sm:$0xff] %v4037
        %4166 = vst [vmem:[%s549 + $0x308] sm:$0xff] %v4038
        %4167 = vst [vmem:[%s549 + $0x310] sm:$0xff] %v4039
        %4168 = vst [vmem:[%s549 + $0x318] sm:$0xff] %v4040
        %4169 = vst [vmem:[%s549 + $0x320] sm:$0xff] %v4041
        %4170 = vst [vmem:[%s549 + $0x328] sm:$0xff] %v4042
        %4171 = vst [vmem:[%s549 + $0x330] sm:$0xff] %v4043
        %4172 = vst [vmem:[%s549 + $0x338] sm:$0xff] %v4044
        %4173 = vst [vmem:[%s549 + $0x340] sm:$0xff] %v4045
        %4174 = vst [vmem:[%s549 + $0x348] sm:$0xff] %v4046
        %4175 = vst [vmem:[%s549 + $0x350] sm:$0xff] %v4047
        %4176 = vst [vmem:[%s549 + $0x358] sm:$0xff] %v4048
        %4177 = vst [vmem:[%s549 + $0x360] sm:$0xff] %v4049
        %4178 = vst [vmem:[%s549 + $0x368] sm:$0xff] %v4050
        %4179 = vst [vmem:[%s549 + $0x370] sm:$0xff] %v4051
        %4180 = vst [vmem:[%s549 + $0x378] sm:$0xff] %v4052
        %4181 = vst [vmem:[%s549 + $0x380] sm:$0xff] %v4053
        %4182 = vst [vmem:[%s549 + $0x388] sm:$0xff] %v4054
        %4183 = vst [vmem:[%s549 + $0x390] sm:$0xff] %v4055
        %4184 = vst [vmem:[%s549 + $0x398] sm:$0xff] %v4056
        %4185 = vst [vmem:[%s549 + $0x3a0] sm:$0xff] %v4057
        %4186 = vst [vmem:[%s549 + $0x3a8] sm:$0xff] %v4058
        %4187 = vst [vmem:[%s549 + $0x3b0] sm:$0xff] %v4059
        %4188 = vst [vmem:[%s549 + $0x3b8] sm:$0xff] %v4060
        %4189 = vst [vmem:[%s549 + $0x3c0] sm:$0xff] %v4061
        %4190 = vst [vmem:[%s549 + $0x3c8] sm:$0xff] %v4062
        %4191 = vst [vmem:[%s549 + $0x3d0] sm:$0xff] %v4063
        %4192 = vst [vmem:[%s549 + $0x3d8] sm:$0xff] %v4064
        %4193 = vst [vmem:[%s549 + $0x3e0] sm:$0x3] %v4065
        %4194 = vst [vmem:[%s549 + $0x3e8] sm:$0x3] %v4066
        %4195 = vst [vmem:[%s549 + $0x3f0] sm:$0x3] %v4067
        %4196 = vst [vmem:[%s549 + $0x3f8] sm:$0x3] %v4068
        %p4197 = scmp.lt.s32.totalorder %s29, 1
        %s4198 = scalar_select %p4197, %s29, 1
        %s4199 = smul.addr %s4198, 128
        %s4200 = smul.addr %s4199, 8
        %s4201 = scalar_lea.vmem %s12, %s4200
        // Predicated region
        $region109: #{tpu_custom_call.1} parent=67 // pred_check
          %p4202 = pneg %p304
        $region110: #{tpu_custom_call.1} parent=67 // pred_check_branch
          %4204 = sbr.rel (%p4202) target = $region112
        $region111: #{tpu_custom_call.1} parent=67 // pred_region
          _
        $region112: #{tpu_custom_call.1} parent=67 // pred_fallthru
          _
      $region68: #{tpu_custom_call.1} parent=5 // pred_fallthru
        _
      %p4205 = scmp.le.s32.totalorder 2, %s24
      // Predicated region
      $region113: #{tpu_custom_call.1} parent=5 // pred_check
        %p4206 = pneg %p4205
      $region114: #{tpu_custom_call.1} parent=5 // pred_check_branch
        %4208 = sbr.rel (%p4206) target = $region116
      $region115: #{tpu_custom_call.1} parent=5 // pred_region
        %s4209 = ssub.s32 %s24, 2
        // Predicated region
        $region117: #{tpu_custom_call.1} parent=115 // pred_check
          %p4210 = pneg %p310
        $region118: #{tpu_custom_call.1} parent=115 // pred_check_branch
          %4212 = sbr.rel (%p4210) target = $region120
        $region119: #{tpu_custom_call.1} parent=115 // pred_region
          %p4213 = scmp.lt.s32.totalorder %s30, 1
          %s4214 = scalar_select %p4213, %s30, 1
          %s4215 = smul.addr %s4214, 128
          %s4216 = smul.addr %s4215, 8
          %s4217 = scalar_lea.vmem %s12, %s4216
        $region120: #{tpu_custom_call.1} parent=115 // pred_fallthru
          _
      $region116: #{tpu_custom_call.1} parent=5 // pred_fallthru
        _
    $region6: #{tpu_custom_call.1} parent=1 // loop_footer
      %s28 = sadd.s32 1, %s24
    $region7: #{tpu_custom_call.1} parent=1 // loop_footer_branch
      %23 = sbr.rel target = $region3
    $region8: #{tpu_custom_call.1} parent=1 // loop_exit
      _
    %4218 = vsyncpa [#allocation3], 1
    %s4219 = scalar_lea.sflag [#allocation3], 1
    %4220 = vsyncpa %s4219, 1
    %4221 = vsyncpa [#allocation5], 1
    %4222 = vsyncpa [#allocation8], 1
    %4223 = vsyncpa [#allocation11], 1
    %4224 = vsyncpa [#allocation14], 1
    %4225 = vsyncpa [#allocation17], 1

</llo_original>
